<compile_context>
chip_gen: v6e
topology: v6e:2x2x1
jax: 0.10.0
libtpu: 0.0.40
codegen_flags: <defaults>
</compile_context>

<pallas_src>
import functools

import jax
import jax.numpy as jnp
from jax.experimental import pallas as pl
from jax.experimental.pallas import tpu as pltpu


# ----------------------------------------------------------------------------
# VMEM budget + tiling helpers
# ----------------------------------------------------------------------------

def _vmem_budget_bytes():
    """Scoped VMEM budget: half of physical VMEM, capped at 64 MiB.

    v5e / v6e (128 MiB physical) -> 64 MiB; v7x (64 MiB physical) -> 32 MiB.
    """
    try:
        cap = pltpu.get_tpu_info().vmem_capacity_bytes
    except Exception:
        cap = 64 * 1024 * 1024
    return min(cap // 2, 64 * 1024 * 1024)


_VMEM_BUDGET = _vmem_budget_bytes()


def _pick_tile(dim, prefs=(512, 256, 128)):
    """Largest preferred tile that evenly divides dim; else the full dim."""
    for p in prefs:
        if dim % p == 0:
            return p
    return dim


def _pick_tile_budget(dim, est_fn, prefs=(512, 256, 128)):
    """Largest preferred divisor of dim whose estimated VMEM fits the budget."""
    divisors = [p for p in prefs if dim % p == 0]
    for p in divisors:
        if est_fn(p) <= _VMEM_BUDGET:
            return p
    if divisors:           # nothing fits the budget: best effort, smallest preferred tile
        return divisors[-1]
    return dim             # small / awkward dim: take it whole


def _itemsize(dt):
    return jnp.dtype(dt).itemsize


# ----------------------------------------------------------------------------
# Pallas kernels
# ----------------------------------------------------------------------------

def _linear_kernel(x_ref, w_ref, b_ref, o_ref, acc_ref, *, relu, nk):
    """Tiled  o = [relu](x @ w + b);  bf16 MXU inputs, f32 accumulation."""
    k = pl.program_id(2)

    @pl.when(k == 0)
    def _():
        acc_ref[...] = jnp.zeros_like(acc_ref)

    a = x_ref[...].astype(jnp.bfloat16)
    b = w_ref[...].astype(jnp.bfloat16)
    acc_ref[...] += jnp.dot(a, b, preferred_element_type=jnp.float32)

    @pl.when(k == nk - 1)
    def _():
        y = acc_ref[...] + b_ref[...].astype(jnp.float32)
        if relu:
            y = jnp.maximum(y, 0.0)
        o_ref[...] = y.astype(o_ref.dtype)


def _linear_res_ln_kernel(*refs, eps, nk, final_ln):
    """Tiled  o = LN(x @ w + b + residual) [optionally followed by a fused second LN]."""
    if final_ln:
        (x_ref, w_ref, b_ref, res_ref, g_ref, beta_ref,
         g2_ref, b2_ref, o_ref, acc_ref) = refs
    else:
        (x_ref, w_ref, b_ref, res_ref, g_ref, beta_ref, o_ref, acc_ref) = refs
        g2_ref = b2_ref = None

    k = pl.program_id(1)

    @pl.when(k == 0)
    def _():
        acc_ref[...] = jnp.zeros_like(acc_ref)

    a = x_ref[...].astype(jnp.bfloat16)
    b = w_ref[...].astype(jnp.bfloat16)
    acc_ref[...] += jnp.dot(a, b, preferred_element_type=jnp.float32)

    @pl.when(k == nk - 1)
    def _():
        y = acc_ref[...] + b_ref[...].astype(jnp.float32) + res_ref[...].astype(jnp.float32)
        mu = jnp.mean(y, axis=-1, keepdims=True)
        var = jnp.mean((y - mu) * (y - mu), axis=-1, keepdims=True)
        y = (y - mu) * jax.lax.rsqrt(var + eps)
        y = y * g_ref[...] + beta_ref[...]
        if final_ln:
            mu2 = jnp.mean(y, axis=-1, keepdims=True)
            var2 = jnp.mean((y - mu2) * (y - mu2), axis=-1, keepdims=True)
            y = (y - mu2) * jax.lax.rsqrt(var2 + eps) * g2_ref[...] + b2_ref[...]
        o_ref[...] = y.astype(o_ref.dtype)


def _layernorm_kernel(x_ref, g_ref, b_ref, o_ref, *, eps):
    """Standalone LayerNorm (only used when num_layers == 0)."""
    x = x_ref[...].astype(jnp.float32)
    mu = jnp.mean(x, axis=-1, keepdims=True)
    var = jnp.mean((x - mu) * (x - mu), axis=-1, keepdims=True)
    o_ref[...] = ((x - mu) * jax.lax.rsqrt(var + eps) * g_ref[...] + b_ref[...]).astype(o_ref.dtype)


def _flash_attn_kernel(q_ref, kv_ref, bias_ref, o_ref, m_sc, l_sc, acc_sc,
                       *, num_heads, d_model, dh):
    """Flash-style attention over one (batch, q_tile) block, iterating kv tiles.

    q_ref   : (1, tq, 3D) bf16  packed [q | k | v]; the q-columns of this q-row tile are used
    kv_ref  : (1, tk, 3D) bf16  the k/v-columns of this kv-row tile are used
    bias_ref: (1, 1, tk)  f32   additive key mask (0 = keep, -1e9 = masked)
    o_ref   : (1, tq, D)  bf16
    scratch : m_sc, l_sc (H, tq, 1) f32 running max / sum; acc_sc (H, tq, Dh) f32
    The 1/sqrt(Dh) scale is already folded into the Q projection weights.
    """
    kv_step = pl.program_id(2)

    @pl.when(kv_step == 0)
    def _():
        m_sc[...] = jnp.full_like(m_sc, -1e30)
        l_sc[...] = jnp.zeros_like(l_sc)
        acc_sc[...] = jnp.zeros_like(acc_sc)

    bias = bias_ref[0].astype(jnp.float32)      # (1, tk), broadcast over queries
    q_all = q_ref[0]                            # (tq, 3D) bf16
    kv_all = kv_ref[0]                          # (tk, 3D) bf16

    for h in range(num_heads):
        qh = q_all[:, h * dh:(h + 1) * dh]                                     # (tq, Dh)
        kh = kv_all[:, d_model + h * dh: d_model + (h + 1) * dh]               # (tk, Dh)
        vh = kv_all[:, 2 * d_model + h * dh: 2 * d_model + (h + 1) * dh]       # (tk, Dh)

        # NT contraction: scores = q @ k^T without materializing k^T.
        s = jax.lax.dot_general(qh, kh, (((1,), (1,)), ((), ())),
                                preferred_element_type=jnp.float32)            # (tq, tk)
        s = s + bias

        m_prev = m_sc[h]                                                       # (tq, 1)
        m_new = jnp.maximum(m_prev, jnp.max(s, axis=-1, keepdims=True))
        alpha = jnp.exp(m_prev - m_new)
        p = jnp.exp(s - m_new)
        l_sc[h] = alpha * l_sc[h] + jnp.sum(p, axis=-1, keepdims=True)
        acc_sc[h] = alpha * acc_sc[h] + jnp.dot(p.astype(jnp.bfloat16), vh,
                                                preferred_element_type=jnp.float32)
        m_sc[h] = m_new

    @pl.when(kv_step == pl.num_programs(2) - 1)
    def _():
        # Direct per-head stores into the lane-dense (tq, D) output block (no concat temp).
        for h in range(num_heads):
            inv = pl.reciprocal(l_sc[h], approx=True)
            o_ref[0, :, h * dh:(h + 1) * dh] = (acc_sc[h] * inv).astype(o_ref.dtype)


# ----------------------------------------------------------------------------
# Wrappers
# ----------------------------------------------------------------------------

def linear(x, w, b, *, relu=False, out_dtype=jnp.float32):
    """x: (M, K); w: (K, N); b: (N,).  Tiled matmul with a K-reduction grid axis."""
    M, K = x.shape
    N = w.shape[1]
    tn = _pick_tile(N)
    tk = _pick_tile(K)
    xb, wb, ob = _itemsize(x.dtype), _itemsize(w.dtype), _itemsize(out_dtype)

    def est(tm):
        return (2 * tm * tk * xb + 2 * tk * tn * wb + 2 * tm * tn * ob
                + tm * tn * 4 + 2 * tn * 4)

    tm = _pick_tile_budget(M, est)
    grid = (M // tm, N // tn, K // tk)
    nk = grid[2]

    return pl.pallas_call(
        functools.partial(_linear_kernel, relu=relu, nk=nk),
        out_shape=jax.ShapeDtypeStruct((M, N), out_dtype),
        grid_spec=pltpu.PrefetchScalarGridSpec(
            num_scalar_prefetch=0,
            grid=grid,
            in_specs=[
                pl.BlockSpec((tm, tk), lambda i, j, k: (i, k)),
                pl.BlockSpec((tk, tn), lambda i, j, k: (k, j)),
                pl.BlockSpec((1, tn), lambda i, j, k: (0, j)),
            ],
            out_specs=pl.BlockSpec((tm, tn), lambda i, j, k: (i, j)),
            scratch_shapes=[pltpu.VMEM((tm, tn), jnp.float32)],
        ),
        compiler_params=pltpu.CompilerParams(
            dimension_semantics=("parallel", "parallel", "arbitrary"),
            vmem_limit_bytes=_VMEM_BUDGET),
    )(x, w, b.reshape(1, N))


def linear_residual_layernorm(x, w, b, residual, gamma, beta, *, eps=1e-5,
                              final_gamma=None, final_beta=None,
                              out_dtype=jnp.float32):
    """LayerNorm(x @ w + b + residual) [* optional fused second LN].  N kept whole."""
    M, K = x.shape
    N = w.shape[1]
    tk = _pick_tile(K)
    xb, wb = _itemsize(x.dtype), _itemsize(w.dtype)
    rb, ob = _itemsize(residual.dtype), _itemsize(out_dtype)

    def est(tm):
        return (2 * tm * tk * xb + 2 * tk * N * wb + 2 * tm * N * rb
                + 2 * tm * N * ob + tm * N * 4 + 12 * N * 4)

    tm = _pick_tile_budget(M, est)
    nk = K // tk
    grid = (M // tm, nk)
    final_ln = final_gamma is not None

    in_specs = [
        pl.BlockSpec((tm, tk), lambda i, k: (i, k)),   # x
        pl.BlockSpec((tk, N), lambda i, k: (k, 0)),    # w
        pl.BlockSpec((1, N), lambda i, k: (0, 0)),     # bias
        pl.BlockSpec((tm, N), lambda i, k: (i, 0)),    # residual
        pl.BlockSpec((1, N), lambda i, k: (0, 0)),     # gamma
        pl.BlockSpec((1, N), lambda i, k: (0, 0)),     # beta
    ]
    args = [x, w, b.reshape(1, N), residual, gamma.reshape(1, N), beta.reshape(1, N)]
    if final_ln:
        in_specs += [pl.BlockSpec((1, N), lambda i, k: (0, 0)),
                     pl.BlockSpec((1, N), lambda i, k: (0, 0))]
        args += [final_gamma.reshape(1, N), final_beta.reshape(1, N)]

    return pl.pallas_call(
        functools.partial(_linear_res_ln_kernel, eps=eps, nk=nk, final_ln=final_ln),
        out_shape=jax.ShapeDtypeStruct((M, N), out_dtype),
        grid_spec=pltpu.PrefetchScalarGridSpec(
            num_scalar_prefetch=0,
            grid=grid,
            in_specs=in_specs,
            out_specs=pl.BlockSpec((tm, N), lambda i, k: (i, 0)),
            scratch_shapes=[pltpu.VMEM((tm, N), jnp.float32)],
        ),
        compiler_params=pltpu.CompilerParams(
            dimension_semantics=("parallel", "arbitrary"),
            vmem_limit_bytes=_VMEM_BUDGET),
    )(*args)


def layernorm(x, g, b, *, eps=1e-5):
    M, D = x.shape
    tm = _pick_tile(M)
    return pl.pallas_call(
        functools.partial(_layernorm_kernel, eps=eps),
        out_shape=jax.ShapeDtypeStruct((M, D), jnp.float32),
        grid_spec=pltpu.PrefetchScalarGridSpec(
            num_scalar_prefetch=0,
            grid=(M // tm,),
            in_specs=[
                pl.BlockSpec((tm, D), lambda i: (i, 0)),
                pl.BlockSpec((1, D), lambda i: (0, 0)),
                pl.BlockSpec((1, D), lambda i: (0, 0)),
            ],
            out_specs=pl.BlockSpec((tm, D), lambda i: (i, 0)),
        ),
        compiler_params=pltpu.CompilerParams(
            dimension_semantics=("parallel",),
            vmem_limit_bytes=_VMEM_BUDGET),
    )(x, g.reshape(1, D), b.reshape(1, D))


def multihead_attention(qkv, mask_bias, *, num_heads, d_model):
    """qkv: (B, T, 3D) bf16 packed [q|k|v]; mask_bias: (B, T) f32 -> (B, T, D) bf16."""
    B, T, _ = qkv.shape
    dh = d_model // num_heads

    def est(t):
        return (4 * t * 3 * d_model * 2        # q-row + kv-row tiles, double-buffered, bf16
                + 2 * t * d_model * 2          # output tile, double-buffered, bf16
                + 2 * t * 4                    # bias
                + num_heads * t * (dh + 2) * 4)  # scratch (m, l, acc)

    t = _pick_tile_budget(T, est, prefs=(256, 128))
    tq = tk = t
    grid = (B, T // tq, T // tk)
    bias3 = mask_bias.reshape(B, 1, T)

    return pl.pallas_call(
        functools.partial(_flash_attn_kernel, num_heads=num_heads,
                          d_model=d_model, dh=dh),
        out_shape=jax.ShapeDtypeStruct((B, T, d_model), jnp.bfloat16),
        grid_spec=pltpu.PrefetchScalarGridSpec(
            num_scalar_prefetch=0,
            grid=grid,
            in_specs=[
                pl.BlockSpec((1, tq, 3 * d_model), lambda b, qi, ki: (b, qi, 0)),  # q rows
                pl.BlockSpec((1, tk, 3 * d_model), lambda b, qi, ki: (b, ki, 0)),  # kv rows
                pl.BlockSpec((1, 1, tk), lambda b, qi, ki: (b, 0, ki)),            # key mask
            ],
            out_specs=pl.BlockSpec((1, tq, d_model), lambda b, qi, ki: (b, qi, 0)),
            scratch_shapes=[
                pltpu.VMEM((num_heads, tq, 1), jnp.float32),   # running max
                pltpu.VMEM((num_heads, tq, 1), jnp.float32),   # running sum
                pltpu.VMEM((num_heads, tq, dh), jnp.float32),  # output accumulator
            ],
        ),
        compiler_params=pltpu.CompilerParams(
            dimension_semantics=("parallel", "parallel", "arbitrary"),
            vmem_limit_bytes=_VMEM_BUDGET),
    )(qkv, qkv, bias3)


# ----------------------------------------------------------------------------
# Parameter construction + full encoder forward
# ----------------------------------------------------------------------------

def init_params(key, num_layers, num_heads, d, fc_hidden):
    def dense(k, fan_in, fan_out):
        kw, kb = jax.random.split(k)
        lim = 1.0 / (fan_in ** 0.5)
        w = jax.random.uniform(kw, (fan_in, fan_out), jnp.float32, -lim, lim)
        b = jax.random.uniform(kb, (fan_out,), jnp.float32, -lim, lim)
        return w, b

    dh = d // num_heads
    scale = 1.0 / (dh ** 0.5)

    keys = jax.random.split(key, num_layers)
    layers = []
    for li in range(num_layers):
        ks = jax.random.split(keys[li], 6)
        wq, bq = dense(ks[0], d, d)
        wk, bk = dense(ks[1], d, d)
        wv, bv = dense(ks[2], d, d)
        wo, bo = dense(ks[3], d, d)
        w1, b1 = dense(ks[4], d, fc_hidden)
        w2, b2 = dense(ks[5], fc_hidden, d)
        # fold the attention 1/sqrt(Dh) scale into the Q projection (zero in-kernel cost)
        wq = wq * scale
        bq = bq * scale
        layers.append(dict(
            # fused QKV projection weight, bf16 for the MXU
            wqkv=jnp.concatenate([wq, wk, wv], axis=1).astype(jnp.bfloat16),
            bqkv=jnp.concatenate([bq, bk, bv]),
            wo=wo.astype(jnp.bfloat16), bo=bo,
            w1=w1.astype(jnp.bfloat16), b1=b1,
            w2=w2.astype(jnp.bfloat16), b2=b2,
            ln1_g=jnp.ones((d,), jnp.float32), ln1_b=jnp.zeros((d,), jnp.float32),
            ln2_g=jnp.ones((d,), jnp.float32), ln2_b=jnp.zeros((d,), jnp.float32),
        ))
    return dict(
        layers=layers,
        ln_g=jnp.ones((d,), jnp.float32),
        ln_b=jnp.zeros((d,), jnp.float32),
    )


def _encoder_forward(params, hiddens, mask, *, num_heads):
    """hiddens: (B, T, D); mask: (B, T) with 1.0 = valid, 0.0 = padded -> (B, T, D)."""
    B, T, D = hiddens.shape

    # additive key mask: 0 for valid keys, -1e9 for padded keys (kept f32)
    mask_bias = (mask.astype(jnp.float32) - 1.0) * 1e9

    layers = params["layers"]
    if len(layers) == 0:
        out = layernorm(hiddens.reshape(B * T, D), params["ln_g"], params["ln_b"])
        return out.reshape(B, T, D)

    for li, lp in enumerate(layers):
        x2 = hiddens.reshape(B * T, D)                                    # f32

        # --- multi-head self-attention (fused QKV projection, flash attention) ---
        qkv = linear(x2, lp["wqkv"], lp["bqkv"], out_dtype=jnp.bfloat16)  # (B*T, 3D)
        attn = multihead_attention(qkv.reshape(B, T, 3 * D), mask_bias,
                                   num_heads=num_heads, d_model=D)        # (B, T, D) bf16

        # out-projection + bias + residual + LayerNorm (fused epilogue)
        hiddens = linear_residual_layernorm(
            attn.reshape(B * T, D), lp["wo"], lp["bo"],
            x2, lp["ln1_g"], lp["ln1_b"])                                 # (B*T, D) f32

        # --- position-wise feed-forward ---
        h1 = linear(hiddens, lp["w1"], lp["b1"], relu=True,
                    out_dtype=jnp.bfloat16)                               # (B*T, F)
        is_last = (li == len(layers) - 1)
        hiddens = linear_residual_layernorm(
            h1, lp["w2"], lp["b2"], hiddens, lp["ln2_g"], lp["ln2_b"],
            # final encoder LayerNorm fused into the last layer's epilogue
            final_gamma=params["ln_g"] if is_last else None,
            final_beta=params["ln_b"] if is_last else None)               # (B*T, D) f32

    return hiddens.reshape(B, T, D)


encoder_forward = jax.jit(_encoder_forward, static_argnames=("num_heads",))


# ----------------------------------------------------------------------------
# Demo
# ----------------------------------------------------------------------------

if __name__ == "__main__":
    num_layers, num_heads, d, fc_hidden = 2, 4, 32, 64
    B, T = 2, 8

    key = jax.random.PRNGKey(0)
    kp, kx = jax.random.split(key)

    params = init_params(kp, num_layers, num_heads, d, fc_hidden)
    hiddens = jax.random.normal(kx, (B, T, d), jnp.float32)
    # mask: 1.0 = valid token, 0.0 = padded (last two positions of batch 1 padded)
    mask = jnp.ones((B, T), jnp.float32).at[1, -2:].set(0.0)

    out = encoder_forward(params, hiddens, mask, num_heads=num_heads)
    out = jax.block_until_ready(out)
    assert out.shape == (B, T, d)
    assert bool(jnp.all(jnp.isfinite(out)))
    print("KERNEL_OK")
</pallas_src>

<mosaic_0001>
module attributes {stable_mosaic.version = 11 : i64} {
  func.func @_linear_res_ln_kernel(%arg0: i32, %arg1: i32, %arg2: memref<16x32xbf16, #tpu.memory_space<vmem>>, %arg3: memref<32x32xbf16, #tpu.memory_space<vmem>>, %arg4: memref<1x32xf32, #tpu.memory_space<vmem>>, %arg5: memref<16x32xf32, #tpu.memory_space<vmem>>, %arg6: memref<1x32xf32, #tpu.memory_space<vmem>>, %arg7: memref<1x32xf32, #tpu.memory_space<vmem>>, %arg8: memref<16x32xf32, #tpu.memory_space<vmem>>, %arg9: memref<16x32xf32, #tpu.memory_space<vmem>>) attributes {dimension_semantics = [#tpu.dimension_semantics<parallel>, #tpu.dimension_semantics<arbitrary>], iteration_bounds = array<i64: 1, 1>, scalar_prefetch = 0 : i64, scratch_operands = 1 : i64, tpu.core_type = #tpu.core_type<tc>, window_params = [{transform_indices = @transform_0, window_bounds = array<i64: 16, 32>}, {transform_indices = @transform_1, window_bounds = array<i64: 32, 32>}, {pipeline_mode = #tpu.pipeline_mode<synchronous>, transform_indices = @transform_2, window_bounds = array<i64: 1, 32>}, {transform_indices = @transform_3, window_bounds = array<i64: 16, 32>}, {pipeline_mode = #tpu.pipeline_mode<synchronous>, transform_indices = @transform_4, window_bounds = array<i64: 1, 32>}, {pipeline_mode = #tpu.pipeline_mode<synchronous>, transform_indices = @transform_5, window_bounds = array<i64: 1, 32>}, {transform_indices = @transform_6, window_bounds = array<i64: 16, 32>}]} {
    %c0_i32 = arith.constant 0 : i32
    %0 = arith.cmpi eq, %arg1, %c0_i32 : i32
    %1 = arith.extui %0 : i1 to i32
    %c0_i32_0 = arith.constant 0 : i32
    %2 = arith.cmpi ne, %1, %c0_i32_0 : i32
    scf.if %2 {
      %cst_10 = arith.constant 0.000000e+00 : f32
      %12 = vector.broadcast %cst_10 : f32 to vector<16x32xf32>
      %c0_11 = arith.constant 0 : index
      %c0_12 = arith.constant 0 : index
      %13 = vector.load %arg9[%c0_11, %c0_12] : memref<16x32xf32, #tpu.memory_space<vmem>>, vector<16x32xf32>
      tpu.vector_store %arg9[%c0_11, %c0_12], %12 {strides = array<i32>} : memref<16x32xf32, #tpu.memory_space<vmem>>, vector<16x32xf32>,
    } else {
    }
    %c0 = arith.constant 0 : index
    %c0_1 = arith.constant 0 : index
    %3 = vector.load %arg2[%c0, %c0_1] : memref<16x32xbf16, #tpu.memory_space<vmem>>, vector<16x32xbf16>
    %c0_2 = arith.constant 0 : index
    %c0_3 = arith.constant 0 : index
    %4 = vector.load %arg3[%c0_2, %c0_3] : memref<32x32xbf16, #tpu.memory_space<vmem>>, vector<32x32xbf16>
    %c0_4 = arith.constant 0 : index
    %c0_5 = arith.constant 0 : index
    %5 = vector.load %arg9[%c0_4, %c0_5] : memref<16x32xf32, #tpu.memory_space<vmem>>, vector<16x32xf32>
    %cst = arith.constant dense<0.000000e+00> : vector<16x32xf32>
    %6 = tpu.matmul %3, %4, %cst {dimension_numbers = #tpu.dot_dimension_numbers<[1], [0], [0], [1], [0, 0, 1, 1], [], []>} : vector<16x32xbf16>, vector<32x32xbf16>, vector<16x32xf32> -> vector<16x32xf32>
    %7 = arith.addf %5, %6 : vector<16x32xf32>
    %c0_6 = arith.constant 0 : index
    %c0_7 = arith.constant 0 : index
    %8 = vector.load %arg9[%c0_6, %c0_7] : memref<16x32xf32, #tpu.memory_space<vmem>>, vector<16x32xf32>
    tpu.vector_store %arg9[%c0_6, %c0_7], %7 {strides = array<i32>} : memref<16x32xf32, #tpu.memory_space<vmem>>, vector<16x32xf32>,
    %c0_i32_8 = arith.constant 0 : i32
    %9 = arith.cmpi eq, %arg1, %c0_i32_8 : i32
    %10 = arith.extui %9 : i1 to i32
    %c0_i32_9 = arith.constant 0 : i32
    %11 = arith.cmpi ne, %10, %c0_i32_9 : i32
    scf.if %11 {
      %c0_10 = arith.constant 0 : index
      %c0_11 = arith.constant 0 : index
      %12 = vector.load %arg9[%c0_10, %c0_11] : memref<16x32xf32, #tpu.memory_space<vmem>>, vector<16x32xf32>
      %c0_12 = arith.constant 0 : index
      %c0_13 = arith.constant 0 : index
      %13 = vector.load %arg4[%c0_12, %c0_13] : memref<1x32xf32, #tpu.memory_space<vmem>>, vector<1x32xf32>
      %14 = vector.broadcast %13 : vector<1x32xf32> to vector<16x32xf32>
      %15 = arith.addf %12, %14 : vector<16x32xf32>
      %c0_14 = arith.constant 0 : index
      %c0_15 = arith.constant 0 : index
      %16 = vector.load %arg5[%c0_14, %c0_15] : memref<16x32xf32, #tpu.memory_space<vmem>>, vector<16x32xf32>
      %17 = arith.addf %15, %16 : vector<16x32xf32>
      %cst_16 = arith.constant dense<0.000000e+00> : vector<16xf32>
      %18 = vector.multi_reduction <add>, %17, %cst_16 [1] : vector<16x32xf32> to vector<16xf32>
      %19 = vector.shape_cast %18 : vector<16xf32> to vector<16x1xf32>
      %cst_17 = arith.constant 3.200000e+01 : f32
      %20 = vector.broadcast %cst_17 : f32 to vector<16x1xf32>
      %21 = arith.divf %19, %20 : vector<16x1xf32>
      %22 = vector.broadcast %21 : vector<16x1xf32> to vector<16x32xf32>
      %23 = arith.subf %17, %22 : vector<16x32xf32>
      %24 = vector.broadcast %21 : vector<16x1xf32> to vector<16x32xf32>
      %25 = arith.subf %17, %24 : vector<16x32xf32>
      %26 = arith.mulf %23, %25 : vector<16x32xf32>
      %cst_18 = arith.constant dense<0.000000e+00> : vector<16xf32>
      %27 = vector.multi_reduction <add>, %26, %cst_18 [1] : vector<16x32xf32> to vector<16xf32>
      %28 = vector.shape_cast %27 : vector<16xf32> to vector<16x1xf32>
      %cst_19 = arith.constant 3.200000e+01 : f32
      %29 = vector.broadcast %cst_19 : f32 to vector<16x1xf32>
      %30 = arith.divf %28, %29 : vector<16x1xf32>
      %31 = vector.broadcast %21 : vector<16x1xf32> to vector<16x32xf32>
      %32 = arith.subf %17, %31 : vector<16x32xf32>
      %cst_20 = arith.constant 9.99999974E-6 : f32
      %33 = vector.broadcast %cst_20 : f32 to vector<16x1xf32>
      %34 = arith.addf %30, %33 : vector<16x1xf32>
      %35 = math.rsqrt %34 : vector<16x1xf32>
      %36 = vector.broadcast %35 : vector<16x1xf32> to vector<16x32xf32>
      %37 = arith.mulf %32, %36 : vector<16x32xf32>
      %c0_21 = arith.constant 0 : index
      %c0_22 = arith.constant 0 : index
      %38 = vector.load %arg6[%c0_21, %c0_22] : memref<1x32xf32, #tpu.memory_space<vmem>>, vector<1x32xf32>
      %39 = vector.broadcast %38 : vector<1x32xf32> to vector<16x32xf32>
      %40 = arith.mulf %37, %39 : vector<16x32xf32>
      %c0_23 = arith.constant 0 : index
      %c0_24 = arith.constant 0 : index
      %41 = vector.load %arg7[%c0_23, %c0_24] : memref<1x32xf32, #tpu.memory_space<vmem>>, vector<1x32xf32>
      %42 = vector.broadcast %41 : vector<1x32xf32> to vector<16x32xf32>
      %43 = arith.addf %40, %42 : vector<16x32xf32>
      %c0_25 = arith.constant 0 : index
      %c0_26 = arith.constant 0 : index
      %44 = vector.load %arg8[%c0_25, %c0_26] : memref<16x32xf32, #tpu.memory_space<vmem>>, vector<16x32xf32>
      tpu.vector_store %arg8[%c0_25, %c0_26], %43 {strides = array<i32>} : memref<16x32xf32, #tpu.memory_space<vmem>>, vector<16x32xf32>,
    } else {
    }
    return
  }
  func.func @transform_0(%arg0: i32, %arg1: i32) -> (i32, i32) {
    %c0_i32 = arith.constant 0 : i32
    return %arg0, %arg1 : i32, i32
  }
  func.func @transform_1(%arg0: i32, %arg1: i32) -> (i32, i32) {
    %c0_i32 = arith.constant 0 : i32
    %c0_i32_0 = arith.constant 0 : i32
    return %arg1, %c0_i32 : i32, i32
  }
  func.func @transform_2(%arg0: i32, %arg1: i32) -> (i32, i32) {
    %c0_i32 = arith.constant 0 : i32
    %c0_i32_0 = arith.constant 0 : i32
    %c0_i32_1 = arith.constant 0 : i32
    return %c0_i32, %c0_i32_0 : i32, i32
  }
  func.func @transform_3(%arg0: i32, %arg1: i32) -> (i32, i32) {
    %c0_i32 = arith.constant 0 : i32
    %c0_i32_0 = arith.constant 0 : i32
    return %arg0, %c0_i32 : i32, i32
  }
  func.func @transform_4(%arg0: i32, %arg1: i32) -> (i32, i32) {
    %c0_i32 = arith.constant 0 : i32
    %c0_i32_0 = arith.constant 0 : i32
    %c0_i32_1 = arith.constant 0 : i32
    return %c0_i32, %c0_i32_0 : i32, i32
  }
  func.func @transform_5(%arg0: i32, %arg1: i32) -> (i32, i32) {
    %c0_i32 = arith.constant 0 : i32
    %c0_i32_0 = arith.constant 0 : i32
    %c0_i32_1 = arith.constant 0 : i32
    return %c0_i32, %c0_i32_0 : i32, i32
  }
  func.func @transform_6(%arg0: i32, %arg1: i32) -> (i32, i32) {
    %c0_i32 = arith.constant 0 : i32
    %c0_i32_0 = arith.constant 0 : i32
    return %arg0, %c0_i32 : i32, i32
  }
}

module attributes {stable_mosaic.version = 11 : i64} {
  func.func @_linear_kernel(%arg0: i32, %arg1: i32, %arg2: i32, %arg3: memref<16x32xf32, #tpu.memory_space<vmem>>, %arg4: memref<32x96xbf16, #tpu.memory_space<vmem>>, %arg5: memref<1x96xf32, #tpu.memory_space<vmem>>, %arg6: memref<16x96xbf16, #tpu.memory_space<vmem>>, %arg7: memref<16x96xf32, #tpu.memory_space<vmem>>) attributes {dimension_semantics = [#tpu.dimension_semantics<parallel>, #tpu.dimension_semantics<parallel>, #tpu.dimension_semantics<arbitrary>], iteration_bounds = array<i64: 1, 1, 1>, scalar_prefetch = 0 : i64, scratch_operands = 1 : i64, tpu.core_type = #tpu.core_type<tc>, window_params = [{transform_indices = @transform_0, window_bounds = array<i64: 16, 32>}, {transform_indices = @transform_1, window_bounds = array<i64: 32, 96>}, {transform_indices = @transform_2, window_bounds = array<i64: 1, 96>}, {transform_indices = @transform_3, window_bounds = array<i64: 16, 96>}]} {
    %c0_i32 = arith.constant 0 : i32
    %0 = arith.cmpi eq, %arg2, %c0_i32 : i32
    %1 = arith.extui %0 : i1 to i32
    %c0_i32_0 = arith.constant 0 : i32
    %2 = arith.cmpi ne, %1, %c0_i32_0 : i32
    scf.if %2 {
      %cst_10 = arith.constant 0.000000e+00 : f32
      %13 = vector.broadcast %cst_10 : f32 to vector<16x96xf32>
      %c0_11 = arith.constant 0 : index
      %c0_12 = arith.constant 0 : index
      %14 = vector.load %arg7[%c0_11, %c0_12] : memref<16x96xf32, #tpu.memory_space<vmem>>, vector<16x96xf32>
      tpu.vector_store %arg7[%c0_11, %c0_12], %13 {strides = array<i32>} : memref<16x96xf32, #tpu.memory_space<vmem>>, vector<16x96xf32>,
    } else {
    }
    %c0 = arith.constant 0 : index
    %c0_1 = arith.constant 0 : index
    %3 = vector.load %arg3[%c0, %c0_1] : memref<16x32xf32, #tpu.memory_space<vmem>>, vector<16x32xf32>
    %4 = arith.truncf %3 : vector<16x32xf32> to vector<16x32xbf16>
    %c0_2 = arith.constant 0 : index
    %c0_3 = arith.constant 0 : index
    %5 = vector.load %arg4[%c0_2, %c0_3] : memref<32x96xbf16, #tpu.memory_space<vmem>>, vector<32x96xbf16>
    %c0_4 = arith.constant 0 : index
    %c0_5 = arith.constant 0 : index
    %6 = vector.load %arg7[%c0_4, %c0_5] : memref<16x96xf32, #tpu.memory_space<vmem>>, vector<16x96xf32>
    %cst = arith.constant dense<0.000000e+00> : vector<16x96xf32>
    %7 = tpu.matmul %4, %5, %cst {dimension_numbers = #tpu.dot_dimension_numbers<[1], [0], [0], [1], [0, 0, 1, 1], [], []>} : vector<16x32xbf16>, vector<32x96xbf16>, vector<16x96xf32> -> vector<16x96xf32>
    %8 = arith.addf %6, %7 : vector<16x96xf32>
    %c0_6 = arith.constant 0 : index
    %c0_7 = arith.constant 0 : index
    %9 = vector.load %arg7[%c0_6, %c0_7] : memref<16x96xf32, #tpu.memory_space<vmem>>, vector<16x96xf32>
    tpu.vector_store %arg7[%c0_6, %c0_7], %8 {strides = array<i32>} : memref<16x96xf32, #tpu.memory_space<vmem>>, vector<16x96xf32>,
    %c0_i32_8 = arith.constant 0 : i32
    %10 = arith.cmpi eq, %arg2, %c0_i32_8 : i32
    %11 = arith.extui %10 : i1 to i32
    %c0_i32_9 = arith.constant 0 : i32
    %12 = arith.cmpi ne, %11, %c0_i32_9 : i32
    scf.if %12 {
      %c0_10 = arith.constant 0 : index
      %c0_11 = arith.constant 0 : index
      %13 = vector.load %arg7[%c0_10, %c0_11] : memref<16x96xf32, #tpu.memory_space<vmem>>, vector<16x96xf32>
      %c0_12 = arith.constant 0 : index
      %c0_13 = arith.constant 0 : index
      %14 = vector.load %arg5[%c0_12, %c0_13] : memref<1x96xf32, #tpu.memory_space<vmem>>, vector<1x96xf32>
      %15 = vector.broadcast %14 : vector<1x96xf32> to vector<16x96xf32>
      %16 = arith.addf %13, %15 : vector<16x96xf32>
      %17 = arith.truncf %16 : vector<16x96xf32> to vector<16x96xbf16>
      %c0_14 = arith.constant 0 : index
      %c0_15 = arith.constant 0 : index
      %18 = vector.load %arg6[%c0_14, %c0_15] : memref<16x96xbf16, #tpu.memory_space<vmem>>, vector<16x96xbf16>
      tpu.vector_store %arg6[%c0_14, %c0_15], %17 {strides = array<i32>} : memref<16x96xbf16, #tpu.memory_space<vmem>>, vector<16x96xbf16>,
    } else {
    }
    return
  }
  func.func @transform_0(%arg0: i32, %arg1: i32, %arg2: i32) -> (i32, i32) {
    %c0_i32 = arith.constant 0 : i32
    return %arg0, %arg2 : i32, i32
  }
  func.func @transform_1(%arg0: i32, %arg1: i32, %arg2: i32) -> (i32, i32) {
    %c0_i32 = arith.constant 0 : i32
    return %arg2, %arg1 : i32, i32
  }
  func.func @transform_2(%arg0: i32, %arg1: i32, %arg2: i32) -> (i32, i32) {
    %c0_i32 = arith.constant 0 : i32
    %c0_i32_0 = arith.constant 0 : i32
    return %c0_i32, %arg1 : i32, i32
  }
  func.func @transform_3(%arg0: i32, %arg1: i32, %arg2: i32) -> (i32, i32) {
    %c0_i32 = arith.constant 0 : i32
    return %arg0, %arg1 : i32, i32
  }
}

module attributes {stable_mosaic.version = 11 : i64} {
  func.func @_flash_attn_kernel(%arg0: i32, %arg1: i32, %arg2: i32, %arg3: memref<1x8x96xbf16, #tpu.memory_space<vmem>>, %arg4: memref<1x8x96xbf16, #tpu.memory_space<vmem>>, %arg5: memref<1x1x8xf32, #tpu.memory_space<vmem>>, %arg6: memref<1x8x32xbf16, #tpu.memory_space<vmem>>, %arg7: memref<4x8x1xf32, #tpu.memory_space<vmem>>, %arg8: memref<4x8x1xf32, #tpu.memory_space<vmem>>, %arg9: memref<4x8x8xf32, #tpu.memory_space<vmem>>) attributes {dimension_semantics = [#tpu.dimension_semantics<parallel>, #tpu.dimension_semantics<parallel>, #tpu.dimension_semantics<arbitrary>], iteration_bounds = array<i64: 2, 1, 1>, scalar_prefetch = 0 : i64, scratch_operands = 3 : i64, tpu.core_type = #tpu.core_type<tc>, window_params = [{transform_indices = @transform_0, window_bounds = array<i64: 1, 8, 96>}, {transform_indices = @transform_1, window_bounds = array<i64: 1, 8, 96>}, {transform_indices = @transform_2, window_bounds = array<i64: 1, 1, 8>}, {transform_indices = @transform_3, window_bounds = array<i64: 1, 8, 32>}]} {
    %c0_i32 = arith.constant 0 : i32
    %0 = arith.cmpi eq, %arg2, %c0_i32 : i32
    %1 = arith.extui %0 : i1 to i32
    %c0_i32_0 = arith.constant 0 : i32
    %2 = arith.cmpi ne, %1, %c0_i32_0 : i32
    scf.if %2 {
      %cst_95 = arith.constant -1.000000e+30 : f32
      %164 = vector.broadcast %cst_95 : f32 to vector<4x8x1xf32>
      %c0_96 = arith.constant 0 : index
      %c0_97 = arith.constant 0 : index
      %c0_98 = arith.constant 0 : index
      %165 = vector.load %arg7[%c0_96, %c0_97, %c0_98] : memref<4x8x1xf32, #tpu.memory_space<vmem>>, vector<4x8x1xf32>
      tpu.vector_store %arg7[%c0_96, %c0_97, %c0_98], %164 {strides = array<i32>} : memref<4x8x1xf32, #tpu.memory_space<vmem>>, vector<4x8x1xf32>,
      %cst_99 = arith.constant 0.000000e+00 : f32
      %166 = vector.broadcast %cst_99 : f32 to vector<4x8x1xf32>
      %c0_100 = arith.constant 0 : index
      %c0_101 = arith.constant 0 : index
      %c0_102 = arith.constant 0 : index
      %167 = vector.load %arg8[%c0_100, %c0_101, %c0_102] : memref<4x8x1xf32, #tpu.memory_space<vmem>>, vector<4x8x1xf32>
      tpu.vector_store %arg8[%c0_100, %c0_101, %c0_102], %166 {strides = array<i32>} : memref<4x8x1xf32, #tpu.memory_space<vmem>>, vector<4x8x1xf32>,
      %cst_103 = arith.constant 0.000000e+00 : f32
      %168 = vector.broadcast %cst_103 : f32 to vector<4x8x8xf32>
      %c0_104 = arith.constant 0 : index
      %c0_105 = arith.constant 0 : index
      %c0_106 = arith.constant 0 : index
      %169 = vector.load %arg9[%c0_104, %c0_105, %c0_106] : memref<4x8x8xf32, #tpu.memory_space<vmem>>, vector<4x8x8xf32>
      tpu.vector_store %arg9[%c0_104, %c0_105, %c0_106], %168 {strides = array<i32>} : memref<4x8x8xf32, #tpu.memory_space<vmem>>, vector<4x8x8xf32>,
    } else {
    }
    %c0 = arith.constant 0 : index
    %c0_1 = arith.constant 0 : index
    %c0_2 = arith.constant 0 : index
    %3 = vector.load %arg5[%c0, %c0_1, %c0_2] : memref<1x1x8xf32, #tpu.memory_space<vmem>>, vector<1x1x8xf32>
    %4 = vector.shape_cast %3 : vector<1x1x8xf32> to vector<1x8xf32>
    %c0_3 = arith.constant 0 : index
    %c0_4 = arith.constant 0 : index
    %c0_5 = arith.constant 0 : index
    %5 = vector.load %arg3[%c0_3, %c0_4, %c0_5] : memref<1x8x96xbf16, #tpu.memory_space<vmem>>, vector<1x8x96xbf16>
    %6 = vector.shape_cast %5 : vector<1x8x96xbf16> to vector<8x96xbf16>
    %c0_6 = arith.constant 0 : index
    %c0_7 = arith.constant 0 : index
    %c0_8 = arith.constant 0 : index
    %7 = vector.load %arg4[%c0_6, %c0_7, %c0_8] : memref<1x8x96xbf16, #tpu.memory_space<vmem>>, vector<1x8x96xbf16>
    %8 = vector.shape_cast %7 : vector<1x8x96xbf16> to vector<8x96xbf16>
    %9 = vector.extract_strided_slice %6 {offsets = [0, 0], sizes = [8, 8], strides = [1, 1]} : vector<8x96xbf16> to vector<8x8xbf16>
    %10 = vector.extract_strided_slice %8 {offsets = [0, 32], sizes = [8, 8], strides = [1, 1]} : vector<8x96xbf16> to vector<8x8xbf16>
    %11 = vector.extract_strided_slice %8 {offsets = [0, 64], sizes = [8, 8], strides = [1, 1]} : vector<8x96xbf16> to vector<8x8xbf16>
    %cst = arith.constant dense<0.000000e+00> : vector<8x8xf32>
    %12 = tpu.matmul %9, %10, %cst {dimension_numbers = #tpu.dot_dimension_numbers<[1], [1], [0], [0], [0, 0, 1, 0], [], []>} : vector<8x8xbf16>, vector<8x8xbf16>, vector<8x8xf32> -> vector<8x8xf32>
    %13 = vector.broadcast %4 : vector<1x8xf32> to vector<8x8xf32>
    %14 = arith.addf %12, %13 : vector<8x8xf32>
    %c0_9 = arith.constant 0 : index
    %c0_10 = arith.constant 0 : index
    %c0_11 = arith.constant 0 : index
    %15 = vector.load %arg7[%c0_9, %c0_10, %c0_11] : memref<4x8x1xf32, #tpu.memory_space<vmem>>, vector<1x8x1xf32>
    %16 = vector.shape_cast %15 : vector<1x8x1xf32> to vector<8x1xf32>
    %cst_12 = arith.constant dense<0xFF800000> : vector<8xf32>
    %17 = vector.multi_reduction <maximumf>, %14, %cst_12 [1] : vector<8x8xf32> to vector<8xf32>
    %18 = vector.shape_cast %17 : vector<8xf32> to vector<8x1xf32>
    %19 = arith.maximumf %16, %18 : vector<8x1xf32>
    %20 = arith.subf %16, %19 : vector<8x1xf32>
    %21 = math.exp %20 : vector<8x1xf32>
    %22 = vector.broadcast %19 : vector<8x1xf32> to vector<8x8xf32>
    %23 = arith.subf %14, %22 : vector<8x8xf32>
    %24 = math.exp %23 : vector<8x8xf32>
    %c0_13 = arith.constant 0 : index
    %c0_14 = arith.constant 0 : index
    %c0_15 = arith.constant 0 : index
    %25 = vector.load %arg8[%c0_13, %c0_14, %c0_15] : memref<4x8x1xf32, #tpu.memory_space<vmem>>, vector<1x8x1xf32>
    %26 = vector.shape_cast %25 : vector<1x8x1xf32> to vector<8x1xf32>
    %27 = arith.mulf %21, %26 : vector<8x1xf32>
    %cst_16 = arith.constant dense<0.000000e+00> : vector<8xf32>
    %28 = vector.multi_reduction <add>, %24, %cst_16 [1] : vector<8x8xf32> to vector<8xf32>
    %29 = vector.shape_cast %28 : vector<8xf32> to vector<8x1xf32>
    %30 = arith.addf %27, %29 : vector<8x1xf32>
    %c0_17 = arith.constant 0 : index
    %c0_18 = arith.constant 0 : index
    %c0_19 = arith.constant 0 : index
    %31 = vector.load %arg8[%c0_17, %c0_18, %c0_19] : memref<4x8x1xf32, #tpu.memory_space<vmem>>, vector<1x8x1xf32>
    %32 = vector.shape_cast %31 : vector<1x8x1xf32> to vector<8x1xf32>
    %33 = vector.shape_cast %30 : vector<8x1xf32> to vector<1x8x1xf32>
    tpu.vector_store %arg8[%c0_17, %c0_18, %c0_19], %33 {strides = array<i32>} : memref<4x8x1xf32, #tpu.memory_space<vmem>>, vector<1x8x1xf32>,
    %c0_20 = arith.constant 0 : index
    %c0_21 = arith.constant 0 : index
    %c0_22 = arith.constant 0 : index
    %34 = vector.load %arg9[%c0_20, %c0_21, %c0_22] : memref<4x8x8xf32, #tpu.memory_space<vmem>>, vector<1x8x8xf32>
    %35 = vector.shape_cast %34 : vector<1x8x8xf32> to vector<8x8xf32>
    %36 = vector.broadcast %21 : vector<8x1xf32> to vector<8x8xf32>
    %37 = arith.mulf %36, %35 : vector<8x8xf32>
    %38 = arith.truncf %24 : vector<8x8xf32> to vector<8x8xbf16>
    %cst_23 = arith.constant dense<0.000000e+00> : vector<8x8xf32>
    %39 = tpu.matmul %38, %11, %cst_23 {dimension_numbers = #tpu.dot_dimension_numbers<[1], [0], [0], [1], [0, 0, 1, 1], [], []>} : vector<8x8xbf16>, vector<8x8xbf16>, vector<8x8xf32> -> vector<8x8xf32>
    %40 = arith.addf %37, %39 : vector<8x8xf32>
    %c0_24 = arith.constant 0 : index
    %c0_25 = arith.constant 0 : index
    %c0_26 = arith.constant 0 : index
    %41 = vector.load %arg9[%c0_24, %c0_25, %c0_26] : memref<4x8x8xf32, #tpu.memory_space<vmem>>, vector<1x8x8xf32>
    %42 = vector.shape_cast %41 : vector<1x8x8xf32> to vector<8x8xf32>
    %43 = vector.shape_cast %40 : vector<8x8xf32> to vector<1x8x8xf32>
    tpu.vector_store %arg9[%c0_24, %c0_25, %c0_26], %43 {strides = array<i32>} : memref<4x8x8xf32, #tpu.memory_space<vmem>>, vector<1x8x8xf32>,
    %c0_27 = arith.constant 0 : index
    %c0_28 = arith.constant 0 : index
    %c0_29 = arith.constant 0 : index
    %44 = vector.load %arg7[%c0_27, %c0_28, %c0_29] : memref<4x8x1xf32, #tpu.memory_space<vmem>>, vector<1x8x1xf32>
    %45 = vector.shape_cast %44 : vector<1x8x1xf32> to vector<8x1xf32>
    %46 = vector.shape_cast %19 : vector<8x1xf32> to vector<1x8x1xf32>
    tpu.vector_store %arg7[%c0_27, %c0_28, %c0_29], %46 {strides = array<i32>} : memref<4x8x1xf32, #tpu.memory_space<vmem>>, vector<1x8x1xf32>,
    %47 = vector.extract_strided_slice %6 {offsets = [0, 8], sizes = [8, 8], strides = [1, 1]} : vector<8x96xbf16> to vector<8x8xbf16>
    %48 = vector.extract_strided_slice %8 {offsets = [0, 40], sizes = [8, 8], strides = [1, 1]} : vector<8x96xbf16> to vector<8x8xbf16>
    %49 = vector.extract_strided_slice %8 {offsets = [0, 72], sizes = [8, 8], strides = [1, 1]} : vector<8x96xbf16> to vector<8x8xbf16>
    %cst_30 = arith.constant dense<0.000000e+00> : vector<8x8xf32>
    %50 = tpu.matmul %47, %48, %cst_30 {dimension_numbers = #tpu.dot_dimension_numbers<[1], [1], [0], [0], [0, 0, 1, 0], [], []>} : vector<8x8xbf16>, vector<8x8xbf16>, vector<8x8xf32> -> vector<8x8xf32>
    %51 = vector.broadcast %4 : vector<1x8xf32> to vector<8x8xf32>
    %52 = arith.addf %50, %51 : vector<8x8xf32>
    %c1 = arith.constant 1 : index
    %c0_31 = arith.constant 0 : index
    %c0_32 = arith.constant 0 : index
    %53 = vector.load %arg7[%c1, %c0_31, %c0_32] : memref<4x8x1xf32, #tpu.memory_space<vmem>>, vector<1x8x1xf32>
    %54 = vector.shape_cast %53 : vector<1x8x1xf32> to vector<8x1xf32>
    %cst_33 = arith.constant dense<0xFF800000> : vector<8xf32>
    %55 = vector.multi_reduction <maximumf>, %52, %cst_33 [1] : vector<8x8xf32> to vector<8xf32>
    %56 = vector.shape_cast %55 : vector<8xf32> to vector<8x1xf32>
    %57 = arith.maximumf %54, %56 : vector<8x1xf32>
    %58 = arith.subf %54, %57 : vector<8x1xf32>
    %59 = math.exp %58 : vector<8x1xf32>
    %60 = vector.broadcast %57 : vector<8x1xf32> to vector<8x8xf32>
    %61 = arith.subf %52, %60 : vector<8x8xf32>
    %62 = math.exp %61 : vector<8x8xf32>
    %c1_34 = arith.constant 1 : index
    %c0_35 = arith.constant 0 : index
    %c0_36 = arith.constant 0 : index
    %63 = vector.load %arg8[%c1_34, %c0_35, %c0_36] : memref<4x8x1xf32, #tpu.memory_space<vmem>>, vector<1x8x1xf32>
    %64 = vector.shape_cast %63 : vector<1x8x1xf32> to vector<8x1xf32>
    %65 = arith.mulf %59, %64 : vector<8x1xf32>
    %cst_37 = arith.constant dense<0.000000e+00> : vector<8xf32>
    %66 = vector.multi_reduction <add>, %62, %cst_37 [1] : vector<8x8xf32> to vector<8xf32>
    %67 = vector.shape_cast %66 : vector<8xf32> to vector<8x1xf32>
    %68 = arith.addf %65, %67 : vector<8x1xf32>
    %c1_38 = arith.constant 1 : index
    %c0_39 = arith.constant 0 : index
    %c0_40 = arith.constant 0 : index
    %69 = vector.load %arg8[%c1_38, %c0_39, %c0_40] : memref<4x8x1xf32, #tpu.memory_space<vmem>>, vector<1x8x1xf32>
    %70 = vector.shape_cast %69 : vector<1x8x1xf32> to vector<8x1xf32>
    %71 = vector.shape_cast %68 : vector<8x1xf32> to vector<1x8x1xf32>
    tpu.vector_store %arg8[%c1_38, %c0_39, %c0_40], %71 {strides = array<i32>} : memref<4x8x1xf32, #tpu.memory_space<vmem>>, vector<1x8x1xf32>,
    %c1_41 = arith.constant 1 : index
    %c0_42 = arith.constant 0 : index
    %c0_43 = arith.constant 0 : index
    %72 = vector.load %arg9[%c1_41, %c0_42, %c0_43] : memref<4x8x8xf32, #tpu.memory_space<vmem>>, vector<1x8x8xf32>
    %73 = vector.shape_cast %72 : vector<1x8x8xf32> to vector<8x8xf32>
    %74 = vector.broadcast %59 : vector<8x1xf32> to vector<8x8xf32>
    %75 = arith.mulf %74, %73 : vector<8x8xf32>
    %76 = arith.truncf %62 : vector<8x8xf32> to vector<8x8xbf16>
    %cst_44 = arith.constant dense<0.000000e+00> : vector<8x8xf32>
    %77 = tpu.matmul %76, %49, %cst_44 {dimension_numbers = #tpu.dot_dimension_numbers<[1], [0], [0], [1], [0, 0, 1, 1], [], []>} : vector<8x8xbf16>, vector<8x8xbf16>, vector<8x8xf32> -> vector<8x8xf32>
    %78 = arith.addf %75, %77 : vector<8x8xf32>
    %c1_45 = arith.constant 1 : index
    %c0_46 = arith.constant 0 : index
    %c0_47 = arith.constant 0 : index
    %79 = vector.load %arg9[%c1_45, %c0_46, %c0_47] : memref<4x8x8xf32, #tpu.memory_space<vmem>>, vector<1x8x8xf32>
    %80 = vector.shape_cast %79 : vector<1x8x8xf32> to vector<8x8xf32>
    %81 = vector.shape_cast %78 : vector<8x8xf32> to vector<1x8x8xf32>
    tpu.vector_store %arg9[%c1_45, %c0_46, %c0_47], %81 {strides = array<i32>} : memref<4x8x8xf32, #tpu.memory_space<vmem>>, vector<1x8x8xf32>,
    %c1_48 = arith.constant 1 : index
    %c0_49 = arith.constant 0 : index
    %c0_50 = arith.constant 0 : index
    %82 = vector.load %arg7[%c1_48, %c0_49, %c0_50] : memref<4x8x1xf32, #tpu.memory_space<vmem>>, vector<1x8x1xf32>
    %83 = vector.shape_cast %82 : vector<1x8x1xf32> to vector<8x1xf32>
    %84 = vector.shape_cast %57 : vector<8x1xf32> to vector<1x8x1xf32>
    tpu.vector_store %arg7[%c1_48, %c0_49, %c0_50], %84 {strides = array<i32>} : memref<4x8x1xf32, #tpu.memory_space<vmem>>, vector<1x8x1xf32>,
    %85 = vector.extract_strided_slice %6 {offsets = [0, 16], sizes = [8, 8], strides = [1, 1]} : vector<8x96xbf16> to vector<8x8xbf16>
    %86 = vector.extract_strided_slice %8 {offsets = [0, 48], sizes = [8, 8], strides = [1, 1]} : vector<8x96xbf16> to vector<8x8xbf16>
    %87 = vector.extract_strided_slice %8 {offsets = [0, 80], sizes = [8, 8], strides = [1, 1]} : vector<8x96xbf16> to vector<8x8xbf16>
    %cst_51 = arith.constant dense<0.000000e+00> : vector<8x8xf32>
    %88 = tpu.matmul %85, %86, %cst_51 {dimension_numbers = #tpu.dot_dimension_numbers<[1], [1], [0], [0], [0, 0, 1, 0], [], []>} : vector<8x8xbf16>, vector<8x8xbf16>, vector<8x8xf32> -> vector<8x8xf32>
    %89 = vector.broadcast %4 : vector<1x8xf32> to vector<8x8xf32>
    %90 = arith.addf %88, %89 : vector<8x8xf32>
    %c2 = arith.constant 2 : index
    %c0_52 = arith.constant 0 : index
    %c0_53 = arith.constant 0 : index
    %91 = vector.load %arg7[%c2, %c0_52, %c0_53] : memref<4x8x1xf32, #tpu.memory_space<vmem>>, vector<1x8x1xf32>
    %92 = vector.shape_cast %91 : vector<1x8x1xf32> to vector<8x1xf32>
    %cst_54 = arith.constant dense<0xFF800000> : vector<8xf32>
    %93 = vector.multi_reduction <maximumf>, %90, %cst_54 [1] : vector<8x8xf32> to vector<8xf32>
    %94 = vector.shape_cast %93 : vector<8xf32> to vector<8x1xf32>
    %95 = arith.maximumf %92, %94 : vector<8x1xf32>
    %96 = arith.subf %92, %95 : vector<8x1xf32>
    %97 = math.exp %96 : vector<8x1xf32>
    %98 = vector.broadcast %95 : vector<8x1xf32> to vector<8x8xf32>
    %99 = arith.subf %90, %98 : vector<8x8xf32>
    %100 = math.exp %99 : vector<8x8xf32>
    %c2_55 = arith.constant 2 : index
    %c0_56 = arith.constant 0 : index
    %c0_57 = arith.constant 0 : index
    %101 = vector.load %arg8[%c2_55, %c0_56, %c0_57] : memref<4x8x1xf32, #tpu.memory_space<vmem>>, vector<1x8x1xf32>
    %102 = vector.shape_cast %101 : vector<1x8x1xf32> to vector<8x1xf32>
    %103 = arith.mulf %97, %102 : vector<8x1xf32>
    %cst_58 = arith.constant dense<0.000000e+00> : vector<8xf32>
    %104 = vector.multi_reduction <add>, %100, %cst_58 [1] : vector<8x8xf32> to vector<8xf32>
    %105 = vector.shape_cast %104 : vector<8xf32> to vector<8x1xf32>
    %106 = arith.addf %103, %105 : vector<8x1xf32>
    %c2_59 = arith.constant 2 : index
    %c0_60 = arith.constant 0 : index
    %c0_61 = arith.constant 0 : index
    %107 = vector.load %arg8[%c2_59, %c0_60, %c0_61] : memref<4x8x1xf32, #tpu.memory_space<vmem>>, vector<1x8x1xf32>
    %108 = vector.shape_cast %107 : vector<1x8x1xf32> to vector<8x1xf32>
    %109 = vector.shape_cast %106 : vector<8x1xf32> to vector<1x8x1xf32>
    tpu.vector_store %arg8[%c2_59, %c0_60, %c0_61], %109 {strides = array<i32>} : memref<4x8x1xf32, #tpu.memory_space<vmem>>, vector<1x8x1xf32>,
    %c2_62 = arith.constant 2 : index
    %c0_63 = arith.constant 0 : index
    %c0_64 = arith.constant 0 : index
    %110 = vector.load %arg9[%c2_62, %c0_63, %c0_64] : memref<4x8x8xf32, #tpu.memory_space<vmem>>, vector<1x8x8xf32>
    %111 = vector.shape_cast %110 : vector<1x8x8xf32> to vector<8x8xf32>
    %112 = vector.broadcast %97 : vector<8x1xf32> to vector<8x8xf32>
    %113 = arith.mulf %112, %111 : vector<8x8xf32>
    %114 = arith.truncf %100 : vector<8x8xf32> to vector<8x8xbf16>
    %cst_65 = arith.constant dense<0.000000e+00> : vector<8x8xf32>
    %115 = tpu.matmul %114, %87, %cst_65 {dimension_numbers = #tpu.dot_dimension_numbers<[1], [0], [0], [1], [0, 0, 1, 1], [], []>} : vector<8x8xbf16>, vector<8x8xbf16>, vector<8x8xf32> -> vector<8x8xf32>
    %116 = arith.addf %113, %115 : vector<8x8xf32>
    %c2_66 = arith.constant 2 : index
    %c0_67 = arith.constant 0 : index
    %c0_68 = arith.constant 0 : index
    %117 = vector.load %arg9[%c2_66, %c0_67, %c0_68] : memref<4x8x8xf32, #tpu.memory_space<vmem>>, vector<1x8x8xf32>
    %118 = vector.shape_cast %117 : vector<1x8x8xf32> to vector<8x8xf32>
    %119 = vector.shape_cast %116 : vector<8x8xf32> to vector<1x8x8xf32>
    tpu.vector_store %arg9[%c2_66, %c0_67, %c0_68], %119 {strides = array<i32>} : memref<4x8x8xf32, #tpu.memory_space<vmem>>, vector<1x8x8xf32>,
    %c2_69 = arith.constant 2 : index
    %c0_70 = arith.constant 0 : index
    %c0_71 = arith.constant 0 : index
    %120 = vector.load %arg7[%c2_69, %c0_70, %c0_71] : memref<4x8x1xf32, #tpu.memory_space<vmem>>, vector<1x8x1xf32>
    %121 = vector.shape_cast %120 : vector<1x8x1xf32> to vector<8x1xf32>
    %122 = vector.shape_cast %95 : vector<8x1xf32> to vector<1x8x1xf32>
    tpu.vector_store %arg7[%c2_69, %c0_70, %c0_71], %122 {strides = array<i32>} : memref<4x8x1xf32, #tpu.memory_space<vmem>>, vector<1x8x1xf32>,
    %123 = vector.extract_strided_slice %6 {offsets = [0, 24], sizes = [8, 8], strides = [1, 1]} : vector<8x96xbf16> to vector<8x8xbf16>
    %124 = vector.extract_strided_slice %8 {offsets = [0, 56], sizes = [8, 8], strides = [1, 1]} : vector<8x96xbf16> to vector<8x8xbf16>
    %125 = vector.extract_strided_slice %8 {offsets = [0, 88], sizes = [8, 8], strides = [1, 1]} : vector<8x96xbf16> to vector<8x8xbf16>
    %cst_72 = arith.constant dense<0.000000e+00> : vector<8x8xf32>
    %126 = tpu.matmul %123, %124, %cst_72 {dimension_numbers = #tpu.dot_dimension_numbers<[1], [1], [0], [0], [0, 0, 1, 0], [], []>} : vector<8x8xbf16>, vector<8x8xbf16>, vector<8x8xf32> -> vector<8x8xf32>
    %127 = vector.broadcast %4 : vector<1x8xf32> to vector<8x8xf32>
    %128 = arith.addf %126, %127 : vector<8x8xf32>
    %c3 = arith.constant 3 : index
    %c0_73 = arith.constant 0 : index
    %c0_74 = arith.constant 0 : index
    %129 = vector.load %arg7[%c3, %c0_73, %c0_74] : memref<4x8x1xf32, #tpu.memory_space<vmem>>, vector<1x8x1xf32>
    %130 = vector.shape_cast %129 : vector<1x8x1xf32> to vector<8x1xf32>
    %cst_75 = arith.constant dense<0xFF800000> : vector<8xf32>
    %131 = vector.multi_reduction <maximumf>, %128, %cst_75 [1] : vector<8x8xf32> to vector<8xf32>
    %132 = vector.shape_cast %131 : vector<8xf32> to vector<8x1xf32>
    %133 = arith.maximumf %130, %132 : vector<8x1xf32>
    %134 = arith.subf %130, %133 : vector<8x1xf32>
    %135 = math.exp %134 : vector<8x1xf32>
    %136 = vector.broadcast %133 : vector<8x1xf32> to vector<8x8xf32>
    %137 = arith.subf %128, %136 : vector<8x8xf32>
    %138 = math.exp %137 : vector<8x8xf32>
    %c3_76 = arith.constant 3 : index
    %c0_77 = arith.constant 0 : index
    %c0_78 = arith.constant 0 : index
    %139 = vector.load %arg8[%c3_76, %c0_77, %c0_78] : memref<4x8x1xf32, #tpu.memory_space<vmem>>, vector<1x8x1xf32>
    %140 = vector.shape_cast %139 : vector<1x8x1xf32> to vector<8x1xf32>
    %141 = arith.mulf %135, %140 : vector<8x1xf32>
    %cst_79 = arith.constant dense<0.000000e+00> : vector<8xf32>
    %142 = vector.multi_reduction <add>, %138, %cst_79 [1] : vector<8x8xf32> to vector<8xf32>
    %143 = vector.shape_cast %142 : vector<8xf32> to vector<8x1xf32>
    %144 = arith.addf %141, %143 : vector<8x1xf32>
    %c3_80 = arith.constant 3 : index
    %c0_81 = arith.constant 0 : index
    %c0_82 = arith.constant 0 : index
    %145 = vector.load %arg8[%c3_80, %c0_81, %c0_82] : memref<4x8x1xf32, #tpu.memory_space<vmem>>, vector<1x8x1xf32>
    %146 = vector.shape_cast %145 : vector<1x8x1xf32> to vector<8x1xf32>
    %147 = vector.shape_cast %144 : vector<8x1xf32> to vector<1x8x1xf32>
    tpu.vector_store %arg8[%c3_80, %c0_81, %c0_82], %147 {strides = array<i32>} : memref<4x8x1xf32, #tpu.memory_space<vmem>>, vector<1x8x1xf32>,
    %c3_83 = arith.constant 3 : index
    %c0_84 = arith.constant 0 : index
    %c0_85 = arith.constant 0 : index
    %148 = vector.load %arg9[%c3_83, %c0_84, %c0_85] : memref<4x8x8xf32, #tpu.memory_space<vmem>>, vector<1x8x8xf32>
    %149 = vector.shape_cast %148 : vector<1x8x8xf32> to vector<8x8xf32>
    %150 = vector.broadcast %135 : vector<8x1xf32> to vector<8x8xf32>
    %151 = arith.mulf %150, %149 : vector<8x8xf32>
    %152 = arith.truncf %138 : vector<8x8xf32> to vector<8x8xbf16>
    %cst_86 = arith.constant dense<0.000000e+00> : vector<8x8xf32>
    %153 = tpu.matmul %152, %125, %cst_86 {dimension_numbers = #tpu.dot_dimension_numbers<[1], [0], [0], [1], [0, 0, 1, 1], [], []>} : vector<8x8xbf16>, vector<8x8xbf16>, vector<8x8xf32> -> vector<8x8xf32>
    %154 = arith.addf %151, %153 : vector<8x8xf32>
    %c3_87 = arith.constant 3 : index
    %c0_88 = arith.constant 0 : index
    %c0_89 = arith.constant 0 : index
    %155 = vector.load %arg9[%c3_87, %c0_88, %c0_89] : memref<4x8x8xf32, #tpu.memory_space<vmem>>, vector<1x8x8xf32>
    %156 = vector.shape_cast %155 : vector<1x8x8xf32> to vector<8x8xf32>
    %157 = vector.shape_cast %154 : vector<8x8xf32> to vector<1x8x8xf32>
    tpu.vector_store %arg9[%c3_87, %c0_88, %c0_89], %157 {strides = array<i32>} : memref<4x8x8xf32, #tpu.memory_space<vmem>>, vector<1x8x8xf32>,
    %c3_90 = arith.constant 3 : index
    %c0_91 = arith.constant 0 : index
    %c0_92 = arith.constant 0 : index
    %158 = vector.load %arg7[%c3_90, %c0_91, %c0_92] : memref<4x8x1xf32, #tpu.memory_space<vmem>>, vector<1x8x1xf32>
    %159 = vector.shape_cast %158 : vector<1x8x1xf32> to vector<8x1xf32>
    %160 = vector.shape_cast %133 : vector<8x1xf32> to vector<1x8x1xf32>
    tpu.vector_store %arg7[%c3_90, %c0_91, %c0_92], %160 {strides = array<i32>} : memref<4x8x1xf32, #tpu.memory_space<vmem>>, vector<1x8x1xf32>,
    %c0_i32_93 = arith.constant 0 : i32
    %161 = arith.cmpi eq, %arg2, %c0_i32_93 : i32
    %162 = arith.extui %161 : i1 to i32
    %c0_i32_94 = arith.constant 0 : i32
    %163 = arith.cmpi ne, %162, %c0_i32_94 : i32
    scf.if %163 {
      %c0_95 = arith.constant 0 : index
      %c0_96 = arith.constant 0 : index
      %c0_97 = arith.constant 0 : index
      %164 = vector.load %arg8[%c0_95, %c0_96, %c0_97] : memref<4x8x1xf32, #tpu.memory_space<vmem>>, vector<1x8x1xf32>
      %165 = vector.shape_cast %164 : vector<1x8x1xf32> to vector<8x1xf32>
      %166 = tpu.reciprocal %165 {approx = true} : vector<8x1xf32> -> vector<8x1xf32>
      %c0_98 = arith.constant 0 : index
      %c0_99 = arith.constant 0 : index
      %c0_100 = arith.constant 0 : index
      %167 = vector.load %arg9[%c0_98, %c0_99, %c0_100] : memref<4x8x8xf32, #tpu.memory_space<vmem>>, vector<1x8x8xf32>
      %168 = vector.shape_cast %167 : vector<1x8x8xf32> to vector<8x8xf32>
      %169 = vector.broadcast %166 : vector<8x1xf32> to vector<8x8xf32>
      %170 = arith.mulf %168, %169 : vector<8x8xf32>
      %171 = arith.truncf %170 : vector<8x8xf32> to vector<8x8xbf16>
      %c0_101 = arith.constant 0 : index
      %c0_102 = arith.constant 0 : index
      %c0_103 = arith.constant 0 : index
      %172 = vector.load %arg6[%c0_101, %c0_102, %c0_103] : memref<1x8x32xbf16, #tpu.memory_space<vmem>>, vector<1x8x8xbf16>
      %173 = vector.shape_cast %172 : vector<1x8x8xbf16> to vector<8x8xbf16>
      %174 = vector.shape_cast %171 : vector<8x8xbf16> to vector<1x8x8xbf16>
      tpu.vector_store %arg6[%c0_101, %c0_102, %c0_103], %174 {strides = array<i32>} : memref<1x8x32xbf16, #tpu.memory_space<vmem>>, vector<1x8x8xbf16>,
      %c1_104 = arith.constant 1 : index
      %c0_105 = arith.constant 0 : index
      %c0_106 = arith.constant 0 : index
      %175 = vector.load %arg8[%c1_104, %c0_105, %c0_106] : memref<4x8x1xf32, #tpu.memory_space<vmem>>, vector<1x8x1xf32>
      %176 = vector.shape_cast %175 : vector<1x8x1xf32> to vector<8x1xf32>
      %177 = tpu.reciprocal %176 {approx = true} : vector<8x1xf32> -> vector<8x1xf32>
      %c1_107 = arith.constant 1 : index
      %c0_108 = arith.constant 0 : index
      %c0_109 = arith.constant 0 : index
      %178 = vector.load %arg9[%c1_107, %c0_108, %c0_109] : memref<4x8x8xf32, #tpu.memory_space<vmem>>, vector<1x8x8xf32>
      %179 = vector.shape_cast %178 : vector<1x8x8xf32> to vector<8x8xf32>
      %180 = vector.broadcast %177 : vector<8x1xf32> to vector<8x8xf32>
      %181 = arith.mulf %179, %180 : vector<8x8xf32>
      %182 = arith.truncf %181 : vector<8x8xf32> to vector<8x8xbf16>
      %c0_110 = arith.constant 0 : index
      %c0_111 = arith.constant 0 : index
      %c8 = arith.constant 8 : index
      %183 = vector.load %arg6[%c0_110, %c0_111, %c8] : memref<1x8x32xbf16, #tpu.memory_space<vmem>>, vector<1x8x8xbf16>
      %184 = vector.shape_cast %183 : vector<1x8x8xbf16> to vector<8x8xbf16>
      %185 = vector.shape_cast %182 : vector<8x8xbf16> to vector<1x8x8xbf16>
      tpu.vector_store %arg6[%c0_110, %c0_111, %c8], %185 {strides = array<i32>} : memref<1x8x32xbf16, #tpu.memory_space<vmem>>, vector<1x8x8xbf16>,
      %c2_112 = arith.constant 2 : index
      %c0_113 = arith.constant 0 : index
      %c0_114 = arith.constant 0 : index
      %186 = vector.load %arg8[%c2_112, %c0_113, %c0_114] : memref<4x8x1xf32, #tpu.memory_space<vmem>>, vector<1x8x1xf32>
      %187 = vector.shape_cast %186 : vector<1x8x1xf32> to vector<8x1xf32>
      %188 = tpu.reciprocal %187 {approx = true} : vector<8x1xf32> -> vector<8x1xf32>
      %c2_115 = arith.constant 2 : index
      %c0_116 = arith.constant 0 : index
      %c0_117 = arith.constant 0 : index
      %189 = vector.load %arg9[%c2_115, %c0_116, %c0_117] : memref<4x8x8xf32, #tpu.memory_space<vmem>>, vector<1x8x8xf32>
      %190 = vector.shape_cast %189 : vector<1x8x8xf32> to vector<8x8xf32>
      %191 = vector.broadcast %188 : vector<8x1xf32> to vector<8x8xf32>
      %192 = arith.mulf %190, %191 : vector<8x8xf32>
      %193 = arith.truncf %192 : vector<8x8xf32> to vector<8x8xbf16>
      %c0_118 = arith.constant 0 : index
      %c0_119 = arith.constant 0 : index
      %c16 = arith.constant 16 : index
      %194 = vector.load %arg6[%c0_118, %c0_119, %c16] : memref<1x8x32xbf16, #tpu.memory_space<vmem>>, vector<1x8x8xbf16>
      %195 = vector.shape_cast %194 : vector<1x8x8xbf16> to vector<8x8xbf16>
      %196 = vector.shape_cast %193 : vector<8x8xbf16> to vector<1x8x8xbf16>
      tpu.vector_store %arg6[%c0_118, %c0_119, %c16], %196 {strides = array<i32>} : memref<1x8x32xbf16, #tpu.memory_space<vmem>>, vector<1x8x8xbf16>,
      %c3_120 = arith.constant 3 : index
      %c0_121 = arith.constant 0 : index
      %c0_122 = arith.constant 0 : index
      %197 = vector.load %arg8[%c3_120, %c0_121, %c0_122] : memref<4x8x1xf32, #tpu.memory_space<vmem>>, vector<1x8x1xf32>
      %198 = vector.shape_cast %197 : vector<1x8x1xf32> to vector<8x1xf32>
      %199 = tpu.reciprocal %198 {approx = true} : vector<8x1xf32> -> vector<8x1xf32>
      %c3_123 = arith.constant 3 : index
      %c0_124 = arith.constant 0 : index
      %c0_125 = arith.constant 0 : index
      %200 = vector.load %arg9[%c3_123, %c0_124, %c0_125] : memref<4x8x8xf32, #tpu.memory_space<vmem>>, vector<1x8x8xf32>
      %201 = vector.shape_cast %200 : vector<1x8x8xf32> to vector<8x8xf32>
      %202 = vector.broadcast %199 : vector<8x1xf32> to vector<8x8xf32>
      %203 = arith.mulf %201, %202 : vector<8x8xf32>
      %204 = arith.truncf %203 : vector<8x8xf32> to vector<8x8xbf16>
      %c0_126 = arith.constant 0 : index
      %c0_127 = arith.constant 0 : index
      %c24 = arith.constant 24 : index
      %205 = vector.load %arg6[%c0_126, %c0_127, %c24] : memref<1x8x32xbf16, #tpu.memory_space<vmem>>, vector<1x8x8xbf16>
      %206 = vector.shape_cast %205 : vector<1x8x8xbf16> to vector<8x8xbf16>
      %207 = vector.shape_cast %204 : vector<8x8xbf16> to vector<1x8x8xbf16>
      tpu.vector_store %arg6[%c0_126, %c0_127, %c24], %207 {strides = array<i32>} : memref<1x8x32xbf16, #tpu.memory_space<vmem>>, vector<1x8x8xbf16>,
    } else {
    }
    return
  }
  func.func @transform_0(%arg0: i32, %arg1: i32, %arg2: i32) -> (i32, i32, i32) {
    %c0_i32 = arith.constant 0 : i32
    %c0_i32_0 = arith.constant 0 : i32
    return %arg0, %arg1, %c0_i32 : i32, i32, i32
  }
  func.func @transform_1(%arg0: i32, %arg1: i32, %arg2: i32) -> (i32, i32, i32) {
    %c0_i32 = arith.constant 0 : i32
    %c0_i32_0 = arith.constant 0 : i32
    return %arg0, %arg2, %c0_i32 : i32, i32, i32
  }
  func.func @transform_2(%arg0: i32, %arg1: i32, %arg2: i32) -> (i32, i32, i32) {
    %c0_i32 = arith.constant 0 : i32
    %c0_i32_0 = arith.constant 0 : i32
    return %arg0, %c0_i32, %arg2 : i32, i32, i32
  }
  func.func @transform_3(%arg0: i32, %arg1: i32, %arg2: i32) -> (i32, i32, i32) {
    %c0_i32 = arith.constant 0 : i32
    %c0_i32_0 = arith.constant 0 : i32
    return %arg0, %arg1, %c0_i32 : i32, i32, i32
  }
}

module attributes {stable_mosaic.version = 11 : i64} {
  func.func @_linear_kernel(%arg0: i32, %arg1: i32, %arg2: i32, %arg3: memref<16x32xf32, #tpu.memory_space<vmem>>, %arg4: memref<32x64xbf16, #tpu.memory_space<vmem>>, %arg5: memref<1x64xf32, #tpu.memory_space<vmem>>, %arg6: memref<16x64xbf16, #tpu.memory_space<vmem>>, %arg7: memref<16x64xf32, #tpu.memory_space<vmem>>) attributes {dimension_semantics = [#tpu.dimension_semantics<parallel>, #tpu.dimension_semantics<parallel>, #tpu.dimension_semantics<arbitrary>], iteration_bounds = array<i64: 1, 1, 1>, scalar_prefetch = 0 : i64, scratch_operands = 1 : i64, tpu.core_type = #tpu.core_type<tc>, window_params = [{transform_indices = @transform_0, window_bounds = array<i64: 16, 32>}, {transform_indices = @transform_1, window_bounds = array<i64: 32, 64>}, {transform_indices = @transform_2, window_bounds = array<i64: 1, 64>}, {transform_indices = @transform_3, window_bounds = array<i64: 16, 64>}]} {
    %c0_i32 = arith.constant 0 : i32
    %0 = arith.cmpi eq, %arg2, %c0_i32 : i32
    %1 = arith.extui %0 : i1 to i32
    %c0_i32_0 = arith.constant 0 : i32
    %2 = arith.cmpi ne, %1, %c0_i32_0 : i32
    scf.if %2 {
      %cst_10 = arith.constant 0.000000e+00 : f32
      %13 = vector.broadcast %cst_10 : f32 to vector<16x64xf32>
      %c0_11 = arith.constant 0 : index
      %c0_12 = arith.constant 0 : index
      %14 = vector.load %arg7[%c0_11, %c0_12] : memref<16x64xf32, #tpu.memory_space<vmem>>, vector<16x64xf32>
      tpu.vector_store %arg7[%c0_11, %c0_12], %13 {strides = array<i32>} : memref<16x64xf32, #tpu.memory_space<vmem>>, vector<16x64xf32>,
    } else {
    }
    %c0 = arith.constant 0 : index
    %c0_1 = arith.constant 0 : index
    %3 = vector.load %arg3[%c0, %c0_1] : memref<16x32xf32, #tpu.memory_space<vmem>>, vector<16x32xf32>
    %4 = arith.truncf %3 : vector<16x32xf32> to vector<16x32xbf16>
    %c0_2 = arith.constant 0 : index
    %c0_3 = arith.constant 0 : index
    %5 = vector.load %arg4[%c0_2, %c0_3] : memref<32x64xbf16, #tpu.memory_space<vmem>>, vector<32x64xbf16>
    %c0_4 = arith.constant 0 : index
    %c0_5 = arith.constant 0 : index
    %6 = vector.load %arg7[%c0_4, %c0_5] : memref<16x64xf32, #tpu.memory_space<vmem>>, vector<16x64xf32>
    %cst = arith.constant dense<0.000000e+00> : vector<16x64xf32>
    %7 = tpu.matmul %4, %5, %cst {dimension_numbers = #tpu.dot_dimension_numbers<[1], [0], [0], [1], [0, 0, 1, 1], [], []>} : vector<16x32xbf16>, vector<32x64xbf16>, vector<16x64xf32> -> vector<16x64xf32>
    %8 = arith.addf %6, %7 : vector<16x64xf32>
    %c0_6 = arith.constant 0 : index
    %c0_7 = arith.constant 0 : index
    %9 = vector.load %arg7[%c0_6, %c0_7] : memref<16x64xf32, #tpu.memory_space<vmem>>, vector<16x64xf32>
    tpu.vector_store %arg7[%c0_6, %c0_7], %8 {strides = array<i32>} : memref<16x64xf32, #tpu.memory_space<vmem>>, vector<16x64xf32>,
    %c0_i32_8 = arith.constant 0 : i32
    %10 = arith.cmpi eq, %arg2, %c0_i32_8 : i32
    %11 = arith.extui %10 : i1 to i32
    %c0_i32_9 = arith.constant 0 : i32
    %12 = arith.cmpi ne, %11, %c0_i32_9 : i32
    scf.if %12 {
      %c0_10 = arith.constant 0 : index
      %c0_11 = arith.constant 0 : index
      %13 = vector.load %arg7[%c0_10, %c0_11] : memref<16x64xf32, #tpu.memory_space<vmem>>, vector<16x64xf32>
      %c0_12 = arith.constant 0 : index
      %c0_13 = arith.constant 0 : index
      %14 = vector.load %arg5[%c0_12, %c0_13] : memref<1x64xf32, #tpu.memory_space<vmem>>, vector<1x64xf32>
      %15 = vector.broadcast %14 : vector<1x64xf32> to vector<16x64xf32>
      %16 = arith.addf %13, %15 : vector<16x64xf32>
      %cst_14 = arith.constant 0.000000e+00 : f32
      %17 = vector.broadcast %cst_14 : f32 to vector<16x64xf32>
      %18 = arith.maximumf %16, %17 : vector<16x64xf32>
      %19 = arith.truncf %18 : vector<16x64xf32> to vector<16x64xbf16>
      %c0_15 = arith.constant 0 : index
      %c0_16 = arith.constant 0 : index
      %20 = vector.load %arg6[%c0_15, %c0_16] : memref<16x64xbf16, #tpu.memory_space<vmem>>, vector<16x64xbf16>
      tpu.vector_store %arg6[%c0_15, %c0_16], %19 {strides = array<i32>} : memref<16x64xbf16, #tpu.memory_space<vmem>>, vector<16x64xbf16>,
    } else {
    }
    return
  }
  func.func @transform_0(%arg0: i32, %arg1: i32, %arg2: i32) -> (i32, i32) {
    %c0_i32 = arith.constant 0 : i32
    return %arg0, %arg2 : i32, i32
  }
  func.func @transform_1(%arg0: i32, %arg1: i32, %arg2: i32) -> (i32, i32) {
    %c0_i32 = arith.constant 0 : i32
    return %arg2, %arg1 : i32, i32
  }
  func.func @transform_2(%arg0: i32, %arg1: i32, %arg2: i32) -> (i32, i32) {
    %c0_i32 = arith.constant 0 : i32
    %c0_i32_0 = arith.constant 0 : i32
    return %c0_i32, %arg1 : i32, i32
  }
  func.func @transform_3(%arg0: i32, %arg1: i32, %arg2: i32) -> (i32, i32) {
    %c0_i32 = arith.constant 0 : i32
    return %arg0, %arg1 : i32, i32
  }
}

module attributes {stable_mosaic.version = 11 : i64} {
  func.func @_linear_res_ln_kernel(%arg0: i32, %arg1: i32, %arg2: memref<16x64xbf16, #tpu.memory_space<vmem>>, %arg3: memref<64x32xbf16, #tpu.memory_space<vmem>>, %arg4: memref<1x32xf32, #tpu.memory_space<vmem>>, %arg5: memref<16x32xf32, #tpu.memory_space<vmem>>, %arg6: memref<1x32xf32, #tpu.memory_space<vmem>>, %arg7: memref<1x32xf32, #tpu.memory_space<vmem>>, %arg8: memref<16x32xf32, #tpu.memory_space<vmem>>, %arg9: memref<16x32xf32, #tpu.memory_space<vmem>>) attributes {dimension_semantics = [#tpu.dimension_semantics<parallel>, #tpu.dimension_semantics<arbitrary>], iteration_bounds = array<i64: 1, 1>, scalar_prefetch = 0 : i64, scratch_operands = 1 : i64, tpu.core_type = #tpu.core_type<tc>, window_params = [{transform_indices = @transform_0, window_bounds = array<i64: 16, 64>}, {transform_indices = @transform_1, window_bounds = array<i64: 64, 32>}, {pipeline_mode = #tpu.pipeline_mode<synchronous>, transform_indices = @transform_2, window_bounds = array<i64: 1, 32>}, {transform_indices = @transform_3, window_bounds = array<i64: 16, 32>}, {pipeline_mode = #tpu.pipeline_mode<synchronous>, transform_indices = @transform_4, window_bounds = array<i64: 1, 32>}, {pipeline_mode = #tpu.pipeline_mode<synchronous>, transform_indices = @transform_5, window_bounds = array<i64: 1, 32>}, {transform_indices = @transform_6, window_bounds = array<i64: 16, 32>}]} {
    %c0_i32 = arith.constant 0 : i32
    %0 = arith.cmpi eq, %arg1, %c0_i32 : i32
    %1 = arith.extui %0 : i1 to i32
    %c0_i32_0 = arith.constant 0 : i32
    %2 = arith.cmpi ne, %1, %c0_i32_0 : i32
    scf.if %2 {
      %cst_10 = arith.constant 0.000000e+00 : f32
      %12 = vector.broadcast %cst_10 : f32 to vector<16x32xf32>
      %c0_11 = arith.constant 0 : index
      %c0_12 = arith.constant 0 : index
      %13 = vector.load %arg9[%c0_11, %c0_12] : memref<16x32xf32, #tpu.memory_space<vmem>>, vector<16x32xf32>
      tpu.vector_store %arg9[%c0_11, %c0_12], %12 {strides = array<i32>} : memref<16x32xf32, #tpu.memory_space<vmem>>, vector<16x32xf32>,
    } else {
    }
    %c0 = arith.constant 0 : index
    %c0_1 = arith.constant 0 : index
    %3 = vector.load %arg2[%c0, %c0_1] : memref<16x64xbf16, #tpu.memory_space<vmem>>, vector<16x64xbf16>
    %c0_2 = arith.constant 0 : index
    %c0_3 = arith.constant 0 : index
    %4 = vector.load %arg3[%c0_2, %c0_3] : memref<64x32xbf16, #tpu.memory_space<vmem>>, vector<64x32xbf16>
    %c0_4 = arith.constant 0 : index
    %c0_5 = arith.constant 0 : index
    %5 = vector.load %arg9[%c0_4, %c0_5] : memref<16x32xf32, #tpu.memory_space<vmem>>, vector<16x32xf32>
    %cst = arith.constant dense<0.000000e+00> : vector<16x32xf32>
    %6 = tpu.matmul %3, %4, %cst {dimension_numbers = #tpu.dot_dimension_numbers<[1], [0], [0], [1], [0, 0, 1, 1], [], []>} : vector<16x64xbf16>, vector<64x32xbf16>, vector<16x32xf32> -> vector<16x32xf32>
    %7 = arith.addf %5, %6 : vector<16x32xf32>
    %c0_6 = arith.constant 0 : index
    %c0_7 = arith.constant 0 : index
    %8 = vector.load %arg9[%c0_6, %c0_7] : memref<16x32xf32, #tpu.memory_space<vmem>>, vector<16x32xf32>
    tpu.vector_store %arg9[%c0_6, %c0_7], %7 {strides = array<i32>} : memref<16x32xf32, #tpu.memory_space<vmem>>, vector<16x32xf32>,
    %c0_i32_8 = arith.constant 0 : i32
    %9 = arith.cmpi eq, %arg1, %c0_i32_8 : i32
    %10 = arith.extui %9 : i1 to i32
    %c0_i32_9 = arith.constant 0 : i32
    %11 = arith.cmpi ne, %10, %c0_i32_9 : i32
    scf.if %11 {
      %c0_10 = arith.constant 0 : index
      %c0_11 = arith.constant 0 : index
      %12 = vector.load %arg9[%c0_10, %c0_11] : memref<16x32xf32, #tpu.memory_space<vmem>>, vector<16x32xf32>
      %c0_12 = arith.constant 0 : index
      %c0_13 = arith.constant 0 : index
      %13 = vector.load %arg4[%c0_12, %c0_13] : memref<1x32xf32, #tpu.memory_space<vmem>>, vector<1x32xf32>
      %14 = vector.broadcast %13 : vector<1x32xf32> to vector<16x32xf32>
      %15 = arith.addf %12, %14 : vector<16x32xf32>
      %c0_14 = arith.constant 0 : index
      %c0_15 = arith.constant 0 : index
      %16 = vector.load %arg5[%c0_14, %c0_15] : memref<16x32xf32, #tpu.memory_space<vmem>>, vector<16x32xf32>
      %17 = arith.addf %15, %16 : vector<16x32xf32>
      %cst_16 = arith.constant dense<0.000000e+00> : vector<16xf32>
      %18 = vector.multi_reduction <add>, %17, %cst_16 [1] : vector<16x32xf32> to vector<16xf32>
      %19 = vector.shape_cast %18 : vector<16xf32> to vector<16x1xf32>
      %cst_17 = arith.constant 3.200000e+01 : f32
      %20 = vector.broadcast %cst_17 : f32 to vector<16x1xf32>
      %21 = arith.divf %19, %20 : vector<16x1xf32>
      %22 = vector.broadcast %21 : vector<16x1xf32> to vector<16x32xf32>
      %23 = arith.subf %17, %22 : vector<16x32xf32>
      %24 = vector.broadcast %21 : vector<16x1xf32> to vector<16x32xf32>
      %25 = arith.subf %17, %24 : vector<16x32xf32>
      %26 = arith.mulf %23, %25 : vector<16x32xf32>
      %cst_18 = arith.constant dense<0.000000e+00> : vector<16xf32>
      %27 = vector.multi_reduction <add>, %26, %cst_18 [1] : vector<16x32xf32> to vector<16xf32>
      %28 = vector.shape_cast %27 : vector<16xf32> to vector<16x1xf32>
      %cst_19 = arith.constant 3.200000e+01 : f32
      %29 = vector.broadcast %cst_19 : f32 to vector<16x1xf32>
      %30 = arith.divf %28, %29 : vector<16x1xf32>
      %31 = vector.broadcast %21 : vector<16x1xf32> to vector<16x32xf32>
      %32 = arith.subf %17, %31 : vector<16x32xf32>
      %cst_20 = arith.constant 9.99999974E-6 : f32
      %33 = vector.broadcast %cst_20 : f32 to vector<16x1xf32>
      %34 = arith.addf %30, %33 : vector<16x1xf32>
      %35 = math.rsqrt %34 : vector<16x1xf32>
      %36 = vector.broadcast %35 : vector<16x1xf32> to vector<16x32xf32>
      %37 = arith.mulf %32, %36 : vector<16x32xf32>
      %c0_21 = arith.constant 0 : index
      %c0_22 = arith.constant 0 : index
      %38 = vector.load %arg6[%c0_21, %c0_22] : memref<1x32xf32, #tpu.memory_space<vmem>>, vector<1x32xf32>
      %39 = vector.broadcast %38 : vector<1x32xf32> to vector<16x32xf32>
      %40 = arith.mulf %37, %39 : vector<16x32xf32>
      %c0_23 = arith.constant 0 : index
      %c0_24 = arith.constant 0 : index
      %41 = vector.load %arg7[%c0_23, %c0_24] : memref<1x32xf32, #tpu.memory_space<vmem>>, vector<1x32xf32>
      %42 = vector.broadcast %41 : vector<1x32xf32> to vector<16x32xf32>
      %43 = arith.addf %40, %42 : vector<16x32xf32>
      %c0_25 = arith.constant 0 : index
      %c0_26 = arith.constant 0 : index
      %44 = vector.load %arg8[%c0_25, %c0_26] : memref<16x32xf32, #tpu.memory_space<vmem>>, vector<16x32xf32>
      tpu.vector_store %arg8[%c0_25, %c0_26], %43 {strides = array<i32>} : memref<16x32xf32, #tpu.memory_space<vmem>>, vector<16x32xf32>,
    } else {
    }
    return
  }
  func.func @transform_0(%arg0: i32, %arg1: i32) -> (i32, i32) {
    %c0_i32 = arith.constant 0 : i32
    return %arg0, %arg1 : i32, i32
  }
  func.func @transform_1(%arg0: i32, %arg1: i32) -> (i32, i32) {
    %c0_i32 = arith.constant 0 : i32
    %c0_i32_0 = arith.constant 0 : i32
    return %arg1, %c0_i32 : i32, i32
  }
  func.func @transform_2(%arg0: i32, %arg1: i32) -> (i32, i32) {
    %c0_i32 = arith.constant 0 : i32
    %c0_i32_0 = arith.constant 0 : i32
    %c0_i32_1 = arith.constant 0 : i32
    return %c0_i32, %c0_i32_0 : i32, i32
  }
  func.func @transform_3(%arg0: i32, %arg1: i32) -> (i32, i32) {
    %c0_i32 = arith.constant 0 : i32
    %c0_i32_0 = arith.constant 0 : i32
    return %arg0, %c0_i32 : i32, i32
  }
  func.func @transform_4(%arg0: i32, %arg1: i32) -> (i32, i32) {
    %c0_i32 = arith.constant 0 : i32
    %c0_i32_0 = arith.constant 0 : i32
    %c0_i32_1 = arith.constant 0 : i32
    return %c0_i32, %c0_i32_0 : i32, i32
  }
  func.func @transform_5(%arg0: i32, %arg1: i32) -> (i32, i32) {
    %c0_i32 = arith.constant 0 : i32
    %c0_i32_0 = arith.constant 0 : i32
    %c0_i32_1 = arith.constant 0 : i32
    return %c0_i32, %c0_i32_0 : i32, i32
  }
  func.func @transform_6(%arg0: i32, %arg1: i32) -> (i32, i32) {
    %c0_i32 = arith.constant 0 : i32
    %c0_i32_0 = arith.constant 0 : i32
    return %arg0, %c0_i32 : i32, i32
  }
}

module attributes {stable_mosaic.version = 11 : i64} {
  func.func @_linear_res_ln_kernel(%arg0: i32, %arg1: i32, %arg2: memref<16x64xbf16, #tpu.memory_space<vmem>>, %arg3: memref<64x32xbf16, #tpu.memory_space<vmem>>, %arg4: memref<1x32xf32, #tpu.memory_space<vmem>>, %arg5: memref<16x32xf32, #tpu.memory_space<vmem>>, %arg6: memref<1x32xf32, #tpu.memory_space<vmem>>, %arg7: memref<1x32xf32, #tpu.memory_space<vmem>>, %arg8: memref<1x32xf32, #tpu.memory_space<vmem>>, %arg9: memref<1x32xf32, #tpu.memory_space<vmem>>, %arg10: memref<16x32xf32, #tpu.memory_space<vmem>>, %arg11: memref<16x32xf32, #tpu.memory_space<vmem>>) attributes {dimension_semantics = [#tpu.dimension_semantics<parallel>, #tpu.dimension_semantics<arbitrary>], iteration_bounds = array<i64: 1, 1>, scalar_prefetch = 0 : i64, scratch_operands = 1 : i64, tpu.core_type = #tpu.core_type<tc>, window_params = [{transform_indices = @transform_0, window_bounds = array<i64: 16, 64>}, {transform_indices = @transform_1, window_bounds = array<i64: 64, 32>}, {pipeline_mode = #tpu.pipeline_mode<synchronous>, transform_indices = @transform_2, window_bounds = array<i64: 1, 32>}, {transform_indices = @transform_3, window_bounds = array<i64: 16, 32>}, {pipeline_mode = #tpu.pipeline_mode<synchronous>, transform_indices = @transform_4, window_bounds = array<i64: 1, 32>}, {pipeline_mode = #tpu.pipeline_mode<synchronous>, transform_indices = @transform_5, window_bounds = array<i64: 1, 32>}, {pipeline_mode = #tpu.pipeline_mode<synchronous>, transform_indices = @transform_6, window_bounds = array<i64: 1, 32>}, {pipeline_mode = #tpu.pipeline_mode<synchronous>, transform_indices = @transform_7, window_bounds = array<i64: 1, 32>}, {transform_indices = @transform_8, window_bounds = array<i64: 16, 32>}]} {
    %c0_i32 = arith.constant 0 : i32
    %0 = arith.cmpi eq, %arg1, %c0_i32 : i32
    %1 = arith.extui %0 : i1 to i32
    %c0_i32_0 = arith.constant 0 : i32
    %2 = arith.cmpi ne, %1, %c0_i32_0 : i32
    scf.if %2 {
      %cst_10 = arith.constant 0.000000e+00 : f32
      %12 = vector.broadcast %cst_10 : f32 to vector<16x32xf32>
      %c0_11 = arith.constant 0 : index
      %c0_12 = arith.constant 0 : index
      %13 = vector.load %arg11[%c0_11, %c0_12] : memref<16x32xf32, #tpu.memory_space<vmem>>, vector<16x32xf32>
      tpu.vector_store %arg11[%c0_11, %c0_12], %12 {strides = array<i32>} : memref<16x32xf32, #tpu.memory_space<vmem>>, vector<16x32xf32>,
    } else {
    }
    %c0 = arith.constant 0 : index
    %c0_1 = arith.constant 0 : index
    %3 = vector.load %arg2[%c0, %c0_1] : memref<16x64xbf16, #tpu.memory_space<vmem>>, vector<16x64xbf16>
    %c0_2 = arith.constant 0 : index
    %c0_3 = arith.constant 0 : index
    %4 = vector.load %arg3[%c0_2, %c0_3] : memref<64x32xbf16, #tpu.memory_space<vmem>>, vector<64x32xbf16>
    %c0_4 = arith.constant 0 : index
    %c0_5 = arith.constant 0 : index
    %5 = vector.load %arg11[%c0_4, %c0_5] : memref<16x32xf32, #tpu.memory_space<vmem>>, vector<16x32xf32>
    %cst = arith.constant dense<0.000000e+00> : vector<16x32xf32>
    %6 = tpu.matmul %3, %4, %cst {dimension_numbers = #tpu.dot_dimension_numbers<[1], [0], [0], [1], [0, 0, 1, 1], [], []>} : vector<16x64xbf16>, vector<64x32xbf16>, vector<16x32xf32> -> vector<16x32xf32>
    %7 = arith.addf %5, %6 : vector<16x32xf32>
    %c0_6 = arith.constant 0 : index
    %c0_7 = arith.constant 0 : index
    %8 = vector.load %arg11[%c0_6, %c0_7] : memref<16x32xf32, #tpu.memory_space<vmem>>, vector<16x32xf32>
    tpu.vector_store %arg11[%c0_6, %c0_7], %7 {strides = array<i32>} : memref<16x32xf32, #tpu.memory_space<vmem>>, vector<16x32xf32>,
    %c0_i32_8 = arith.constant 0 : i32
    %9 = arith.cmpi eq, %arg1, %c0_i32_8 : i32
    %10 = arith.extui %9 : i1 to i32
    %c0_i32_9 = arith.constant 0 : i32
    %11 = arith.cmpi ne, %10, %c0_i32_9 : i32
    scf.if %11 {
      %c0_10 = arith.constant 0 : index
      %c0_11 = arith.constant 0 : index
      %12 = vector.load %arg11[%c0_10, %c0_11] : memref<16x32xf32, #tpu.memory_space<vmem>>, vector<16x32xf32>
      %c0_12 = arith.constant 0 : index
      %c0_13 = arith.constant 0 : index
      %13 = vector.load %arg4[%c0_12, %c0_13] : memref<1x32xf32, #tpu.memory_space<vmem>>, vector<1x32xf32>
      %14 = vector.broadcast %13 : vector<1x32xf32> to vector<16x32xf32>
      %15 = arith.addf %12, %14 : vector<16x32xf32>
      %c0_14 = arith.constant 0 : index
      %c0_15 = arith.constant 0 : index
      %16 = vector.load %arg5[%c0_14, %c0_15] : memref<16x32xf32, #tpu.memory_space<vmem>>, vector<16x32xf32>
      %17 = arith.addf %15, %16 : vector<16x32xf32>
      %cst_16 = arith.constant dense<0.000000e+00> : vector<16xf32>
      %18 = vector.multi_reduction <add>, %17, %cst_16 [1] : vector<16x32xf32> to vector<16xf32>
      %19 = vector.shape_cast %18 : vector<16xf32> to vector<16x1xf32>
      %cst_17 = arith.constant 3.200000e+01 : f32
      %20 = vector.broadcast %cst_17 : f32 to vector<16x1xf32>
      %21 = arith.divf %19, %20 : vector<16x1xf32>
      %22 = vector.broadcast %21 : vector<16x1xf32> to vector<16x32xf32>
      %23 = arith.subf %17, %22 : vector<16x32xf32>
      %24 = vector.broadcast %21 : vector<16x1xf32> to vector<16x32xf32>
      %25 = arith.subf %17, %24 : vector<16x32xf32>
      %26 = arith.mulf %23, %25 : vector<16x32xf32>
      %cst_18 = arith.constant dense<0.000000e+00> : vector<16xf32>
      %27 = vector.multi_reduction <add>, %26, %cst_18 [1] : vector<16x32xf32> to vector<16xf32>
      %28 = vector.shape_cast %27 : vector<16xf32> to vector<16x1xf32>
      %cst_19 = arith.constant 3.200000e+01 : f32
      %29 = vector.broadcast %cst_19 : f32 to vector<16x1xf32>
      %30 = arith.divf %28, %29 : vector<16x1xf32>
      %31 = vector.broadcast %21 : vector<16x1xf32> to vector<16x32xf32>
      %32 = arith.subf %17, %31 : vector<16x32xf32>
      %cst_20 = arith.constant 9.99999974E-6 : f32
      %33 = vector.broadcast %cst_20 : f32 to vector<16x1xf32>
      %34 = arith.addf %30, %33 : vector<16x1xf32>
      %35 = math.rsqrt %34 : vector<16x1xf32>
      %36 = vector.broadcast %35 : vector<16x1xf32> to vector<16x32xf32>
      %37 = arith.mulf %32, %36 : vector<16x32xf32>
      %c0_21 = arith.constant 0 : index
      %c0_22 = arith.constant 0 : index
      %38 = vector.load %arg6[%c0_21, %c0_22] : memref<1x32xf32, #tpu.memory_space<vmem>>, vector<1x32xf32>
      %39 = vector.broadcast %38 : vector<1x32xf32> to vector<16x32xf32>
      %40 = arith.mulf %37, %39 : vector<16x32xf32>
      %c0_23 = arith.constant 0 : index
      %c0_24 = arith.constant 0 : index
      %41 = vector.load %arg7[%c0_23, %c0_24] : memref<1x32xf32, #tpu.memory_space<vmem>>, vector<1x32xf32>
      %42 = vector.broadcast %41 : vector<1x32xf32> to vector<16x32xf32>
      %43 = arith.addf %40, %42 : vector<16x32xf32>
      %cst_25 = arith.constant dense<0.000000e+00> : vector<16xf32>
      %44 = vector.multi_reduction <add>, %43, %cst_25 [1] : vector<16x32xf32> to vector<16xf32>
      %45 = vector.shape_cast %44 : vector<16xf32> to vector<16x1xf32>
      %cst_26 = arith.constant 3.200000e+01 : f32
      %46 = vector.broadcast %cst_26 : f32 to vector<16x1xf32>
      %47 = arith.divf %45, %46 : vector<16x1xf32>
      %48 = vector.broadcast %47 : vector<16x1xf32> to vector<16x32xf32>
      %49 = arith.subf %43, %48 : vector<16x32xf32>
      %50 = vector.broadcast %47 : vector<16x1xf32> to vector<16x32xf32>
      %51 = arith.subf %43, %50 : vector<16x32xf32>
      %52 = arith.mulf %49, %51 : vector<16x32xf32>
      %cst_27 = arith.constant dense<0.000000e+00> : vector<16xf32>
      %53 = vector.multi_reduction <add>, %52, %cst_27 [1] : vector<16x32xf32> to vector<16xf32>
      %54 = vector.shape_cast %53 : vector<16xf32> to vector<16x1xf32>
      %cst_28 = arith.constant 3.200000e+01 : f32
      %55 = vector.broadcast %cst_28 : f32 to vector<16x1xf32>
      %56 = arith.divf %54, %55 : vector<16x1xf32>
      %57 = vector.broadcast %47 : vector<16x1xf32> to vector<16x32xf32>
      %58 = arith.subf %43, %57 : vector<16x32xf32>
      %cst_29 = arith.constant 9.99999974E-6 : f32
      %59 = vector.broadcast %cst_29 : f32 to vector<16x1xf32>
      %60 = arith.addf %56, %59 : vector<16x1xf32>
      %61 = math.rsqrt %60 : vector<16x1xf32>
      %62 = vector.broadcast %61 : vector<16x1xf32> to vector<16x32xf32>
      %63 = arith.mulf %58, %62 : vector<16x32xf32>
      %c0_30 = arith.constant 0 : index
      %c0_31 = arith.constant 0 : index
      %64 = vector.load %arg8[%c0_30, %c0_31] : memref<1x32xf32, #tpu.memory_space<vmem>>, vector<1x32xf32>
      %65 = vector.broadcast %64 : vector<1x32xf32> to vector<16x32xf32>
      %66 = arith.mulf %63, %65 : vector<16x32xf32>
      %c0_32 = arith.constant 0 : index
      %c0_33 = arith.constant 0 : index
      %67 = vector.load %arg9[%c0_32, %c0_33] : memref<1x32xf32, #tpu.memory_space<vmem>>, vector<1x32xf32>
      %68 = vector.broadcast %67 : vector<1x32xf32> to vector<16x32xf32>
      %69 = arith.addf %66, %68 : vector<16x32xf32>
      %c0_34 = arith.constant 0 : index
      %c0_35 = arith.constant 0 : index
      %70 = vector.load %arg10[%c0_34, %c0_35] : memref<16x32xf32, #tpu.memory_space<vmem>>, vector<16x32xf32>
      tpu.vector_store %arg10[%c0_34, %c0_35], %69 {strides = array<i32>} : memref<16x32xf32, #tpu.memory_space<vmem>>, vector<16x32xf32>,
    } else {
    }
    return
  }
  func.func @transform_0(%arg0: i32, %arg1: i32) -> (i32, i32) {
    %c0_i32 = arith.constant 0 : i32
    return %arg0, %arg1 : i32, i32
  }
  func.func @transform_1(%arg0: i32, %arg1: i32) -> (i32, i32) {
    %c0_i32 = arith.constant 0 : i32
    %c0_i32_0 = arith.constant 0 : i32
    return %arg1, %c0_i32 : i32, i32
  }
  func.func @transform_2(%arg0: i32, %arg1: i32) -> (i32, i32) {
    %c0_i32 = arith.constant 0 : i32
    %c0_i32_0 = arith.constant 0 : i32
    %c0_i32_1 = arith.constant 0 : i32
    return %c0_i32, %c0_i32_0 : i32, i32
  }
  func.func @transform_3(%arg0: i32, %arg1: i32) -> (i32, i32) {
    %c0_i32 = arith.constant 0 : i32
    %c0_i32_0 = arith.constant 0 : i32
    return %arg0, %c0_i32 : i32, i32
  }
  func.func @transform_4(%arg0: i32, %arg1: i32) -> (i32, i32) {
    %c0_i32 = arith.constant 0 : i32
    %c0_i32_0 = arith.constant 0 : i32
    %c0_i32_1 = arith.constant 0 : i32
    return %c0_i32, %c0_i32_0 : i32, i32
  }
  func.func @transform_5(%arg0: i32, %arg1: i32) -> (i32, i32) {
    %c0_i32 = arith.constant 0 : i32
    %c0_i32_0 = arith.constant 0 : i32
    %c0_i32_1 = arith.constant 0 : i32
    return %c0_i32, %c0_i32_0 : i32, i32
  }
  func.func @transform_6(%arg0: i32, %arg1: i32) -> (i32, i32) {
    %c0_i32 = arith.constant 0 : i32
    %c0_i32_0 = arith.constant 0 : i32
    %c0_i32_1 = arith.constant 0 : i32
    return %c0_i32, %c0_i32_0 : i32, i32
  }
  func.func @transform_7(%arg0: i32, %arg1: i32) -> (i32, i32) {
    %c0_i32 = arith.constant 0 : i32
    %c0_i32_0 = arith.constant 0 : i32
    %c0_i32_1 = arith.constant 0 : i32
    return %c0_i32, %c0_i32_0 : i32, i32
  }
  func.func @transform_8(%arg0: i32, %arg1: i32) -> (i32, i32) {
    %c0_i32 = arith.constant 0 : i32
    %c0_i32_0 = arith.constant 0 : i32
    return %arg0, %c0_i32 : i32, i32
  }
}

</mosaic_0001>

<llo_original>
// kernel: _encoder_forward.12
$region0: #{_encoder_forward.12}
  #allocation0 [shape = 'u32[]', space=smem, size = 0x4, offset = 0x4, fixed_abs, tag = 'smem constant byte address 0x4 - core index']
  #allocation1 [shape = 'u32[144,128]{1,0:T(1,128)}', space=vmem, size = 0x12000, scoped, tag = 'internal scratch']
  #allocation2 [shape = 'f32[16,32]{1,0:T(8,128)}', space=vmem, size = 0x2000, scoped, tag = 'scratch operand']
  %s0 = inlined_call_operand.vmem [shape: bf16[16,32], index: 0, kind: input, shape index: {}]
  %s1 = inlined_call_operand.vmem [shape: bf16[32,32], index: 1, kind: input, shape index: {}]
  %s2 = inlined_call_operand.vmem [shape: f32[1,32], index: 2, kind: input, shape index: {}]
  %s3 = inlined_call_operand.vmem [shape: f32[16,32], index: 3, kind: input, shape index: {}]
  %s4 = inlined_call_operand.vmem [shape: f32[1,32], index: 4, kind: input, shape index: {}]
  %s5 = inlined_call_operand.vmem [shape: f32[1,32], index: 5, kind: input, shape index: {}]
  %s6 = inlined_call_operand.vmem [shape: f32[16,32], index: 6, kind: output, shape index: {}]
  %s7 = sld [smem:[#allocation0]]
  $region42: #{_encoder_forward.12} parent=0
    _
  %s9 = ssub.s32 1, %s7
  %s10 = scalar_select 0, %s9, %s7
  // Predicated region
  $region2: #{_encoder_forward.12} parent=0 // pred_check
    _
  $region3: #{_encoder_forward.12} parent=0 // pred_check_branch
    %12 = sbr.rel (0) target = $region5
  $region4: #{_encoder_forward.12} parent=0 // pred_region
    _
  $region5: #{_encoder_forward.12} parent=0 // pred_fallthru
    _
  // Predicated region
  $region6: #{_encoder_forward.12} parent=0 // pred_check
    _
  $region7: #{_encoder_forward.12} parent=0 // pred_check_branch
    %14 = sbr.rel (0) target = $region9
  $region8: #{_encoder_forward.12} parent=0 // pred_region
    _
  $region9: #{_encoder_forward.12} parent=0 // pred_fallthru
    _
  // Predicated region
  $region10: #{_encoder_forward.12} parent=0 // pred_check
    _
  $region11: #{_encoder_forward.12} parent=0 // pred_check_branch
    %16 = sbr.rel (0) target = $region13
  $region12: #{_encoder_forward.12} parent=0 // pred_region
    _
  $region13: #{_encoder_forward.12} parent=0 // pred_fallthru
    _
  // Predicated region
  $region14: #{_encoder_forward.12} parent=0 // pred_check
    _
  $region15: #{_encoder_forward.12} parent=0 // pred_check_branch
    %18 = sbr.rel (0) target = $region17
  $region16: #{_encoder_forward.12} parent=0 // pred_region
    _
  $region17: #{_encoder_forward.12} parent=0 // pred_fallthru
    _
  // Predicated region
  $region18: #{_encoder_forward.12} parent=0 // pred_check
    _
  $region19: #{_encoder_forward.12} parent=0 // pred_check_branch
    %20 = sbr.rel (0) target = $region21
  $region20: #{_encoder_forward.12} parent=0 // pred_region
    _
  $region21: #{_encoder_forward.12} parent=0 // pred_fallthru
    _
  // Predicated region
  $region22: #{_encoder_forward.12} parent=0 // pred_check
    _
  $region23: #{_encoder_forward.12} parent=0 // pred_check_branch
    %22 = sbr.rel (0) target = $region25
  $region24: #{_encoder_forward.12} parent=0 // pred_region
    _
  $region25: #{_encoder_forward.12} parent=0 // pred_fallthru
    _
  %p24 = scmp.eq.s32.totalorder 0, 0
  // Predicated region
  $region26: #{_encoder_forward.12} parent=0 // pred_check
    %p25 = pneg %p24
  $region27: #{_encoder_forward.12} parent=0 // pred_check_branch
    %27 = sbr.rel (%p25) target = $region29
  $region28: #{_encoder_forward.12} parent=0 // pred_region
    %vm28 = vcmask 261120
    %29 = vst.msk [vmem:[#allocation2] sm:$0xff] %vm28, 0.0
    %30 = vst.msk [vmem:[#allocation2 + $0x8] sm:$0xff] %vm28, 0.0
  $region29: #{_encoder_forward.12} parent=0 // pred_fallthru
    _
  %v31 = vld [vmem:[%s0] sm:$0xf]
  %v32 = vld [vmem:[%s0 + $0x4] sm:$0xf]
  %v33 = vld [vmem:[%s1] sm:$0xf]
  %v34 = vld [vmem:[%s1 + $0x4] sm:$0xf]
  %v35 = vld [vmem:[%s1 + $0x8] sm:$0xf]
  %v36 = vld [vmem:[%s1 + $0xc] sm:$0xf]
  %v37 = vld [vmem:[#allocation2] sm:$0xff]
  %v38 = vld [vmem:[#allocation2 + $0x8] sm:$0xff]
  %v41 = vunpack.c.l.b16 %v31
  %v42 = vunpack.c.l.b16 %v32
  %v43 = vpack.c.b16 %v42, %v41
  %v48 = vunpack.c.l.b16 %v33
  %v49 = vunpack.c.l.b16 %v34
  %v50 = vunpack.c.l.b16 %v35
  %v51 = vunpack.c.l.b16 %v36
  %v52 = vpack.c.b16 %v49, %v48
  %v53 = vpack.c.b16 %v51, %v50
  %vm56 = vcmask 261120
  %v58 = vsel %vm56, %v43, 0
  %60 = vmatprep.subr.bf16.mxu0 0
  %61 = vmatpush1.bf16.msra.mxu0 0
  %62 = vmatprep.subr.bf16.mxu0 0
  %63 = vmatpush1.bf16.msra.mxu0 0
  %64 = vmatprep.subr.bf16.mxu0 0
  %65 = vmatpush1.bf16.msra.mxu0 0
  %66 = vmatprep.subr.bf16.mxu0 0
  %67 = vmatpush1.bf16.msra.mxu0 0
  %68 = vmatprep.subr.bf16.mxu0 0
  %69 = vmatpush1.bf16.msra.mxu0 0
  %70 = vmatprep.subr.bf16.mxu0 0
  %71 = vmatpush1.bf16.msra.mxu0 0
  %72 = vmatprep.subr.bf16.mxu0 0
  %73 = vmatpush1.bf16.msra.mxu0 %v53
  %74 = vmatprep.subr.bf16.mxu0 0
  %75 = vmatpush1.bf16.msra.mxu0 %v52
  %76 = vmatprep.subr.bf16.mxu0 0
  %77 = vmatpush2.bf16.msra.mxu0 0
  %78 = vmatprep.subr.bf16.mxu0 0
  %79 = vmatpush2.bf16.msra.mxu0 0
  %80 = vmatprep.subr.bf16.mxu0 0
  %81 = vmatpush2.bf16.msra.mxu0 0
  %82 = vmatprep.subr.bf16.mxu0 0
  %83 = vmatpush2.bf16.msra.mxu0 0
  %84 = vmatprep.subr.bf16.mxu0 0
  %85 = vmatpush2.bf16.msra.mxu0 0
  %86 = vmatprep.subr.bf16.mxu0 0
  %87 = vmatpush2.bf16.msra.mxu0 0
  %88 = vmatprep.subr.bf16.mxu0 0
  %89 = vmatpush2.bf16.msra.mxu0 0
  %90 = vmatprep.subr.bf16.mxu0 0
  %91 = vmatpush2.bf16.msra.mxu0 0
  %92 = vmatprep.mubr.bf16.mxu0 0
  %93 = vmatmul.mubr.bf16.gmra.mxu0 %v58
  %v94 = vpop.f32.mrf.mxu0
  %v95 = vadd.f32 0.0, %v94
  %v96 = vpop.f32.mrf.mxu0
  %v97 = vpop.f32.mrf.mxu0
  %v98 = vadd.f32 0.0, %v97
  %v99 = vpop.f32.mrf.mxu0
  %100 = vdwg.mxu0
  %v101 = vadd.f32 %v37, %v95
  %v102 = vadd.f32 %v38, %v98
  %103 = vst.msk [vmem:[#allocation2] sm:$0xff] %vm56, %v101
  %104 = vst.msk [vmem:[#allocation2 + $0x8] sm:$0xff] %vm56, %v102
  // Predicated region
  $region30: #{_encoder_forward.12} parent=0 // pred_check
    %p105 = pneg %p24
  $region31: #{_encoder_forward.12} parent=0 // pred_check_branch
    %107 = sbr.rel (%p105) target = $region33
  $region32: #{_encoder_forward.12} parent=0 // pred_region
    %v108 = vld [vmem:[#allocation2] sm:$0xff]
    %v109 = vld [vmem:[#allocation2 + $0x8] sm:$0xff]
    %v110 = vld [vmem:[%s2] sm:$0x1]
    %v112 = vlaneseq
    %v113 = vshrl.u32 %v112, 7
    %v114 = vsub.s32 0, %v113
    %v115 = vrot.slane %v110, %v114
    %v117 = vadd.f32 %v108, %v115
    %v118 = vadd.f32 %v109, %v115
    %v119 = vld [vmem:[%s3] sm:$0xff]
    %v120 = vld [vmem:[%s3 + $0x8] sm:$0xff]
    %v121 = vadd.f32 %v117, %v119
    %v122 = vadd.f32 %v118, %v120
    %v123 = vsel %vm56, %v121, 0.0
    %124 = vadd.xlane.f32.xlu0 %v123
    %v125 = vpop.xlane.xlu0 %124
    %v126 = vsel %vm56, %v122, 0.0
    %127 = vadd.xlane.f32.xlu0 %v126
    %v128 = vpop.xlane.xlu0 %127
    %v129 = vrcp.pop 32.0
    %v130 = vmul.f32 %v125, %v129
    %v131 = vmul.f32 %v128, %v129
    %v132 = vsub.f32 %v121, %v130
    %v133 = vsub.f32 %v122, %v131
    %v134 = vmul.f32 %v132, %v132
    %v135 = vmul.f32 %v133, %v133
    %v136 = vsel %vm56, %v134, 0.0
    %137 = vadd.xlane.f32.xlu0 %v136
    %v138 = vpop.xlane.xlu0 %137
    %v139 = vsel %vm56, %v135, 0.0
    %140 = vadd.xlane.f32.xlu0 %v139
    %v141 = vpop.xlane.xlu0 %140
    %v142 = vmul.f32 %v138, %v129
    %v143 = vmul.f32 %v141, %v129
    %v144 = vadd.f32 %v142, 1e-05
    %v145 = vadd.f32 %v143, 1e-05
    %v146 = vrsqrt.pop %v144
    %v147 = vrsqrt.pop %v145
    %v148 = vmul.f32 %v132, %v146
    %v149 = vmul.f32 %v133, %v147
    %v150 = vld [vmem:[%s4] sm:$0x1]
    %v152 = vlaneseq
    %v153 = vshrl.u32 %v152, 7
    %v154 = vsub.s32 0, %v153
    %v155 = vrot.slane %v150, %v154
    %v157 = vmul.f32 %v148, %v155
    %v158 = vmul.f32 %v149, %v155
    %v159 = vld [vmem:[%s5] sm:$0x1]
    %v161 = vlaneseq
    %v162 = vshrl.u32 %v161, 7
    %v163 = vsub.s32 0, %v162
    %v164 = vrot.slane %v159, %v163
    %v166 = vadd.f32 %v157, %v164
    %v167 = vadd.f32 %v158, %v164
    %168 = vst.msk [vmem:[%s6] sm:$0xff] %vm56, %v166
    %169 = vst.msk [vmem:[%s6 + $0x8] sm:$0xff] %vm56, %v167
  $region33: #{_encoder_forward.12} parent=0 // pred_fallthru
    _
  // Predicated region
  $region34: #{_encoder_forward.12} parent=0 // pred_check
    _
  $region35: #{_encoder_forward.12} parent=0 // pred_check_branch
    %171 = sbr.rel (0) target = $region37
  $region36: #{_encoder_forward.12} parent=0 // pred_region
    _
  $region37: #{_encoder_forward.12} parent=0 // pred_fallthru
    _
  // Predicated region
  $region38: #{_encoder_forward.12} parent=0 // pred_check
    _
  $region39: #{_encoder_forward.12} parent=0 // pred_check_branch
    %173 = sbr.rel (0) target = $region41
  $region40: #{_encoder_forward.12} parent=0 // pred_region
    _
  $region41: #{_encoder_forward.12} parent=0 // pred_fallthru
    _

// kernel: _encoder_forward.10
$region0: #{_encoder_forward.10}
  #allocation0 [shape = 'u32[]', space=smem, size = 0x4, offset = 0x4, fixed_abs, tag = 'smem constant byte address 0x4 - core index']
  #allocation1 [shape = 'u32[144,128]{1,0:T(1,128)}', space=vmem, size = 0x12000, scoped, tag = 'internal scratch']
  #allocation2 [shape = 'f32[16,96]{1,0:T(8,128)}', space=vmem, size = 0x2000, scoped, tag = 'scratch operand']
  %s0 = inlined_call_operand.vmem [shape: f32[16,32], index: 0, kind: input, shape index: {}]
  %s1 = inlined_call_operand.vmem [shape: bf16[32,96], index: 1, kind: input, shape index: {}]
  %s2 = inlined_call_operand.vmem [shape: f32[1,96], index: 2, kind: input, shape index: {}]
  %s3 = inlined_call_operand.vmem [shape: bf16[16,96], index: 3, kind: output, shape index: {}]
  %s4 = sld [smem:[#allocation0]]
  $region30: #{_encoder_forward.10} parent=0
    _
  %s6 = ssub.s32 1, %s4
  %s7 = scalar_select 0, %s6, %s4
  // Predicated region
  $region2: #{_encoder_forward.10} parent=0 // pred_check
    _
  $region3: #{_encoder_forward.10} parent=0 // pred_check_branch
    %9 = sbr.rel (0) target = $region5
  $region4: #{_encoder_forward.10} parent=0 // pred_region
    _
  $region5: #{_encoder_forward.10} parent=0 // pred_fallthru
    _
  // Predicated region
  $region6: #{_encoder_forward.10} parent=0 // pred_check
    _
  $region7: #{_encoder_forward.10} parent=0 // pred_check_branch
    %11 = sbr.rel (0) target = $region9
  $region8: #{_encoder_forward.10} parent=0 // pred_region
    _
  $region9: #{_encoder_forward.10} parent=0 // pred_fallthru
    _
  // Predicated region
  $region10: #{_encoder_forward.10} parent=0 // pred_check
    _
  $region11: #{_encoder_forward.10} parent=0 // pred_check_branch
    %13 = sbr.rel (0) target = $region13
  $region12: #{_encoder_forward.10} parent=0 // pred_region
    _
  $region13: #{_encoder_forward.10} parent=0 // pred_fallthru
    _
  %p15 = scmp.eq.s32.totalorder 0, 0
  // Predicated region
  $region14: #{_encoder_forward.10} parent=0 // pred_check
    %p16 = pneg %p15
  $region15: #{_encoder_forward.10} parent=0 // pred_check_branch
    %18 = sbr.rel (%p16) target = $region17
  $region16: #{_encoder_forward.10} parent=0 // pred_region
    %vm19 = vcmask 785408
    %20 = vst.msk [vmem:[#allocation2] sm:$0xff] %vm19, 0.0
    %21 = vst.msk [vmem:[#allocation2 + $0x8] sm:$0xff] %vm19, 0.0
  $region17: #{_encoder_forward.10} parent=0 // pred_fallthru
    _
  %v22 = vld [vmem:[%s0] sm:$0xff]
  %v23 = vld [vmem:[%s0 + $0x8] sm:$0xff]
  %v24 = vpack.c.bf16 %v23, %v22
  %v25 = vld [vmem:[%s1] sm:$0xf]
  %v26 = vld [vmem:[%s1 + $0x4] sm:$0xf]
  %v27 = vld [vmem:[%s1 + $0x8] sm:$0xf]
  %v28 = vld [vmem:[%s1 + $0xc] sm:$0xf]
  %v29 = vld [vmem:[#allocation2] sm:$0xff]
  %v30 = vld [vmem:[#allocation2 + $0x8] sm:$0xff]
  %v35 = vunpack.c.l.b16 %v25
  %v36 = vunpack.c.l.b16 %v26
  %v37 = vunpack.c.l.b16 %v27
  %v38 = vunpack.c.l.b16 %v28
  %v39 = vpack.c.b16 %v36, %v35
  %v40 = vpack.c.b16 %v38, %v37
  %vm43 = vcmask 261120
  %v45 = vsel %vm43, %v24, 0
  %47 = vmatprep.subr.bf16.mxu0 0
  %48 = vmatpush1.bf16.msra.mxu0 0
  %49 = vmatprep.subr.bf16.mxu0 0
  %50 = vmatpush1.bf16.msra.mxu0 0
  %51 = vmatprep.subr.bf16.mxu0 0
  %52 = vmatpush1.bf16.msra.mxu0 0
  %53 = vmatprep.subr.bf16.mxu0 0
  %54 = vmatpush1.bf16.msra.mxu0 0
  %55 = vmatprep.subr.bf16.mxu0 0
  %56 = vmatpush1.bf16.msra.mxu0 0
  %57 = vmatprep.subr.bf16.mxu0 0
  %58 = vmatpush1.bf16.msra.mxu0 0
  %59 = vmatprep.subr.bf16.mxu0 0
  %60 = vmatpush1.bf16.msra.mxu0 %v40
  %61 = vmatprep.subr.bf16.mxu0 0
  %62 = vmatpush1.bf16.msra.mxu0 %v39
  %63 = vmatprep.subr.bf16.mxu0 0
  %64 = vmatpush2.bf16.msra.mxu0 0
  %65 = vmatprep.subr.bf16.mxu0 0
  %66 = vmatpush2.bf16.msra.mxu0 0
  %67 = vmatprep.subr.bf16.mxu0 0
  %68 = vmatpush2.bf16.msra.mxu0 0
  %69 = vmatprep.subr.bf16.mxu0 0
  %70 = vmatpush2.bf16.msra.mxu0 0
  %71 = vmatprep.subr.bf16.mxu0 0
  %72 = vmatpush2.bf16.msra.mxu0 0
  %73 = vmatprep.subr.bf16.mxu0 0
  %74 = vmatpush2.bf16.msra.mxu0 0
  %75 = vmatprep.subr.bf16.mxu0 0
  %76 = vmatpush2.bf16.msra.mxu0 0
  %77 = vmatprep.subr.bf16.mxu0 0
  %78 = vmatpush2.bf16.msra.mxu0 0
  %79 = vmatprep.mubr.bf16.mxu0 0
  %80 = vmatmul.mubr.bf16.gmra.mxu0 %v45
  %v81 = vpop.f32.mrf.mxu0
  %v82 = vadd.f32 0.0, %v81
  %v83 = vpop.f32.mrf.mxu0
  %v84 = vpop.f32.mrf.mxu0
  %v85 = vadd.f32 0.0, %v84
  %v86 = vpop.f32.mrf.mxu0
  %87 = vdwg.mxu0
  %v88 = vadd.f32 %v29, %v82
  %v89 = vadd.f32 %v30, %v85
  %vm90 = vcmask 785408
  %91 = vst.msk [vmem:[#allocation2] sm:$0xff] %vm90, %v88
  %92 = vst.msk [vmem:[#allocation2 + $0x8] sm:$0xff] %vm90, %v89
  // Predicated region
  $region18: #{_encoder_forward.10} parent=0 // pred_check
    %p93 = pneg %p15
  $region19: #{_encoder_forward.10} parent=0 // pred_check_branch
    %95 = sbr.rel (%p93) target = $region21
  $region20: #{_encoder_forward.10} parent=0 // pred_region
    %v96 = vld [vmem:[#allocation2] sm:$0xff]
    %v97 = vld [vmem:[#allocation2 + $0x8] sm:$0xff]
    %v98 = vld [vmem:[%s2] sm:$0x1]
    %v100 = vlaneseq
    %v101 = vshrl.u32 %v100, 7
    %v102 = vsub.s32 0, %v101
    %v103 = vrot.slane %v98, %v102
    %v105 = vadd.f32 %v96, %v103
    %v106 = vadd.f32 %v97, %v103
    %v107 = vpack.c.bf16 %v106, %v105
    %v109 = vunpack.c.l.b16 %v107
    %v110 = vunpack.c.h.b16 %v107
    %v111 = vpack.c.b16 %v109, %v109
    %v112 = vpack.c.b16 %v110, %v110
    %vm115 = vcmask 781312
    %116 = vst.msk [vmem:[%s3] sm:$0xf] %vm115, %v111
    %117 = vst.msk [vmem:[%s3 + $0x4] sm:$0xf] %vm115, %v112
  $region21: #{_encoder_forward.10} parent=0 // pred_fallthru
    _
  // Predicated region
  $region22: #{_encoder_forward.10} parent=0 // pred_check
    _
  $region23: #{_encoder_forward.10} parent=0 // pred_check_branch
    %119 = sbr.rel (0) target = $region25
  $region24: #{_encoder_forward.10} parent=0 // pred_region
    _
  $region25: #{_encoder_forward.10} parent=0 // pred_fallthru
    _
  // Predicated region
  $region26: #{_encoder_forward.10} parent=0 // pred_check
    _
  $region27: #{_encoder_forward.10} parent=0 // pred_check_branch
    %121 = sbr.rel (0) target = $region29
  $region28: #{_encoder_forward.10} parent=0 // pred_region
    _
  $region29: #{_encoder_forward.10} parent=0 // pred_fallthru
    _

// kernel: _encoder_forward.13
$region0: #{_encoder_forward.13}
  #allocation0 [shape = 'u32[]', space=smem, size = 0x4, offset = 0x4, fixed_abs, tag = 'smem constant byte address 0x4 - core index']
  #allocation1 [shape = 'u32[144,128]{1,0:T(1,128)}', space=vmem, size = 0x12000, scoped, tag = 'internal scratch']
  #allocation2 [shape = 'f32[16,64]{1,0:T(8,128)}', space=vmem, size = 0x2000, scoped, tag = 'scratch operand']
  %s0 = inlined_call_operand.vmem [shape: f32[16,32], index: 0, kind: input, shape index: {}]
  %s1 = inlined_call_operand.vmem [shape: bf16[32,64], index: 1, kind: input, shape index: {}]
  %s2 = inlined_call_operand.vmem [shape: f32[1,64], index: 2, kind: input, shape index: {}]
  %s3 = inlined_call_operand.vmem [shape: bf16[16,64], index: 3, kind: output, shape index: {}]
  %s4 = sld [smem:[#allocation0]]
  $region30: #{_encoder_forward.13} parent=0
    _
  %s6 = ssub.s32 1, %s4
  %s7 = scalar_select 0, %s6, %s4
  // Predicated region
  $region2: #{_encoder_forward.13} parent=0 // pred_check
    _
  $region3: #{_encoder_forward.13} parent=0 // pred_check_branch
    %9 = sbr.rel (0) target = $region5
  $region4: #{_encoder_forward.13} parent=0 // pred_region
    _
  $region5: #{_encoder_forward.13} parent=0 // pred_fallthru
    _
  // Predicated region
  $region6: #{_encoder_forward.13} parent=0 // pred_check
    _
  $region7: #{_encoder_forward.13} parent=0 // pred_check_branch
    %11 = sbr.rel (0) target = $region9
  $region8: #{_encoder_forward.13} parent=0 // pred_region
    _
  $region9: #{_encoder_forward.13} parent=0 // pred_fallthru
    _
  // Predicated region
  $region10: #{_encoder_forward.13} parent=0 // pred_check
    _
  $region11: #{_encoder_forward.13} parent=0 // pred_check_branch
    %13 = sbr.rel (0) target = $region13
  $region12: #{_encoder_forward.13} parent=0 // pred_region
    _
  $region13: #{_encoder_forward.13} parent=0 // pred_fallthru
    _
  %p15 = scmp.eq.s32.totalorder 0, 0
  // Predicated region
  $region14: #{_encoder_forward.13} parent=0 // pred_check
    %p16 = pneg %p15
  $region15: #{_encoder_forward.13} parent=0 // pred_check_branch
    %18 = sbr.rel (%p16) target = $region17
  $region16: #{_encoder_forward.13} parent=0 // pred_region
    %vm19 = vcmask 523264
    %20 = vst.msk [vmem:[#allocation2] sm:$0xff] %vm19, 0.0
    %21 = vst.msk [vmem:[#allocation2 + $0x8] sm:$0xff] %vm19, 0.0
  $region17: #{_encoder_forward.13} parent=0 // pred_fallthru
    _
  %v22 = vld [vmem:[%s0] sm:$0xff]
  %v23 = vld [vmem:[%s0 + $0x8] sm:$0xff]
  %v24 = vpack.c.bf16 %v23, %v22
  %v25 = vld [vmem:[%s1] sm:$0xf]
  %v26 = vld [vmem:[%s1 + $0x4] sm:$0xf]
  %v27 = vld [vmem:[%s1 + $0x8] sm:$0xf]
  %v28 = vld [vmem:[%s1 + $0xc] sm:$0xf]
  %v29 = vld [vmem:[#allocation2] sm:$0xff]
  %v30 = vld [vmem:[#allocation2 + $0x8] sm:$0xff]
  %v35 = vunpack.c.l.b16 %v25
  %v36 = vunpack.c.l.b16 %v26
  %v37 = vunpack.c.l.b16 %v27
  %v38 = vunpack.c.l.b16 %v28
  %v39 = vpack.c.b16 %v36, %v35
  %v40 = vpack.c.b16 %v38, %v37
  %vm43 = vcmask 261120
  %v45 = vsel %vm43, %v24, 0
  %47 = vmatprep.subr.bf16.mxu0 0
  %48 = vmatpush1.bf16.msra.mxu0 0
  %49 = vmatprep.subr.bf16.mxu0 0
  %50 = vmatpush1.bf16.msra.mxu0 0
  %51 = vmatprep.subr.bf16.mxu0 0
  %52 = vmatpush1.bf16.msra.mxu0 0
  %53 = vmatprep.subr.bf16.mxu0 0
  %54 = vmatpush1.bf16.msra.mxu0 0
  %55 = vmatprep.subr.bf16.mxu0 0
  %56 = vmatpush1.bf16.msra.mxu0 0
  %57 = vmatprep.subr.bf16.mxu0 0
  %58 = vmatpush1.bf16.msra.mxu0 0
  %59 = vmatprep.subr.bf16.mxu0 0
  %60 = vmatpush1.bf16.msra.mxu0 %v40
  %61 = vmatprep.subr.bf16.mxu0 0
  %62 = vmatpush1.bf16.msra.mxu0 %v39
  %63 = vmatprep.subr.bf16.mxu0 0
  %64 = vmatpush2.bf16.msra.mxu0 0
  %65 = vmatprep.subr.bf16.mxu0 0
  %66 = vmatpush2.bf16.msra.mxu0 0
  %67 = vmatprep.subr.bf16.mxu0 0
  %68 = vmatpush2.bf16.msra.mxu0 0
  %69 = vmatprep.subr.bf16.mxu0 0
  %70 = vmatpush2.bf16.msra.mxu0 0
  %71 = vmatprep.subr.bf16.mxu0 0
  %72 = vmatpush2.bf16.msra.mxu0 0
  %73 = vmatprep.subr.bf16.mxu0 0
  %74 = vmatpush2.bf16.msra.mxu0 0
  %75 = vmatprep.subr.bf16.mxu0 0
  %76 = vmatpush2.bf16.msra.mxu0 0
  %77 = vmatprep.subr.bf16.mxu0 0
  %78 = vmatpush2.bf16.msra.mxu0 0
  %79 = vmatprep.mubr.bf16.mxu0 0
  %80 = vmatmul.mubr.bf16.gmra.mxu0 %v45
  %v81 = vpop.f32.mrf.mxu0
  %v82 = vadd.f32 0.0, %v81
  %v83 = vpop.f32.mrf.mxu0
  %v84 = vpop.f32.mrf.mxu0
  %v85 = vadd.f32 0.0, %v84
  %v86 = vpop.f32.mrf.mxu0
  %87 = vdwg.mxu0
  %v88 = vadd.f32 %v29, %v82
  %v89 = vadd.f32 %v30, %v85
  %vm90 = vcmask 523264
  %91 = vst.msk [vmem:[#allocation2] sm:$0xff] %vm90, %v88
  %92 = vst.msk [vmem:[#allocation2 + $0x8] sm:$0xff] %vm90, %v89
  // Predicated region
  $region18: #{_encoder_forward.13} parent=0 // pred_check
    %p93 = pneg %p15
  $region19: #{_encoder_forward.13} parent=0 // pred_check_branch
    %95 = sbr.rel (%p93) target = $region21
  $region20: #{_encoder_forward.13} parent=0 // pred_region
    %v96 = vld [vmem:[#allocation2] sm:$0xff]
    %v97 = vld [vmem:[#allocation2 + $0x8] sm:$0xff]
    %v98 = vld [vmem:[%s2] sm:$0x1]
    %v100 = vlaneseq
    %v101 = vshrl.u32 %v100, 7
    %v102 = vsub.s32 0, %v101
    %v103 = vrot.slane %v98, %v102
    %v105 = vadd.f32 %v96, %v103
    %v106 = vadd.f32 %v97, %v103
    %v107 = vmax.f32 %v105, 0.0
    %v108 = vmax.f32 %v106, 0.0
    %v109 = vpack.c.bf16 %v108, %v107
    %v111 = vunpack.c.l.b16 %v109
    %v112 = vunpack.c.h.b16 %v109
    %v113 = vpack.c.b16 %v111, %v111
    %v114 = vpack.c.b16 %v112, %v112
    %vm117 = vcmask 519168
    %118 = vst.msk [vmem:[%s3] sm:$0xf] %vm117, %v113
    %119 = vst.msk [vmem:[%s3 + $0x4] sm:$0xf] %vm117, %v114
  $region21: #{_encoder_forward.13} parent=0 // pred_fallthru
    _
  // Predicated region
  $region22: #{_encoder_forward.13} parent=0 // pred_check
    _
  $region23: #{_encoder_forward.13} parent=0 // pred_check_branch
    %121 = sbr.rel (0) target = $region25
  $region24: #{_encoder_forward.13} parent=0 // pred_region
    _
  $region25: #{_encoder_forward.13} parent=0 // pred_fallthru
    _
  // Predicated region
  $region26: #{_encoder_forward.13} parent=0 // pred_check
    _
  $region27: #{_encoder_forward.13} parent=0 // pred_check_branch
    %123 = sbr.rel (0) target = $region29
  $region28: #{_encoder_forward.13} parent=0 // pred_region
    _
  $region29: #{_encoder_forward.13} parent=0 // pred_fallthru
    _

// kernel: _encoder_forward.11
$region0: #{_encoder_forward.11}
  #allocation0 [shape = 'u32[]', space=smem, size = 0x4, offset = 0x4, fixed_abs, tag = 'smem constant byte address 0x4 - core index']
  #allocation1 [shape = 'u32[144,128]{1,0:T(1,128)}', space=vmem, size = 0x12000, scoped, tag = 'internal scratch']
  #allocation2 [shape = 'f32[4,8,1]{2,1,0:T(8,128)}', space=vmem, size = 0x4000, scoped, tag = 'scratch operand']
  #allocation3 [shape = 'f32[4,8,1]{2,1,0:T(8,128)}', space=vmem, size = 0x4000, scoped, tag = 'scratch operand']
  #allocation4 [shape = 'f32[4,8,8]{2,1,0:T(8,128)}', space=vmem, size = 0x4000, scoped, tag = 'scratch operand']
  %s0 = inlined_call_operand.vmem [shape: bf16[2,8,96], index: 0, kind: input, shape index: {}, may-alias: {0,1}]
  %s1 = inlined_call_operand.vmem [shape: bf16[2,8,96], index: 1, kind: input, shape index: {}, may-alias: {0,1}]
  %s2 = inlined_call_operand.vmem [shape: f32[2,1,8], index: 2, kind: input, shape index: {}]
  %s3 = inlined_call_operand.vmem [shape: bf16[2,8,32], index: 3, kind: output, shape index: {}]
  %s4 = sld [smem:[#allocation0]]
  $region53: #{_encoder_forward.11} parent=0
    _
  %s6 = ssub.s32 1, %s4
  %s7 = scalar_select 0, %s6, %s4
  loop: start=0, step=1, limit=4
  $region2: #{_encoder_forward.11} parent=0 // loop_pre_header
    _
  $region3: #{_encoder_forward.11} parent=0 // loop_header
    %s9 = sphi 0, %s13
    %p10 = scmp.ge.s32.totalorder %s9, 4
    %s16 = sphi 0, %s35
    %s17 = sphi 0, %s31
    %s18 = sphi 0, %s27
    %s19 = sphi 0, %s16
    %s20 = sphi 0, %s17
    %s21 = sphi 0, %s18
    %s22 = sphi 0, %s19
    %s23 = sphi 0, %s20
    %s24 = sphi 0, %s21
    %s40 = sphi 0, %s42
    %s43 = sphi 0, %s40
    %s44 = sphi 0, %s43
    %s60 = sphi 0, %s44
    %s68 = sphi 0, %s70
    %s71 = sphi 0, %s68
    %s72 = sphi 0, %s71
    %s88 = sphi 0, %s72
    %s96 = sphi 0, %s98
    %s99 = sphi 0, %s96
    %s100 = sphi 0, %s99
    %s116 = sphi 0, %s100
    %s124 = sphi 0, %s126
    %s127 = sphi 0, %s124
    %s128 = sphi 0, %s127
    %s144 = sphi 0, %s128
  $region4: #{_encoder_forward.11} parent=0 // loop_header_branch
    %12 = sbr.rel (%p10) target = $region8
  $region5: #{_encoder_forward.11} parent=0 // loop_body
    %s14 = ssub.s32 %s9, 1
    %s15 = ssub.s32 %s9, 2
    %s25 = sadd.s32 1, %s18
    %p26 = scmp.ge.s32.totalorder %s25, 1
    %s27 = scalar_select %p26, 0, %s25
    %s28 = sadd.s32 1, %s17
    %s29 = scalar_select %p26, %s28, %s17
    %p30 = scmp.ge.s32.totalorder %s29, 1
    %s31 = scalar_select %p30, 0, %s29
    %s32 = sadd.s32 1, %s16
    %s33 = scalar_select %p30, %s32, %s16
    %p34 = scmp.ge.s32.totalorder %s33, 2
    %s35 = scalar_select %p34, 0, %s33
    %s36 = ssub.s32 %s16, %s35
    %s37 = ssub.s32 %s17, %s31
    %s38 = sor.u32 %s36, %s37
    %p39 = scmp.eq.s32.totalorder %s38, 0
    %s41 = sadd.s32 %s40, 1
    %s42 = scalar_select %p39, %s40, %s41
    %p45 = pneg %p39
    %p46 = scmp.eq.s32.totalorder %s9, 1
    %p47 = por %p45, %p46
    %p48 = scmp.ne.s32.totalorder %s40, %s43
    %p49 = scmp.eq.s32.totalorder %s9, 0
    %p50 = por %p48, %p49
    %p51 = scmp.ne.s32.totalorder %s40, %s43
    %p52 = scmp.eq.s32.totalorder %s14, 1
    %p53 = por %p51, %p52
    %p54 = scmp.ne.s32.totalorder %s43, %s44
    %p55 = scmp.eq.s32.totalorder %s14, 0
    %p56 = por %p54, %p55
    %p57 = scmp.ne.s32.totalorder %s43, %s44
    %p58 = scmp.eq.s32.totalorder %s15, 1
    %p59 = por %p57, %p58
    %p61 = scmp.ne.s32.totalorder %s44, %s60
    %p62 = scmp.eq.s32.totalorder %s15, 0
    %p63 = por %p61, %p62
    %s64 = ssub.s32 %s16, %s35
    %s65 = ssub.s32 %s18, %s27
    %s66 = sor.u32 %s64, %s65
    %p67 = scmp.eq.s32.totalorder %s66, 0
    %s69 = sadd.s32 %s68, 1
    %s70 = scalar_select %p67, %s68, %s69
    %p73 = pneg %p67
    %p74 = scmp.eq.s32.totalorder %s9, 1
    %p75 = por %p73, %p74
    %p76 = scmp.ne.s32.totalorder %s68, %s71
    %p77 = scmp.eq.s32.totalorder %s9, 0
    %p78 = por %p76, %p77
    %p79 = scmp.ne.s32.totalorder %s68, %s71
    %p80 = scmp.eq.s32.totalorder %s14, 1
    %p81 = por %p79, %p80
    %p82 = scmp.ne.s32.totalorder %s71, %s72
    %p83 = scmp.eq.s32.totalorder %s14, 0
    %p84 = por %p82, %p83
    %p85 = scmp.ne.s32.totalorder %s71, %s72
    %p86 = scmp.eq.s32.totalorder %s15, 1
    %p87 = por %p85, %p86
    %p89 = scmp.ne.s32.totalorder %s72, %s88
    %p90 = scmp.eq.s32.totalorder %s15, 0
    %p91 = por %p89, %p90
    %s92 = ssub.s32 %s16, %s35
    %s93 = ssub.s32 %s18, %s27
    %s94 = sor.u32 %s92, %s93
    %p95 = scmp.eq.s32.totalorder %s94, 0
    %s97 = sadd.s32 %s96, 1
    %s98 = scalar_select %p95, %s96, %s97
    %p101 = pneg %p95
    %p102 = scmp.eq.s32.totalorder %s9, 1
    %p103 = por %p101, %p102
    %p104 = scmp.ne.s32.totalorder %s96, %s99
    %p105 = scmp.eq.s32.totalorder %s9, 0
    %p106 = por %p104, %p105
    %p107 = scmp.ne.s32.totalorder %s96, %s99
    %p108 = scmp.eq.s32.totalorder %s14, 1
    %p109 = por %p107, %p108
    %p110 = scmp.ne.s32.totalorder %s99, %s100
    %p111 = scmp.eq.s32.totalorder %s14, 0
    %p112 = por %p110, %p111
    %p113 = scmp.ne.s32.totalorder %s99, %s100
    %p114 = scmp.eq.s32.totalorder %s15, 1
    %p115 = por %p113, %p114
    %p117 = scmp.ne.s32.totalorder %s100, %s116
    %p118 = scmp.eq.s32.totalorder %s15, 0
    %p119 = por %p117, %p118
    %s120 = ssub.s32 %s16, %s35
    %s121 = ssub.s32 %s17, %s31
    %s122 = sor.u32 %s120, %s121
    %p123 = scmp.eq.s32.totalorder %s122, 0
    %s125 = sadd.s32 %s124, 1
    %s126 = scalar_select %p123, %s124, %s125
    %p129 = pneg %p123
    %p130 = scmp.eq.s32.totalorder %s9, 1
    %p131 = por %p129, %p130
    %p132 = scmp.ne.s32.totalorder %s124, %s127
    %p133 = scmp.eq.s32.totalorder %s9, 0
    %p134 = por %p132, %p133
    %p135 = scmp.ne.s32.totalorder %s124, %s127
    %p136 = scmp.eq.s32.totalorder %s14, 1
    %p137 = por %p135, %p136
    %p138 = scmp.ne.s32.totalorder %s127, %s128
    %p139 = scmp.eq.s32.totalorder %s14, 0
    %p140 = por %p138, %p139
    %p141 = scmp.ne.s32.totalorder %s127, %s128
    %p142 = scmp.eq.s32.totalorder %s15, 1
    %p143 = por %p141, %p142
    %p145 = scmp.ne.s32.totalorder %s128, %s144
    %p146 = scmp.eq.s32.totalorder %s15, 0
    %p147 = por %p145, %p146
    %p148 = scmp.le.s32.totalorder 1, %s9
    %p149 = scmp.lt.s32.totalorder %s9, 3
    %p150 = pnand %p148, %p149
    %p151 = pneg %p150
    // Predicated region
    $region9: #{_encoder_forward.11} parent=5 // pred_check
      _
    $region10: #{_encoder_forward.11} parent=5 // pred_check_branch
      %153 = sbr.rel (%p150) target = $region12
    $region11: #{_encoder_forward.11} parent=5 // pred_region
      %s154 = ssub.s32 %s9, 1
    $region12: #{_encoder_forward.11} parent=5 // pred_fallthru
      _
    %p155 = scmp.lt.s32.totalorder %s9, 2
    // Predicated region
    $region13: #{_encoder_forward.11} parent=5 // pred_check
      %p156 = pneg %p155
    $region14: #{_encoder_forward.11} parent=5 // pred_check_branch
      %158 = sbr.rel (%p156) target = $region16
    $region15: #{_encoder_forward.11} parent=5 // pred_region
      // Predicated region
      $region17: #{_encoder_forward.11} parent=15 // pred_check
        %p159 = pneg %p50
      $region18: #{_encoder_forward.11} parent=15 // pred_check_branch
        %161 = sbr.rel (%p159) target = $region20
      $region19: #{_encoder_forward.11} parent=15 // pred_region
        %p162 = scmp.lt.s32.totalorder %s16, 1
        %s163 = scalar_select %p162, %s16, 1
        %p164 = scmp.lt.s32.totalorder %s17, 0
        %s165 = scalar_select %p164, %s17, 0
        %s166 = sadd.s32 %s165, %s163
        %s167 = smul.addr %s166, 4
        %s168 = scalar_lea.vmem %s0, %s167
      $region20: #{_encoder_forward.11} parent=15 // pred_fallthru
        _
      // Predicated region
      $region21: #{_encoder_forward.11} parent=15 // pred_check
        %p169 = pneg %p78
      $region22: #{_encoder_forward.11} parent=15 // pred_check_branch
        %171 = sbr.rel (%p169) target = $region24
      $region23: #{_encoder_forward.11} parent=15 // pred_region
        %p172 = scmp.lt.s32.totalorder %s16, 1
        %s173 = scalar_select %p172, %s16, 1
        %p174 = scmp.lt.s32.totalorder %s18, 0
        %s175 = scalar_select %p174, %s18, 0
        %s176 = sadd.s32 %s175, %s173
        %s177 = smul.addr %s176, 4
        %s178 = scalar_lea.vmem %s1, %s177
      $region24: #{_encoder_forward.11} parent=15 // pred_fallthru
        _
      // Predicated region
      $region25: #{_encoder_forward.11} parent=15 // pred_check
        %p179 = pneg %p106
      $region26: #{_encoder_forward.11} parent=15 // pred_check_branch
        %181 = sbr.rel (%p179) target = $region28
      $region27: #{_encoder_forward.11} parent=15 // pred_region
        %p182 = scmp.lt.s32.totalorder %s16, 1
        %s183 = scalar_select %p182, %s16, 1
        %p184 = scmp.lt.s32.totalorder %s18, 0
        %s185 = scalar_select %p184, %s18, 0
        %s186 = sadd.s32 %s185, %s183
        %s187 = scalar_lea.vmem %s2, %s186
      $region28: #{_encoder_forward.11} parent=15 // pred_fallthru
        _
    $region16: #{_encoder_forward.11} parent=5 // pred_fallthru
      _
    %p188 = scmp.le.s32.totalorder 1, %s9
    %p189 = scmp.lt.s32.totalorder %s9, 3
    %p190 = pnand %p188, %p189
    %p191 = pneg %p190
    // Predicated region
    $region29: #{_encoder_forward.11} parent=5 // pred_check
      _
    $region30: #{_encoder_forward.11} parent=5 // pred_check_branch
      %193 = sbr.rel (%p190) target = $region32
    $region31: #{_encoder_forward.11} parent=5 // pred_region
      %s194 = ssub.s32 %s9, 1
      %p195 = scmp.lt.s32.totalorder %s19, 1
      %s196 = scalar_select %p195, %s19, 1
      %p197 = scmp.lt.s32.totalorder %s20, 0
      %s198 = scalar_select %p197, %s20, 0
      %s199 = sadd.s32 %s198, %s196
      %s200 = smul.addr %s199, 4
      %s201 = scalar_lea.vmem %s0, %s200
      %p202 = pneg %p56
      %p203 = pneg %p53
      %p204 = scmp.lt.s32.totalorder %s19, 1
      %s205 = scalar_select %p204, %s19, 1
      %p206 = scmp.lt.s32.totalorder %s21, 0
      %s207 = scalar_select %p206, %s21, 0
      %s208 = sadd.s32 %s207, %s205
      %s209 = smul.addr %s208, 4
      %s210 = scalar_lea.vmem %s1, %s209
      %p211 = pneg %p84
      %p212 = pneg %p81
      %p213 = scmp.lt.s32.totalorder %s19, 1
      %s214 = scalar_select %p213, %s19, 1
      %p215 = scmp.lt.s32.totalorder %s21, 0
      %s216 = scalar_select %p215, %s21, 0
      %s217 = sadd.s32 %s216, %s214
      %s218 = scalar_lea.vmem %s2, %s217
      %p219 = pneg %p112
      %p220 = pneg %p109
      %p221 = pneg %p140
      %p222 = pneg %p137
      %p223 = scmp.lt.s32.totalorder %s19, 1
      %s224 = scalar_select %p223, %s19, 1
      %p225 = scmp.lt.s32.totalorder %s20, 0
      %s226 = scalar_select %p225, %s20, 0
      %s227 = sadd.s32 %s226, %s224
      %s228 = smul.addr %s227, 4
      %s229 = scalar_lea.vmem %s3, %s228
      %p230 = scmp.lt.s32.totalorder %s19, 1
      %s231 = scalar_select %p230, %s19, 1
      %p232 = scmp.lt.s32.totalorder %s20, 0
      %s233 = scalar_select %p232, %s20, 0
      %s234 = sadd.s32 %s233, %s231
      %s235 = smul.addr %s234, 4
      %s236 = scalar_lea.vmem %s0, %s235
      %p237 = scmp.lt.s32.totalorder %s19, 1
      %s238 = scalar_select %p237, %s19, 1
      %p239 = scmp.lt.s32.totalorder %s21, 0
      %s240 = scalar_select %p239, %s21, 0
      %s241 = sadd.s32 %s240, %s238
      %s242 = smul.addr %s241, 4
      %s243 = scalar_lea.vmem %s1, %s242
      %p244 = scmp.lt.s32.totalorder %s19, 1
      %s245 = scalar_select %p244, %s19, 1
      %p246 = scmp.lt.s32.totalorder %s21, 0
      %s247 = scalar_select %p246, %s21, 0
      %s248 = sadd.s32 %s247, %s245
      %s249 = scalar_lea.vmem %s2, %s248
      %p250 = scmp.lt.s32.totalorder %s19, 1
      %s251 = scalar_select %p250, %s19, 1
      %p252 = scmp.lt.s32.totalorder %s20, 0
      %s253 = scalar_select %p252, %s20, 0
      %s254 = sadd.s32 %s253, %s251
      %s255 = smul.addr %s254, 4
      %s256 = scalar_lea.vmem %s3, %s255
      %p258 = scmp.eq.s32.totalorder %s21, 0
      // Predicated region
      $region33: #{_encoder_forward.11} parent=31 // pred_check
        %p259 = pneg %p258
      $region34: #{_encoder_forward.11} parent=31 // pred_check_branch
        %261 = sbr.rel (%p259) target = $region36
      $region35: #{_encoder_forward.11} parent=31 // pred_region
        %vm262 = vcmask 7168
        %263 = vst.msk [vmem:[#allocation2] sm:$0xff] %vm262, -1e+30
        %264 = vst.msk [vmem:[#allocation2 + $0x8] sm:$0xff] %vm262, -1e+30
        %265 = vst.msk [vmem:[#allocation2 + $0x10] sm:$0xff] %vm262, -1e+30
        %266 = vst.msk [vmem:[#allocation2 + $0x18] sm:$0xff] %vm262, -1e+30
        %267 = vst.msk [vmem:[#allocation3] sm:$0xff] %vm262, 0.0
        %268 = vst.msk [vmem:[#allocation3 + $0x8] sm:$0xff] %vm262, 0.0
        %269 = vst.msk [vmem:[#allocation3 + $0x10] sm:$0xff] %vm262, 0.0
        %270 = vst.msk [vmem:[#allocation3 + $0x18] sm:$0xff] %vm262, 0.0
        %vm271 = vcmask 64512
        %272 = vst.msk [vmem:[#allocation4] sm:$0xff] %vm271, 0.0
        %273 = vst.msk [vmem:[#allocation4 + $0x8] sm:$0xff] %vm271, 0.0
        %274 = vst.msk [vmem:[#allocation4 + $0x10] sm:$0xff] %vm271, 0.0
        %275 = vst.msk [vmem:[#allocation4 + $0x18] sm:$0xff] %vm271, 0.0
      $region36: #{_encoder_forward.11} parent=31 // pred_fallthru
        _
      %v276 = vld [vmem:[%s249] sm:$0x1]
      %v277 = vld [vmem:[%s236] sm:$0xf]
      %v278 = vld [vmem:[%s243] sm:$0xf]
      %v280 = vlaneseq
      %v281 = vshrl.u32 %v280, 7
      %v282 = vsub.s32 0, %v281
      %v283 = vrot.slane %v276, %v282
      %v286 = vunpack.c.l.b16 %v278
      %v287 = vpack.c.b16 %v286, %v286
      %288 = vrot.lane.b32.xlu0 %v287, 96
      %v289 = vpop.permute.xlu0 %288
      %vm290 = vcmask 64512
      %v292 = vsel %vm290, %v277, 0
      %v295 = vsel %vm290, %v289, 0
      %297 = vmatprep.subr.bf16.mxu0 0
      %298 = vmatpush1.bf16.xpose.msra.mxu0 0
      %299 = vmatprep.subr.bf16.mxu0 0
      %300 = vmatpush1.bf16.xpose.msra.mxu0 0
      %301 = vmatprep.subr.bf16.mxu0 0
      %302 = vmatpush1.bf16.xpose.msra.mxu0 0
      %303 = vmatprep.subr.bf16.mxu0 0
      %304 = vmatpush1.bf16.xpose.msra.mxu0 0
      %305 = vmatprep.subr.bf16.mxu0 0
      %306 = vmatpush1.bf16.xpose.msra.mxu0 0
      %307 = vmatprep.subr.bf16.mxu0 0
      %308 = vmatpush1.bf16.xpose.msra.mxu0 0
      %309 = vmatprep.subr.bf16.mxu0 0
      %310 = vmatpush1.bf16.xpose.msra.mxu0 0
      %311 = vmatprep.subr.bf16.mxu0 0
      %312 = vmatpush1.bf16.xpose.msra.mxu0 %v295
      %313 = vmatprep.subr.bf16.mxu0 0
      %314 = vmatpush2.bf16.xpose.msra.mxu0 0
      %315 = vmatprep.subr.bf16.mxu0 0
      %316 = vmatpush2.bf16.xpose.msra.mxu0 0
      %317 = vmatprep.subr.bf16.mxu0 0
      %318 = vmatpush2.bf16.xpose.msra.mxu0 0
      %319 = vmatprep.subr.bf16.mxu0 0
      %320 = vmatpush2.bf16.xpose.msra.mxu0 0
      %321 = vmatprep.subr.bf16.mxu0 0
      %322 = vmatpush2.bf16.xpose.msra.mxu0 0
      %323 = vmatprep.subr.bf16.mxu0 0
      %324 = vmatpush2.bf16.xpose.msra.mxu0 0
      %325 = vmatprep.subr.bf16.mxu0 0
      %326 = vmatpush2.bf16.xpose.msra.mxu0 0
      %327 = vmatprep.subr.bf16.mxu0 0
      %328 = vmatpush2.bf16.xpose.msra.mxu0 0
      %329 = vmatprep.mubr.bf16.mxu0 0
      %330 = vmatmul.mubr.bf16.gmra.mxu0 %v292
      %v331 = vpop.f32.mrf.mxu0
      %v332 = vadd.f32 %v283, %v331
      %v333 = vpop.f32.mrf.mxu0
      %v334 = vpop.f32.mrf.mxu0
      %v335 = vpop.f32.mrf.mxu0
      %336 = vdwg.mxu0
      %v337 = vld [vmem:[#allocation2] sm:$0xff]
      %v338 = vsel %vm290, %v332, -inf
      %339 = vmax.xlane.f32.xlu0 %v338
      %v340 = vpop.xlane.xlu0 %339
      %v341 = vmax.f32 %v337, %v340
      %v342 = vsub.f32 %v337, %v341
      %v343 = vmul.f32 %v342, 1.442695
      %v344 = vpow.pop %v343
      %346 = vset.pattern.permute.xlu0 0
      %347 = vperm.xlu0 %346, %v341
      %v348 = vpop.permute.xlu0 %347
      %v350 = vsub.f32 %v332, %v348
      %v351 = vmul.f32 %v350, 1.442695
      %v352 = vpow.pop %v351
      %v353 = vld [vmem:[#allocation3] sm:$0xff]
      %v354 = vmul.f32 %v344, %v353
      %v355 = vsel %vm290, %v352, 0.0
      %356 = vadd.xlane.f32.xlu0 %v355
      %v357 = vpop.xlane.xlu0 %356
      %v358 = vadd.f32 %v354, %v357
      %vm359 = vcmask 7168
      %360 = vst.msk [vmem:[#allocation3] sm:$0xff] %vm359, %v358
      %v361 = vld [vmem:[#allocation4] sm:$0xff]
      %363 = vset.pattern.permute.xlu0 0
      %364 = vperm.xlu0 %363, %v344
      %v365 = vpop.permute.xlu0 %364
      %v367 = vmul.f32 %v365, %v361
      %v368 = vpack.c.bf16 %v352, %v352
      %369 = vrot.lane.b32.xlu0 %v287, 64
      %v370 = vpop.permute.xlu0 %369
      %v372 = vsel %vm290, %v368, 0
      %vm374 = vcmask 1043456
      %v376 = vsel %vm374, %v370, 0
      %378 = vmatprep.subr.bf16.mxu0 0
      %379 = vmatpush1.bf16.msra.mxu0 0
      %380 = vmatprep.subr.bf16.mxu0 0
      %381 = vmatpush1.bf16.msra.mxu0 0
      %382 = vmatprep.subr.bf16.mxu0 0
      %383 = vmatpush1.bf16.msra.mxu0 0
      %384 = vmatprep.subr.bf16.mxu0 0
      %385 = vmatpush1.bf16.msra.mxu0 0
      %386 = vmatprep.subr.bf16.mxu0 0
      %387 = vmatpush1.bf16.msra.mxu0 0
      %388 = vmatprep.subr.bf16.mxu0 0
      %389 = vmatpush1.bf16.msra.mxu0 0
      %390 = vmatprep.subr.bf16.mxu0 0
      %391 = vmatpush1.bf16.msra.mxu0 0
      %392 = vmatprep.subr.bf16.mxu0 0
      %393 = vmatpush1.bf16.msra.mxu0 %v376
      %394 = vmatprep.subr.bf16.mxu0 0
      %395 = vmatpush2.bf16.msra.mxu0 0
      %396 = vmatprep.subr.bf16.mxu0 0
      %397 = vmatpush2.bf16.msra.mxu0 0
      %398 = vmatprep.subr.bf16.mxu0 0
      %399 = vmatpush2.bf16.msra.mxu0 0
      %400 = vmatprep.subr.bf16.mxu0 0
      %401 = vmatpush2.bf16.msra.mxu0 0
      %402 = vmatprep.subr.bf16.mxu0 0
      %403 = vmatpush2.bf16.msra.mxu0 0
      %404 = vmatprep.subr.bf16.mxu0 0
      %405 = vmatpush2.bf16.msra.mxu0 0
      %406 = vmatprep.subr.bf16.mxu0 0
      %407 = vmatpush2.bf16.msra.mxu0 0
      %408 = vmatprep.subr.bf16.mxu0 0
      %409 = vmatpush2.bf16.msra.mxu0 0
      %410 = vmatprep.mubr.bf16.mxu0 0
      %411 = vmatmul.mubr.bf16.gmra.mxu0 %v372
      %v412 = vpop.f32.mrf.mxu0
      %v413 = vadd.f32 0.0, %v412
      %v414 = vpop.f32.mrf.mxu0
      %v415 = vpop.f32.mrf.mxu0
      %v416 = vpop.f32.mrf.mxu0
      %417 = vdwg.mxu0
      %v418 = vadd.f32 %v367, %v413
      %419 = vst.msk [vmem:[#allocation4] sm:$0xff] %vm290, %v418
      %420 = vst.msk [vmem:[#allocation2] sm:$0xff] %vm359, %v341
      %v422 = vunpack.c.l.b16 %v277
      %v423 = vpack.c.b16 %v422, %v422
      %424 = vrot.lane.b32.xlu0 %v423, 120
      %v425 = vpop.permute.xlu0 %424
      %426 = vrot.lane.b32.xlu0 %v287, 88
      %v427 = vpop.permute.xlu0 %426
      %v429 = vsel %vm290, %v425, 0
      %v432 = vsel %vm290, %v427, 0
      %434 = vmatprep.subr.bf16.mxu0 0
      %435 = vmatpush1.bf16.xpose.msra.mxu0 0
      %436 = vmatprep.subr.bf16.mxu0 0
      %437 = vmatpush1.bf16.xpose.msra.mxu0 0
      %438 = vmatprep.subr.bf16.mxu0 0
      %439 = vmatpush1.bf16.xpose.msra.mxu0 0
      %440 = vmatprep.subr.bf16.mxu0 0
      %441 = vmatpush1.bf16.xpose.msra.mxu0 0
      %442 = vmatprep.subr.bf16.mxu0 0
      %443 = vmatpush1.bf16.xpose.msra.mxu0 0
      %444 = vmatprep.subr.bf16.mxu0 0
      %445 = vmatpush1.bf16.xpose.msra.mxu0 0
      %446 = vmatprep.subr.bf16.mxu0 0
      %447 = vmatpush1.bf16.xpose.msra.mxu0 0
      %448 = vmatprep.subr.bf16.mxu0 0
      %449 = vmatpush1.bf16.xpose.msra.mxu0 %v432
      %450 = vmatprep.subr.bf16.mxu0 0
      %451 = vmatpush2.bf16.xpose.msra.mxu0 0
      %452 = vmatprep.subr.bf16.mxu0 0
      %453 = vmatpush2.bf16.xpose.msra.mxu0 0
      %454 = vmatprep.subr.bf16.mxu0 0
      %455 = vmatpush2.bf16.xpose.msra.mxu0 0
      %456 = vmatprep.subr.bf16.mxu0 0
      %457 = vmatpush2.bf16.xpose.msra.mxu0 0
      %458 = vmatprep.subr.bf16.mxu0 0
      %459 = vmatpush2.bf16.xpose.msra.mxu0 0
      %460 = vmatprep.subr.bf16.mxu0 0
      %461 = vmatpush2.bf16.xpose.msra.mxu0 0
      %462 = vmatprep.subr.bf16.mxu0 0
      %463 = vmatpush2.bf16.xpose.msra.mxu0 0
      %464 = vmatprep.subr.bf16.mxu0 0
      %465 = vmatpush2.bf16.xpose.msra.mxu0 0
      %466 = vmatprep.mubr.bf16.mxu0 0
      %467 = vmatmul.mubr.bf16.gmra.mxu0 %v429
      %v468 = vpop.f32.mrf.mxu0
      %v469 = vadd.f32 %v283, %v468
      %v470 = vpop.f32.mrf.mxu0
      %v471 = vpop.f32.mrf.mxu0
      %v472 = vpop.f32.mrf.mxu0
      %473 = vdwg.mxu0
      %s474 = scalar_lea.vmem [#allocation2], 8
      %v475 = vld [vmem:[%s474] sm:$0xff]
      %v476 = vsel %vm290, %v469, -inf
      %477 = vmax.xlane.f32.xlu0 %v476
      %v478 = vpop.xlane.xlu0 %477
      %v479 = vmax.f32 %v475, %v478
      %v480 = vsub.f32 %v475, %v479
      %v481 = vmul.f32 %v480, 1.442695
      %v482 = vpow.pop %v481
      %484 = vset.pattern.permute.xlu0 0
      %485 = vperm.xlu0 %484, %v479
      %v486 = vpop.permute.xlu0 %485
      %v488 = vsub.f32 %v469, %v486
      %v489 = vmul.f32 %v488, 1.442695
      %v490 = vpow.pop %v489
      %s491 = scalar_lea.vmem [#allocation3], 8
      %v492 = vld [vmem:[%s491] sm:$0xff]
      %v493 = vmul.f32 %v482, %v492
      %v494 = vsel %vm290, %v490, 0.0
      %495 = vadd.xlane.f32.xlu0 %v494
      %v496 = vpop.xlane.xlu0 %495
      %v497 = vadd.f32 %v493, %v496
      %498 = vst.msk [vmem:[%s491] sm:$0xff] %vm359, %v497
      %s499 = scalar_lea.vmem [#allocation4], 8
      %v500 = vld [vmem:[%s499] sm:$0xff]
      %502 = vset.pattern.permute.xlu0 0
      %503 = vperm.xlu0 %502, %v482
      %v504 = vpop.permute.xlu0 %503
      %v506 = vmul.f32 %v504, %v500
      %v507 = vpack.c.bf16 %v490, %v490
      %508 = vrot.lane.b32.xlu0 %v287, 56
      %v509 = vpop.permute.xlu0 %508
      %v511 = vsel %vm290, %v507, 0
      %v514 = vsel %vm374, %v509, 0
      %516 = vmatprep.subr.bf16.mxu0 0
      %517 = vmatpush1.bf16.msra.mxu0 0
      %518 = vmatprep.subr.bf16.mxu0 0
      %519 = vmatpush1.bf16.msra.mxu0 0
      %520 = vmatprep.subr.bf16.mxu0 0
      %521 = vmatpush1.bf16.msra.mxu0 0
      %522 = vmatprep.subr.bf16.mxu0 0
      %523 = vmatpush1.bf16.msra.mxu0 0
      %524 = vmatprep.subr.bf16.mxu0 0
      %525 = vmatpush1.bf16.msra.mxu0 0
      %526 = vmatprep.subr.bf16.mxu0 0
      %527 = vmatpush1.bf16.msra.mxu0 0
      %528 = vmatprep.subr.bf16.mxu0 0
      %529 = vmatpush1.bf16.msra.mxu0 0
      %530 = vmatprep.subr.bf16.mxu0 0
      %531 = vmatpush1.bf16.msra.mxu0 %v514
      %532 = vmatprep.subr.bf16.mxu0 0
      %533 = vmatpush2.bf16.msra.mxu0 0
      %534 = vmatprep.subr.bf16.mxu0 0
      %535 = vmatpush2.bf16.msra.mxu0 0
      %536 = vmatprep.subr.bf16.mxu0 0
      %537 = vmatpush2.bf16.msra.mxu0 0
      %538 = vmatprep.subr.bf16.mxu0 0
      %539 = vmatpush2.bf16.msra.mxu0 0
      %540 = vmatprep.subr.bf16.mxu0 0
      %541 = vmatpush2.bf16.msra.mxu0 0
      %542 = vmatprep.subr.bf16.mxu0 0
      %543 = vmatpush2.bf16.msra.mxu0 0
      %544 = vmatprep.subr.bf16.mxu0 0
      %545 = vmatpush2.bf16.msra.mxu0 0
      %546 = vmatprep.subr.bf16.mxu0 0
      %547 = vmatpush2.bf16.msra.mxu0 0
      %548 = vmatprep.mubr.bf16.mxu0 0
      %549 = vmatmul.mubr.bf16.gmra.mxu0 %v511
      %v550 = vpop.f32.mrf.mxu0
      %v551 = vadd.f32 0.0, %v550
      %v552 = vpop.f32.mrf.mxu0
      %v553 = vpop.f32.mrf.mxu0
      %v554 = vpop.f32.mrf.mxu0
      %555 = vdwg.mxu0
      %v556 = vadd.f32 %v506, %v551
      %557 = vst.msk [vmem:[%s499] sm:$0xff] %vm290, %v556
      %558 = vst.msk [vmem:[%s474] sm:$0xff] %vm359, %v479
      %559 = vrot.lane.b32.xlu0 %v423, 112
      %v560 = vpop.permute.xlu0 %559
      %561 = vrot.lane.b32.xlu0 %v287, 80
      %v562 = vpop.permute.xlu0 %561
      %v564 = vsel %vm290, %v560, 0
      %v567 = vsel %vm290, %v562, 0
      %569 = vmatprep.subr.bf16.mxu0 0
      %570 = vmatpush1.bf16.xpose.msra.mxu0 0
      %571 = vmatprep.subr.bf16.mxu0 0
      %572 = vmatpush1.bf16.xpose.msra.mxu0 0
      %573 = vmatprep.subr.bf16.mxu0 0
      %574 = vmatpush1.bf16.xpose.msra.mxu0 0
      %575 = vmatprep.subr.bf16.mxu0 0
      %576 = vmatpush1.bf16.xpose.msra.mxu0 0
      %577 = vmatprep.subr.bf16.mxu0 0
      %578 = vmatpush1.bf16.xpose.msra.mxu0 0
      %579 = vmatprep.subr.bf16.mxu0 0
      %580 = vmatpush1.bf16.xpose.msra.mxu0 0
      %581 = vmatprep.subr.bf16.mxu0 0
      %582 = vmatpush1.bf16.xpose.msra.mxu0 0
      %583 = vmatprep.subr.bf16.mxu0 0
      %584 = vmatpush1.bf16.xpose.msra.mxu0 %v567
      %585 = vmatprep.subr.bf16.mxu0 0
      %586 = vmatpush2.bf16.xpose.msra.mxu0 0
      %587 = vmatprep.subr.bf16.mxu0 0
      %588 = vmatpush2.bf16.xpose.msra.mxu0 0
      %589 = vmatprep.subr.bf16.mxu0 0
      %590 = vmatpush2.bf16.xpose.msra.mxu0 0
      %591 = vmatprep.subr.bf16.mxu0 0
      %592 = vmatpush2.bf16.xpose.msra.mxu0 0
      %593 = vmatprep.subr.bf16.mxu0 0
      %594 = vmatpush2.bf16.xpose.msra.mxu0 0
      %595 = vmatprep.subr.bf16.mxu0 0
      %596 = vmatpush2.bf16.xpose.msra.mxu0 0
      %597 = vmatprep.subr.bf16.mxu0 0
      %598 = vmatpush2.bf16.xpose.msra.mxu0 0
      %599 = vmatprep.subr.bf16.mxu0 0
      %600 = vmatpush2.bf16.xpose.msra.mxu0 0
      %601 = vmatprep.mubr.bf16.mxu0 0
      %602 = vmatmul.mubr.bf16.gmra.mxu0 %v564
      %v603 = vpop.f32.mrf.mxu0
      %v604 = vadd.f32 %v283, %v603
      %v605 = vpop.f32.mrf.mxu0
      %v606 = vpop.f32.mrf.mxu0
      %v607 = vpop.f32.mrf.mxu0
      %608 = vdwg.mxu0
      %s609 = scalar_lea.vmem [#allocation2], 16
      %v610 = vld [vmem:[%s609] sm:$0xff]
      %v611 = vsel %vm290, %v604, -inf
      %612 = vmax.xlane.f32.xlu0 %v611
      %v613 = vpop.xlane.xlu0 %612
      %v614 = vmax.f32 %v610, %v613
      %v615 = vsub.f32 %v610, %v614
      %v616 = vmul.f32 %v615, 1.442695
      %v617 = vpow.pop %v616
      %619 = vset.pattern.permute.xlu0 0
      %620 = vperm.xlu0 %619, %v614
      %v621 = vpop.permute.xlu0 %620
      %v623 = vsub.f32 %v604, %v621
      %v624 = vmul.f32 %v623, 1.442695
      %v625 = vpow.pop %v624
      %s626 = scalar_lea.vmem [#allocation3], 16
      %v627 = vld [vmem:[%s626] sm:$0xff]
      %v628 = vmul.f32 %v617, %v627
      %v629 = vsel %vm290, %v625, 0.0
      %630 = vadd.xlane.f32.xlu0 %v629
      %v631 = vpop.xlane.xlu0 %630
      %v632 = vadd.f32 %v628, %v631
      %633 = vst.msk [vmem:[%s626] sm:$0xff] %vm359, %v632
      %s634 = scalar_lea.vmem [#allocation4], 16
      %v635 = vld [vmem:[%s634] sm:$0xff]
      %637 = vset.pattern.permute.xlu0 0
      %638 = vperm.xlu0 %637, %v617
      %v639 = vpop.permute.xlu0 %638
      %v641 = vmul.f32 %v639, %v635
      %v642 = vpack.c.bf16 %v625, %v625
      %643 = vrot.lane.b32.xlu0 %v287, 48
      %v644 = vpop.permute.xlu0 %643
      %v646 = vsel %vm290, %v642, 0
      %v649 = vsel %vm374, %v644, 0
      %651 = vmatprep.subr.bf16.mxu0 0
      %652 = vmatpush1.bf16.msra.mxu0 0
      %653 = vmatprep.subr.bf16.mxu0 0
      %654 = vmatpush1.bf16.msra.mxu0 0
      %655 = vmatprep.subr.bf16.mxu0 0
      %656 = vmatpush1.bf16.msra.mxu0 0
      %657 = vmatprep.subr.bf16.mxu0 0
      %658 = vmatpush1.bf16.msra.mxu0 0
      %659 = vmatprep.subr.bf16.mxu0 0
      %660 = vmatpush1.bf16.msra.mxu0 0
      %661 = vmatprep.subr.bf16.mxu0 0
      %662 = vmatpush1.bf16.msra.mxu0 0
      %663 = vmatprep.subr.bf16.mxu0 0
      %664 = vmatpush1.bf16.msra.mxu0 0
      %665 = vmatprep.subr.bf16.mxu0 0
      %666 = vmatpush1.bf16.msra.mxu0 %v649
      %667 = vmatprep.subr.bf16.mxu0 0
      %668 = vmatpush2.bf16.msra.mxu0 0
      %669 = vmatprep.subr.bf16.mxu0 0
      %670 = vmatpush2.bf16.msra.mxu0 0
      %671 = vmatprep.subr.bf16.mxu0 0
      %672 = vmatpush2.bf16.msra.mxu0 0
      %673 = vmatprep.subr.bf16.mxu0 0
      %674 = vmatpush2.bf16.msra.mxu0 0
      %675 = vmatprep.subr.bf16.mxu0 0
      %676 = vmatpush2.bf16.msra.mxu0 0
      %677 = vmatprep.subr.bf16.mxu0 0
      %678 = vmatpush2.bf16.msra.mxu0 0
      %679 = vmatprep.subr.bf16.mxu0 0
      %680 = vmatpush2.bf16.msra.mxu0 0
      %681 = vmatprep.subr.bf16.mxu0 0
      %682 = vmatpush2.bf16.msra.mxu0 0
      %683 = vmatprep.mubr.bf16.mxu0 0
      %684 = vmatmul.mubr.bf16.gmra.mxu0 %v646
      %v685 = vpop.f32.mrf.mxu0
      %v686 = vadd.f32 0.0, %v685
      %v687 = vpop.f32.mrf.mxu0
      %v688 = vpop.f32.mrf.mxu0
      %v689 = vpop.f32.mrf.mxu0
      %690 = vdwg.mxu0
      %v691 = vadd.f32 %v641, %v686
      %692 = vst.msk [vmem:[%s634] sm:$0xff] %vm290, %v691
      %693 = vst.msk [vmem:[%s609] sm:$0xff] %vm359, %v614
      %694 = vrot.lane.b32.xlu0 %v423, 104
      %v695 = vpop.permute.xlu0 %694
      %696 = vrot.lane.b32.xlu0 %v287, 72
      %v697 = vpop.permute.xlu0 %696
      %v699 = vsel %vm290, %v695, 0
      %v702 = vsel %vm290, %v697, 0
      %704 = vmatprep.subr.bf16.mxu0 0
      %705 = vmatpush1.bf16.xpose.msra.mxu0 0
      %706 = vmatprep.subr.bf16.mxu0 0
      %707 = vmatpush1.bf16.xpose.msra.mxu0 0
      %708 = vmatprep.subr.bf16.mxu0 0
      %709 = vmatpush1.bf16.xpose.msra.mxu0 0
      %710 = vmatprep.subr.bf16.mxu0 0
      %711 = vmatpush1.bf16.xpose.msra.mxu0 0
      %712 = vmatprep.subr.bf16.mxu0 0
      %713 = vmatpush1.bf16.xpose.msra.mxu0 0
      %714 = vmatprep.subr.bf16.mxu0 0
      %715 = vmatpush1.bf16.xpose.msra.mxu0 0
      %716 = vmatprep.subr.bf16.mxu0 0
      %717 = vmatpush1.bf16.xpose.msra.mxu0 0
      %718 = vmatprep.subr.bf16.mxu0 0
      %719 = vmatpush1.bf16.xpose.msra.mxu0 %v702
      %720 = vmatprep.subr.bf16.mxu0 0
      %721 = vmatpush2.bf16.xpose.msra.mxu0 0
      %722 = vmatprep.subr.bf16.mxu0 0
      %723 = vmatpush2.bf16.xpose.msra.mxu0 0
      %724 = vmatprep.subr.bf16.mxu0 0
      %725 = vmatpush2.bf16.xpose.msra.mxu0 0
      %726 = vmatprep.subr.bf16.mxu0 0
      %727 = vmatpush2.bf16.xpose.msra.mxu0 0
      %728 = vmatprep.subr.bf16.mxu0 0
      %729 = vmatpush2.bf16.xpose.msra.mxu0 0
      %730 = vmatprep.subr.bf16.mxu0 0
      %731 = vmatpush2.bf16.xpose.msra.mxu0 0
      %732 = vmatprep.subr.bf16.mxu0 0
      %733 = vmatpush2.bf16.xpose.msra.mxu0 0
      %734 = vmatprep.subr.bf16.mxu0 0
      %735 = vmatpush2.bf16.xpose.msra.mxu0 0
      %736 = vmatprep.mubr.bf16.mxu0 0
      %737 = vmatmul.mubr.bf16.gmra.mxu0 %v699
      %v738 = vpop.f32.mrf.mxu0
      %v739 = vadd.f32 %v283, %v738
      %v740 = vpop.f32.mrf.mxu0
      %v741 = vpop.f32.mrf.mxu0
      %v742 = vpop.f32.mrf.mxu0
      %743 = vdwg.mxu0
      %s744 = scalar_lea.vmem [#allocation2], 24
      %v745 = vld [vmem:[%s744] sm:$0xff]
      %v746 = vsel %vm290, %v739, -inf
      %747 = vmax.xlane.f32.xlu0 %v746
      %v748 = vpop.xlane.xlu0 %747
      %v749 = vmax.f32 %v745, %v748
      %v750 = vsub.f32 %v745, %v749
      %v751 = vmul.f32 %v750, 1.442695
      %v752 = vpow.pop %v751
      %754 = vset.pattern.permute.xlu0 0
      %755 = vperm.xlu0 %754, %v749
      %v756 = vpop.permute.xlu0 %755
      %v758 = vsub.f32 %v739, %v756
      %v759 = vmul.f32 %v758, 1.442695
      %v760 = vpow.pop %v759
      %s761 = scalar_lea.vmem [#allocation3], 24
      %v762 = vld [vmem:[%s761] sm:$0xff]
      %v763 = vmul.f32 %v752, %v762
      %v764 = vsel %vm290, %v760, 0.0
      %765 = vadd.xlane.f32.xlu0 %v764
      %v766 = vpop.xlane.xlu0 %765
      %v767 = vadd.f32 %v763, %v766
      %768 = vst.msk [vmem:[%s761] sm:$0xff] %vm359, %v767
      %s769 = scalar_lea.vmem [#allocation4], 24
      %v770 = vld [vmem:[%s769] sm:$0xff]
      %772 = vset.pattern.permute.xlu0 0
      %773 = vperm.xlu0 %772, %v752
      %v774 = vpop.permute.xlu0 %773
      %v776 = vmul.f32 %v774, %v770
      %v777 = vpack.c.bf16 %v760, %v760
      %778 = vrot.lane.b32.xlu0 %v287, 40
      %v779 = vpop.permute.xlu0 %778
      %v781 = vsel %vm290, %v777, 0
      %v784 = vsel %vm374, %v779, 0
      %786 = vmatprep.subr.bf16.mxu0 0
      %787 = vmatpush1.bf16.msra.mxu0 0
      %788 = vmatprep.subr.bf16.mxu0 0
      %789 = vmatpush1.bf16.msra.mxu0 0
      %790 = vmatprep.subr.bf16.mxu0 0
      %791 = vmatpush1.bf16.msra.mxu0 0
      %792 = vmatprep.subr.bf16.mxu0 0
      %793 = vmatpush1.bf16.msra.mxu0 0
      %794 = vmatprep.subr.bf16.mxu0 0
      %795 = vmatpush1.bf16.msra.mxu0 0
      %796 = vmatprep.subr.bf16.mxu0 0
      %797 = vmatpush1.bf16.msra.mxu0 0
      %798 = vmatprep.subr.bf16.mxu0 0
      %799 = vmatpush1.bf16.msra.mxu0 0
      %800 = vmatprep.subr.bf16.mxu0 0
      %801 = vmatpush1.bf16.msra.mxu0 %v784
      %802 = vmatprep.subr.bf16.mxu0 0
      %803 = vmatpush2.bf16.msra.mxu0 0
      %804 = vmatprep.subr.bf16.mxu0 0
      %805 = vmatpush2.bf16.msra.mxu0 0
      %806 = vmatprep.subr.bf16.mxu0 0
      %807 = vmatpush2.bf16.msra.mxu0 0
      %808 = vmatprep.subr.bf16.mxu0 0
      %809 = vmatpush2.bf16.msra.mxu0 0
      %810 = vmatprep.subr.bf16.mxu0 0
      %811 = vmatpush2.bf16.msra.mxu0 0
      %812 = vmatprep.subr.bf16.mxu0 0
      %813 = vmatpush2.bf16.msra.mxu0 0
      %814 = vmatprep.subr.bf16.mxu0 0
      %815 = vmatpush2.bf16.msra.mxu0 0
      %816 = vmatprep.subr.bf16.mxu0 0
      %817 = vmatpush2.bf16.msra.mxu0 0
      %818 = vmatprep.mubr.bf16.mxu0 0
      %819 = vmatmul.mubr.bf16.gmra.mxu0 %v781
      %v820 = vpop.f32.mrf.mxu0
      %v821 = vadd.f32 0.0, %v820
      %v822 = vpop.f32.mrf.mxu0
      %v823 = vpop.f32.mrf.mxu0
      %v824 = vpop.f32.mrf.mxu0
      %825 = vdwg.mxu0
      %v826 = vadd.f32 %v776, %v821
      %827 = vst.msk [vmem:[%s769] sm:$0xff] %vm290, %v826
      %828 = vst.msk [vmem:[%s744] sm:$0xff] %vm359, %v749
      // Predicated region
      $region37: #{_encoder_forward.11} parent=31 // pred_check
        %p829 = pneg %p258
      $region38: #{_encoder_forward.11} parent=31 // pred_check_branch
        %831 = sbr.rel (%p829) target = $region40
      $region39: #{_encoder_forward.11} parent=31 // pred_region
        %v832 = vld [vmem:[#allocation3] sm:$0xff]
        %v833 = vrcp.pop %v832
        %v834 = vld [vmem:[#allocation4] sm:$0xff]
        %836 = vset.pattern.permute.xlu0 0
        %837 = vperm.xlu0 %836, %v833
        %v838 = vpop.permute.xlu0 %837
        %v840 = vmul.f32 %v834, %v838
        %v841 = vpack.c.bf16 %v840, %v840
        %vm842 = vcmask 60416
        %843 = vst.msk [vmem:[%s256] sm:$0xf] %vm842, %v841
        %v844 = vld [vmem:[%s491] sm:$0xff]
        %v845 = vrcp.pop %v844
        %v846 = vld [vmem:[%s499] sm:$0xff]
        %848 = vset.pattern.permute.xlu0 0
        %849 = vperm.xlu0 %848, %v845
        %v850 = vpop.permute.xlu0 %849
        %v852 = vmul.f32 %v846, %v850
        %v853 = vpack.c.bf16 %v852, %v852
        %v855 = vunpack.c.l.b16 %v853
        %v856 = vpack.c.b16 %v855, %v855
        %857 = vrot.lane.b32.xlu0 %v856, 8
        %v858 = vpop.permute.xlu0 %857
        %vm860 = vcmask 126016
        %861 = vst.msk [vmem:[%s256] sm:$0xf] %vm860, %v858
        %v862 = vld [vmem:[%s626] sm:$0xff]
        %v863 = vrcp.pop %v862
        %v864 = vld [vmem:[%s634] sm:$0xff]
        %866 = vset.pattern.permute.xlu0 0
        %867 = vperm.xlu0 %866, %v863
        %v868 = vpop.permute.xlu0 %867
        %v870 = vmul.f32 %v864, %v868
        %v871 = vpack.c.bf16 %v870, %v870
        %v873 = vunpack.c.l.b16 %v871
        %v874 = vpack.c.b16 %v873, %v873
        %875 = vrot.lane.b32.xlu0 %v874, 16
        %v876 = vpop.permute.xlu0 %875
        %vm878 = vcmask 191616
        %879 = vst.msk [vmem:[%s256] sm:$0xf] %vm878, %v876
        %v880 = vld [vmem:[%s761] sm:$0xff]
        %v881 = vrcp.pop %v880
        %v882 = vld [vmem:[%s769] sm:$0xff]
        %884 = vset.pattern.permute.xlu0 0
        %885 = vperm.xlu0 %884, %v881
        %v886 = vpop.permute.xlu0 %885
        %v888 = vmul.f32 %v882, %v886
        %v889 = vpack.c.bf16 %v888, %v888
        %v891 = vunpack.c.l.b16 %v889
        %v892 = vpack.c.b16 %v891, %v891
        %893 = vrot.lane.b32.xlu0 %v892, 24
        %v894 = vpop.permute.xlu0 %893
        %vm896 = vcmask 257216
        %897 = vst.msk [vmem:[%s256] sm:$0xf] %vm896, %v894
      $region40: #{_encoder_forward.11} parent=31 // pred_fallthru
        _
      %p898 = scmp.lt.s32.totalorder %s19, 1
      %s899 = scalar_select %p898, %s19, 1
      %p900 = scmp.lt.s32.totalorder %s20, 0
      %s901 = scalar_select %p900, %s20, 0
      %s902 = sadd.s32 %s901, %s899
      %s903 = smul.addr %s902, 4
      %s904 = scalar_lea.vmem %s3, %s903
      // Predicated region
      $region41: #{_encoder_forward.11} parent=31 // pred_check
        %p905 = pneg %p137
      $region42: #{_encoder_forward.11} parent=31 // pred_check_branch
        %907 = sbr.rel (%p905) target = $region44
      $region43: #{_encoder_forward.11} parent=31 // pred_region
        _
      $region44: #{_encoder_forward.11} parent=31 // pred_fallthru
        _
    $region32: #{_encoder_forward.11} parent=5 // pred_fallthru
      _
    %p908 = scmp.le.s32.totalorder 2, %s9
    // Predicated region
    $region45: #{_encoder_forward.11} parent=5 // pred_check
      %p909 = pneg %p908
    $region46: #{_encoder_forward.11} parent=5 // pred_check_branch
      %911 = sbr.rel (%p909) target = $region48
    $region47: #{_encoder_forward.11} parent=5 // pred_region
      %s912 = ssub.s32 %s9, 2
      // Predicated region
      $region49: #{_encoder_forward.11} parent=47 // pred_check
        %p913 = pneg %p143
      $region50: #{_encoder_forward.11} parent=47 // pred_check_branch
        %915 = sbr.rel (%p913) target = $region52
      $region51: #{_encoder_forward.11} parent=47 // pred_region
        %p916 = scmp.lt.s32.totalorder %s22, 1
        %s917 = scalar_select %p916, %s22, 1
        %p918 = scmp.lt.s32.totalorder %s23, 0
        %s919 = scalar_select %p918, %s23, 0
        %s920 = sadd.s32 %s919, %s917
        %s921 = smul.addr %s920, 4
        %s922 = scalar_lea.vmem %s3, %s921
      $region52: #{_encoder_forward.11} parent=47 // pred_fallthru
        _
    $region48: #{_encoder_forward.11} parent=5 // pred_fallthru
      _
  $region6: #{_encoder_forward.11} parent=0 // loop_footer
    %s13 = sadd.s32 1, %s9
  $region7: #{_encoder_forward.11} parent=0 // loop_footer_branch
    %8 = sbr.rel target = $region3
  $region8: #{_encoder_forward.11} parent=0 // loop_exit
    _

// kernel: _encoder_forward.14
$region0: #{_encoder_forward.14}
  #allocation0 [shape = 'u32[]', space=smem, size = 0x4, offset = 0x4, fixed_abs, tag = 'smem constant byte address 0x4 - core index']
  #allocation1 [shape = 'u32[144,128]{1,0:T(1,128)}', space=vmem, size = 0x12000, scoped, tag = 'internal scratch']
  #allocation2 [shape = 'f32[16,32]{1,0:T(8,128)}', space=vmem, size = 0x2000, scoped, tag = 'scratch operand']
  %s0 = inlined_call_operand.vmem [shape: bf16[16,64], index: 0, kind: input, shape index: {}]
  %s1 = inlined_call_operand.vmem [shape: bf16[64,32], index: 1, kind: input, shape index: {}]
  %s2 = inlined_call_operand.vmem [shape: f32[1,32], index: 2, kind: input, shape index: {}]
  %s3 = inlined_call_operand.vmem [shape: f32[16,32], index: 3, kind: input, shape index: {}]
  %s4 = inlined_call_operand.vmem [shape: f32[1,32], index: 4, kind: input, shape index: {}]
  %s5 = inlined_call_operand.vmem [shape: f32[1,32], index: 5, kind: input, shape index: {}]
  %s6 = inlined_call_operand.vmem [shape: f32[16,32], index: 6, kind: output, shape index: {}]
  %s7 = sld [smem:[#allocation0]]
  $region42: #{_encoder_forward.14} parent=0
    _
  %s9 = ssub.s32 1, %s7
  %s10 = scalar_select 0, %s9, %s7
  // Predicated region
  $region2: #{_encoder_forward.14} parent=0 // pred_check
    _
  $region3: #{_encoder_forward.14} parent=0 // pred_check_branch
    %12 = sbr.rel (0) target = $region5
  $region4: #{_encoder_forward.14} parent=0 // pred_region
    _
  $region5: #{_encoder_forward.14} parent=0 // pred_fallthru
    _
  // Predicated region
  $region6: #{_encoder_forward.14} parent=0 // pred_check
    _
  $region7: #{_encoder_forward.14} parent=0 // pred_check_branch
    %14 = sbr.rel (0) target = $region9
  $region8: #{_encoder_forward.14} parent=0 // pred_region
    _
  $region9: #{_encoder_forward.14} parent=0 // pred_fallthru
    _
  // Predicated region
  $region10: #{_encoder_forward.14} parent=0 // pred_check
    _
  $region11: #{_encoder_forward.14} parent=0 // pred_check_branch
    %16 = sbr.rel (0) target = $region13
  $region12: #{_encoder_forward.14} parent=0 // pred_region
    _
  $region13: #{_encoder_forward.14} parent=0 // pred_fallthru
    _
  // Predicated region
  $region14: #{_encoder_forward.14} parent=0 // pred_check
    _
  $region15: #{_encoder_forward.14} parent=0 // pred_check_branch
    %18 = sbr.rel (0) target = $region17
  $region16: #{_encoder_forward.14} parent=0 // pred_region
    _
  $region17: #{_encoder_forward.14} parent=0 // pred_fallthru
    _
  // Predicated region
  $region18: #{_encoder_forward.14} parent=0 // pred_check
    _
  $region19: #{_encoder_forward.14} parent=0 // pred_check_branch
    %20 = sbr.rel (0) target = $region21
  $region20: #{_encoder_forward.14} parent=0 // pred_region
    _
  $region21: #{_encoder_forward.14} parent=0 // pred_fallthru
    _
  // Predicated region
  $region22: #{_encoder_forward.14} parent=0 // pred_check
    _
  $region23: #{_encoder_forward.14} parent=0 // pred_check_branch
    %22 = sbr.rel (0) target = $region25
  $region24: #{_encoder_forward.14} parent=0 // pred_region
    _
  $region25: #{_encoder_forward.14} parent=0 // pred_fallthru
    _
  %p24 = scmp.eq.s32.totalorder 0, 0
  // Predicated region
  $region26: #{_encoder_forward.14} parent=0 // pred_check
    %p25 = pneg %p24
  $region27: #{_encoder_forward.14} parent=0 // pred_check_branch
    %27 = sbr.rel (%p25) target = $region29
  $region28: #{_encoder_forward.14} parent=0 // pred_region
    %vm28 = vcmask 261120
    %29 = vst.msk [vmem:[#allocation2] sm:$0xff] %vm28, 0.0
    %30 = vst.msk [vmem:[#allocation2 + $0x8] sm:$0xff] %vm28, 0.0
  $region29: #{_encoder_forward.14} parent=0 // pred_fallthru
    _
  %v31 = vld [vmem:[%s0] sm:$0xf]
  %v32 = vld [vmem:[%s0 + $0x4] sm:$0xf]
  %v33 = vld [vmem:[%s1] sm:$0xf]
  %v34 = vld [vmem:[%s1 + $0x4] sm:$0xf]
  %v35 = vld [vmem:[%s1 + $0x8] sm:$0xf]
  %v36 = vld [vmem:[%s1 + $0xc] sm:$0xf]
  %v37 = vld [vmem:[%s1 + $0x10] sm:$0xf]
  %v38 = vld [vmem:[%s1 + $0x14] sm:$0xf]
  %v39 = vld [vmem:[%s1 + $0x18] sm:$0xf]
  %v40 = vld [vmem:[%s1 + $0x1c] sm:$0xf]
  %v41 = vld [vmem:[#allocation2] sm:$0xff]
  %v42 = vld [vmem:[#allocation2 + $0x8] sm:$0xff]
  %v45 = vunpack.c.l.b16 %v31
  %v46 = vunpack.c.l.b16 %v32
  %v47 = vpack.c.b16 %v46, %v45
  %v56 = vunpack.c.l.b16 %v33
  %v57 = vunpack.c.l.b16 %v34
  %v58 = vunpack.c.l.b16 %v35
  %v59 = vunpack.c.l.b16 %v36
  %v60 = vunpack.c.l.b16 %v37
  %v61 = vunpack.c.l.b16 %v38
  %v62 = vunpack.c.l.b16 %v39
  %v63 = vunpack.c.l.b16 %v40
  %v64 = vpack.c.b16 %v57, %v56
  %v65 = vpack.c.b16 %v59, %v58
  %v66 = vpack.c.b16 %v61, %v60
  %v67 = vpack.c.b16 %v63, %v62
  %vm72 = vcmask 523264
  %v74 = vsel %vm72, %v47, 0
  %76 = vmatprep.subr.bf16.mxu0 0
  %77 = vmatpush1.bf16.msra.mxu0 0
  %78 = vmatprep.subr.bf16.mxu0 0
  %79 = vmatpush1.bf16.msra.mxu0 0
  %80 = vmatprep.subr.bf16.mxu0 0
  %81 = vmatpush1.bf16.msra.mxu0 0
  %82 = vmatprep.subr.bf16.mxu0 0
  %83 = vmatpush1.bf16.msra.mxu0 0
  %84 = vmatprep.subr.bf16.mxu0 0
  %85 = vmatpush1.bf16.msra.mxu0 %v67
  %86 = vmatprep.subr.bf16.mxu0 0
  %87 = vmatpush1.bf16.msra.mxu0 %v66
  %88 = vmatprep.subr.bf16.mxu0 0
  %89 = vmatpush1.bf16.msra.mxu0 %v65
  %90 = vmatprep.subr.bf16.mxu0 0
  %91 = vmatpush1.bf16.msra.mxu0 %v64
  %92 = vmatprep.subr.bf16.mxu0 0
  %93 = vmatpush2.bf16.msra.mxu0 0
  %94 = vmatprep.subr.bf16.mxu0 0
  %95 = vmatpush2.bf16.msra.mxu0 0
  %96 = vmatprep.subr.bf16.mxu0 0
  %97 = vmatpush2.bf16.msra.mxu0 0
  %98 = vmatprep.subr.bf16.mxu0 0
  %99 = vmatpush2.bf16.msra.mxu0 0
  %100 = vmatprep.subr.bf16.mxu0 0
  %101 = vmatpush2.bf16.msra.mxu0 0
  %102 = vmatprep.subr.bf16.mxu0 0
  %103 = vmatpush2.bf16.msra.mxu0 0
  %104 = vmatprep.subr.bf16.mxu0 0
  %105 = vmatpush2.bf16.msra.mxu0 0
  %106 = vmatprep.subr.bf16.mxu0 0
  %107 = vmatpush2.bf16.msra.mxu0 0
  %108 = vmatprep.mubr.bf16.mxu0 0
  %109 = vmatmul.mubr.bf16.gmra.mxu0 %v74
  %v110 = vpop.f32.mrf.mxu0
  %v111 = vadd.f32 0.0, %v110
  %v112 = vpop.f32.mrf.mxu0
  %v113 = vpop.f32.mrf.mxu0
  %v114 = vadd.f32 0.0, %v113
  %v115 = vpop.f32.mrf.mxu0
  %116 = vdwg.mxu0
  %v117 = vadd.f32 %v41, %v111
  %v118 = vadd.f32 %v42, %v114
  %vm119 = vcmask 261120
  %120 = vst.msk [vmem:[#allocation2] sm:$0xff] %vm119, %v117
  %121 = vst.msk [vmem:[#allocation2 + $0x8] sm:$0xff] %vm119, %v118
  // Predicated region
  $region30: #{_encoder_forward.14} parent=0 // pred_check
    %p122 = pneg %p24
  $region31: #{_encoder_forward.14} parent=0 // pred_check_branch
    %124 = sbr.rel (%p122) target = $region33
  $region32: #{_encoder_forward.14} parent=0 // pred_region
    %v125 = vld [vmem:[#allocation2] sm:$0xff]
    %v126 = vld [vmem:[#allocation2 + $0x8] sm:$0xff]
    %v127 = vld [vmem:[%s2] sm:$0x1]
    %v129 = vlaneseq
    %v130 = vshrl.u32 %v129, 7
    %v131 = vsub.s32 0, %v130
    %v132 = vrot.slane %v127, %v131
    %v134 = vadd.f32 %v125, %v132
    %v135 = vadd.f32 %v126, %v132
    %v136 = vld [vmem:[%s3] sm:$0xff]
    %v137 = vld [vmem:[%s3 + $0x8] sm:$0xff]
    %v138 = vadd.f32 %v134, %v136
    %v139 = vadd.f32 %v135, %v137
    %v140 = vsel %vm119, %v138, 0.0
    %141 = vadd.xlane.f32.xlu0 %v140
    %v142 = vpop.xlane.xlu0 %141
    %v143 = vsel %vm119, %v139, 0.0
    %144 = vadd.xlane.f32.xlu0 %v143
    %v145 = vpop.xlane.xlu0 %144
    %v146 = vrcp.pop 32.0
    %v147 = vmul.f32 %v142, %v146
    %v148 = vmul.f32 %v145, %v146
    %v149 = vsub.f32 %v138, %v147
    %v150 = vsub.f32 %v139, %v148
    %v151 = vmul.f32 %v149, %v149
    %v152 = vmul.f32 %v150, %v150
    %v153 = vsel %vm119, %v151, 0.0
    %154 = vadd.xlane.f32.xlu0 %v153
    %v155 = vpop.xlane.xlu0 %154
    %v156 = vsel %vm119, %v152, 0.0
    %157 = vadd.xlane.f32.xlu0 %v156
    %v158 = vpop.xlane.xlu0 %157
    %v159 = vmul.f32 %v155, %v146
    %v160 = vmul.f32 %v158, %v146
    %v161 = vadd.f32 %v159, 1e-05
    %v162 = vadd.f32 %v160, 1e-05
    %v163 = vrsqrt.pop %v161
    %v164 = vrsqrt.pop %v162
    %v165 = vmul.f32 %v149, %v163
    %v166 = vmul.f32 %v150, %v164
    %v167 = vld [vmem:[%s4] sm:$0x1]
    %v169 = vlaneseq
    %v170 = vshrl.u32 %v169, 7
    %v171 = vsub.s32 0, %v170
    %v172 = vrot.slane %v167, %v171
    %v174 = vmul.f32 %v165, %v172
    %v175 = vmul.f32 %v166, %v172
    %v176 = vld [vmem:[%s5] sm:$0x1]
    %v178 = vlaneseq
    %v179 = vshrl.u32 %v178, 7
    %v180 = vsub.s32 0, %v179
    %v181 = vrot.slane %v176, %v180
    %v183 = vadd.f32 %v174, %v181
    %v184 = vadd.f32 %v175, %v181
    %185 = vst.msk [vmem:[%s6] sm:$0xff] %vm119, %v183
    %186 = vst.msk [vmem:[%s6 + $0x8] sm:$0xff] %vm119, %v184
  $region33: #{_encoder_forward.14} parent=0 // pred_fallthru
    _
  // Predicated region
  $region34: #{_encoder_forward.14} parent=0 // pred_check
    _
  $region35: #{_encoder_forward.14} parent=0 // pred_check_branch
    %188 = sbr.rel (0) target = $region37
  $region36: #{_encoder_forward.14} parent=0 // pred_region
    _
  $region37: #{_encoder_forward.14} parent=0 // pred_fallthru
    _
  // Predicated region
  $region38: #{_encoder_forward.14} parent=0 // pred_check
    _
  $region39: #{_encoder_forward.14} parent=0 // pred_check_branch
    %190 = sbr.rel (0) target = $region41
  $region40: #{_encoder_forward.14} parent=0 // pred_region
    _
  $region41: #{_encoder_forward.14} parent=0 // pred_fallthru
    _

// kernel: _encoder_forward.19
$region0: #{_encoder_forward.19}
  #allocation0 [shape = 'u32[]', space=smem, size = 0x4, offset = 0x4, fixed_abs, tag = 'smem constant byte address 0x4 - core index']
  #allocation1 [shape = 'u32[144,128]{1,0:T(1,128)}', space=vmem, size = 0x12000, scoped, tag = 'internal scratch']
  #allocation2 [shape = 'f32[16,32]{1,0:T(8,128)}', space=vmem, size = 0x2000, scoped, tag = 'scratch operand']
  %s0 = inlined_call_operand.vmem [shape: bf16[16,64], index: 0, kind: input, shape index: {}]
  %s1 = inlined_call_operand.vmem [shape: bf16[64,32], index: 1, kind: input, shape index: {}]
  %s2 = inlined_call_operand.vmem [shape: f32[1,32], index: 2, kind: input, shape index: {}]
  %s3 = inlined_call_operand.vmem [shape: f32[16,32], index: 3, kind: input, shape index: {}]
  %s4 = inlined_call_operand.vmem [shape: f32[1,32], index: 4, kind: input, shape index: {}]
  %s5 = inlined_call_operand.vmem [shape: f32[1,32], index: 5, kind: input, shape index: {}]
  %s6 = inlined_call_operand.vmem [shape: f32[1,32], index: 6, kind: input, shape index: {}]
  %s7 = inlined_call_operand.vmem [shape: f32[1,32], index: 7, kind: input, shape index: {}]
  %s8 = inlined_call_operand.hbm [shape: f32[16,32], index: 8, kind: output, shape index: {}]
  %s9 = sld [smem:[#allocation0]]
  $region50: #{_encoder_forward.19} parent=0
    _
  %s11 = ssub.s32 1, %s9
  %s12 = scalar_select 0, %s11, %s9
  $region1: #{_encoder_forward.19} parent=0
    #allocation3 [shape = 'u8[8192]{0}', space=vmem, size = 0x2000, scoped, tag = 'output window, operand 0, single buffered']
    #allocation4 [shape = 's32[1]{0}', space=sflag, size = 0x4, scoped, tag = 'scoped memory for _encoder_forward.19']
    %13 = vsyncpa [#allocation4], 0
    // Predicated region
    $region2: #{_encoder_forward.19} parent=1 // pred_check
      _
    $region3: #{_encoder_forward.19} parent=1 // pred_check_branch
      %15 = sbr.rel (0) target = $region5
    $region4: #{_encoder_forward.19} parent=1 // pred_region
      _
    $region5: #{_encoder_forward.19} parent=1 // pred_fallthru
      _
    // Predicated region
    $region6: #{_encoder_forward.19} parent=1 // pred_check
      _
    $region7: #{_encoder_forward.19} parent=1 // pred_check_branch
      %17 = sbr.rel (0) target = $region9
    $region8: #{_encoder_forward.19} parent=1 // pred_region
      _
    $region9: #{_encoder_forward.19} parent=1 // pred_fallthru
      _
    // Predicated region
    $region10: #{_encoder_forward.19} parent=1 // pred_check
      _
    $region11: #{_encoder_forward.19} parent=1 // pred_check_branch
      %19 = sbr.rel (0) target = $region13
    $region12: #{_encoder_forward.19} parent=1 // pred_region
      _
    $region13: #{_encoder_forward.19} parent=1 // pred_fallthru
      _
    // Predicated region
    $region14: #{_encoder_forward.19} parent=1 // pred_check
      _
    $region15: #{_encoder_forward.19} parent=1 // pred_check_branch
      %21 = sbr.rel (0) target = $region17
    $region16: #{_encoder_forward.19} parent=1 // pred_region
      _
    $region17: #{_encoder_forward.19} parent=1 // pred_fallthru
      _
    // Predicated region
    $region18: #{_encoder_forward.19} parent=1 // pred_check
      _
    $region19: #{_encoder_forward.19} parent=1 // pred_check_branch
      %23 = sbr.rel (0) target = $region21
    $region20: #{_encoder_forward.19} parent=1 // pred_region
      _
    $region21: #{_encoder_forward.19} parent=1 // pred_fallthru
      _
    // Predicated region
    $region22: #{_encoder_forward.19} parent=1 // pred_check
      _
    $region23: #{_encoder_forward.19} parent=1 // pred_check_branch
      %25 = sbr.rel (0) target = $region25
    $region24: #{_encoder_forward.19} parent=1 // pred_region
      _
    $region25: #{_encoder_forward.19} parent=1 // pred_fallthru
      _
    // Predicated region
    $region26: #{_encoder_forward.19} parent=1 // pred_check
      _
    $region27: #{_encoder_forward.19} parent=1 // pred_check_branch
      %27 = sbr.rel (0) target = $region29
    $region28: #{_encoder_forward.19} parent=1 // pred_region
      _
    $region29: #{_encoder_forward.19} parent=1 // pred_fallthru
      _
    // Predicated region
    $region30: #{_encoder_forward.19} parent=1 // pred_check
      _
    $region31: #{_encoder_forward.19} parent=1 // pred_check_branch
      %29 = sbr.rel (0) target = $region33
    $region32: #{_encoder_forward.19} parent=1 // pred_region
      _
    $region33: #{_encoder_forward.19} parent=1 // pred_fallthru
      _
    %p31 = scmp.eq.s32.totalorder 0, 0
    // Predicated region
    $region34: #{_encoder_forward.19} parent=1 // pred_check
      %p32 = pneg %p31
    $region35: #{_encoder_forward.19} parent=1 // pred_check_branch
      %34 = sbr.rel (%p32) target = $region37
    $region36: #{_encoder_forward.19} parent=1 // pred_region
      %vm35 = vcmask 261120
      %36 = vst.msk [vmem:[#allocation2] sm:$0xff] %vm35, 0.0
      %37 = vst.msk [vmem:[#allocation2 + $0x8] sm:$0xff] %vm35, 0.0
    $region37: #{_encoder_forward.19} parent=1 // pred_fallthru
      _
    %v38 = vld [vmem:[%s0] sm:$0xf]
    %v39 = vld [vmem:[%s0 + $0x4] sm:$0xf]
    %v40 = vld [vmem:[%s1] sm:$0xf]
    %v41 = vld [vmem:[%s1 + $0x4] sm:$0xf]
    %v42 = vld [vmem:[%s1 + $0x8] sm:$0xf]
    %v43 = vld [vmem:[%s1 + $0xc] sm:$0xf]
    %v44 = vld [vmem:[%s1 + $0x10] sm:$0xf]
    %v45 = vld [vmem:[%s1 + $0x14] sm:$0xf]
    %v46 = vld [vmem:[%s1 + $0x18] sm:$0xf]
    %v47 = vld [vmem:[%s1 + $0x1c] sm:$0xf]
    %v48 = vld [vmem:[#allocation2] sm:$0xff]
    %v49 = vld [vmem:[#allocation2 + $0x8] sm:$0xff]
    %v52 = vunpack.c.l.b16 %v38
    %v53 = vunpack.c.l.b16 %v39
    %v54 = vpack.c.b16 %v53, %v52
    %v63 = vunpack.c.l.b16 %v40
    %v64 = vunpack.c.l.b16 %v41
    %v65 = vunpack.c.l.b16 %v42
    %v66 = vunpack.c.l.b16 %v43
    %v67 = vunpack.c.l.b16 %v44
    %v68 = vunpack.c.l.b16 %v45
    %v69 = vunpack.c.l.b16 %v46
    %v70 = vunpack.c.l.b16 %v47
    %v71 = vpack.c.b16 %v64, %v63
    %v72 = vpack.c.b16 %v66, %v65
    %v73 = vpack.c.b16 %v68, %v67
    %v74 = vpack.c.b16 %v70, %v69
    %vm79 = vcmask 523264
    %v81 = vsel %vm79, %v54, 0
    %83 = vmatprep.subr.bf16.mxu0 0
    %84 = vmatpush1.bf16.msra.mxu0 0
    %85 = vmatprep.subr.bf16.mxu0 0
    %86 = vmatpush1.bf16.msra.mxu0 0
    %87 = vmatprep.subr.bf16.mxu0 0
    %88 = vmatpush1.bf16.msra.mxu0 0
    %89 = vmatprep.subr.bf16.mxu0 0
    %90 = vmatpush1.bf16.msra.mxu0 0
    %91 = vmatprep.subr.bf16.mxu0 0
    %92 = vmatpush1.bf16.msra.mxu0 %v74
    %93 = vmatprep.subr.bf16.mxu0 0
    %94 = vmatpush1.bf16.msra.mxu0 %v73
    %95 = vmatprep.subr.bf16.mxu0 0
    %96 = vmatpush1.bf16.msra.mxu0 %v72
    %97 = vmatprep.subr.bf16.mxu0 0
    %98 = vmatpush1.bf16.msra.mxu0 %v71
    %99 = vmatprep.subr.bf16.mxu0 0
    %100 = vmatpush2.bf16.msra.mxu0 0
    %101 = vmatprep.subr.bf16.mxu0 0
    %102 = vmatpush2.bf16.msra.mxu0 0
    %103 = vmatprep.subr.bf16.mxu0 0
    %104 = vmatpush2.bf16.msra.mxu0 0
    %105 = vmatprep.subr.bf16.mxu0 0
    %106 = vmatpush2.bf16.msra.mxu0 0
    %107 = vmatprep.subr.bf16.mxu0 0
    %108 = vmatpush2.bf16.msra.mxu0 0
    %109 = vmatprep.subr.bf16.mxu0 0
    %110 = vmatpush2.bf16.msra.mxu0 0
    %111 = vmatprep.subr.bf16.mxu0 0
    %112 = vmatpush2.bf16.msra.mxu0 0
    %113 = vmatprep.subr.bf16.mxu0 0
    %114 = vmatpush2.bf16.msra.mxu0 0
    %115 = vmatprep.mubr.bf16.mxu0 0
    %116 = vmatmul.mubr.bf16.gmra.mxu0 %v81
    %v117 = vpop.f32.mrf.mxu0
    %v118 = vadd.f32 0.0, %v117
    %v119 = vpop.f32.mrf.mxu0
    %v120 = vpop.f32.mrf.mxu0
    %v121 = vadd.f32 0.0, %v120
    %v122 = vpop.f32.mrf.mxu0
    %123 = vdwg.mxu0
    %v124 = vadd.f32 %v48, %v118
    %v125 = vadd.f32 %v49, %v121
    %vm126 = vcmask 261120
    %127 = vst.msk [vmem:[#allocation2] sm:$0xff] %vm126, %v124
    %128 = vst.msk [vmem:[#allocation2 + $0x8] sm:$0xff] %vm126, %v125
    // Predicated region
    $region38: #{_encoder_forward.19} parent=1 // pred_check
      %p129 = pneg %p31
    $region39: #{_encoder_forward.19} parent=1 // pred_check_branch
      %131 = sbr.rel (%p129) target = $region41
    $region40: #{_encoder_forward.19} parent=1 // pred_region
      %v132 = vld [vmem:[#allocation2] sm:$0xff]
      %v133 = vld [vmem:[#allocation2 + $0x8] sm:$0xff]
      %v134 = vld [vmem:[%s2] sm:$0x1]
      %v136 = vlaneseq
      %v137 = vshrl.u32 %v136, 7
      %v138 = vsub.s32 0, %v137
      %v139 = vrot.slane %v134, %v138
      %v141 = vadd.f32 %v132, %v139
      %v142 = vadd.f32 %v133, %v139
      %v143 = vld [vmem:[%s3] sm:$0xff]
      %v144 = vld [vmem:[%s3 + $0x8] sm:$0xff]
      %v145 = vadd.f32 %v141, %v143
      %v146 = vadd.f32 %v142, %v144
      %v147 = vsel %vm126, %v145, 0.0
      %148 = vadd.xlane.f32.xlu0 %v147
      %v149 = vpop.xlane.xlu0 %148
      %v150 = vsel %vm126, %v146, 0.0
      %151 = vadd.xlane.f32.xlu0 %v150
      %v152 = vpop.xlane.xlu0 %151
      %v153 = vrcp.pop 32.0
      %v154 = vmul.f32 %v149, %v153
      %v155 = vmul.f32 %v152, %v153
      %v156 = vsub.f32 %v145, %v154
      %v157 = vsub.f32 %v146, %v155
      %v158 = vmul.f32 %v156, %v156
      %v159 = vmul.f32 %v157, %v157
      %v160 = vsel %vm126, %v158, 0.0
      %161 = vadd.xlane.f32.xlu0 %v160
      %v162 = vpop.xlane.xlu0 %161
      %v163 = vsel %vm126, %v159, 0.0
      %164 = vadd.xlane.f32.xlu0 %v163
      %v165 = vpop.xlane.xlu0 %164
      %v166 = vmul.f32 %v162, %v153
      %v167 = vmul.f32 %v165, %v153
      %v168 = vadd.f32 %v166, 1e-05
      %v169 = vadd.f32 %v167, 1e-05
      %v170 = vrsqrt.pop %v168
      %v171 = vrsqrt.pop %v169
      %v172 = vmul.f32 %v156, %v170
      %v173 = vmul.f32 %v157, %v171
      %v174 = vld [vmem:[%s4] sm:$0x1]
      %v176 = vlaneseq
      %v177 = vshrl.u32 %v176, 7
      %v178 = vsub.s32 0, %v177
      %v179 = vrot.slane %v174, %v178
      %v181 = vmul.f32 %v172, %v179
      %v182 = vmul.f32 %v173, %v179
      %v183 = vld [vmem:[%s5] sm:$0x1]
      %v185 = vlaneseq
      %v186 = vshrl.u32 %v185, 7
      %v187 = vsub.s32 0, %v186
      %v188 = vrot.slane %v183, %v187
      %v190 = vadd.f32 %v181, %v188
      %v191 = vadd.f32 %v182, %v188
      %v192 = vsel %vm126, %v190, 0.0
      %193 = vadd.xlane.f32.xlu0 %v192
      %v194 = vpop.xlane.xlu0 %193
      %v195 = vsel %vm126, %v191, 0.0
      %196 = vadd.xlane.f32.xlu0 %v195
      %v197 = vpop.xlane.xlu0 %196
      %v198 = vmul.f32 %v194, %v153
      %v199 = vmul.f32 %v197, %v153
      %v200 = vsub.f32 %v190, %v198
      %v201 = vsub.f32 %v191, %v199
      %v202 = vmul.f32 %v200, %v200
      %v203 = vmul.f32 %v201, %v201
      %v204 = vsel %vm126, %v202, 0.0
      %205 = vadd.xlane.f32.xlu0 %v204
      %v206 = vpop.xlane.xlu0 %205
      %v207 = vsel %vm126, %v203, 0.0
      %208 = vadd.xlane.f32.xlu0 %v207
      %v209 = vpop.xlane.xlu0 %208
      %v210 = vmul.f32 %v206, %v153
      %v211 = vmul.f32 %v209, %v153
      %v212 = vadd.f32 %v210, 1e-05
      %v213 = vadd.f32 %v211, 1e-05
      %v214 = vrsqrt.pop %v212
      %v215 = vrsqrt.pop %v213
      %v216 = vmul.f32 %v200, %v214
      %v217 = vmul.f32 %v201, %v215
      %v218 = vld [vmem:[%s6] sm:$0x1]
      %v220 = vlaneseq
      %v221 = vshrl.u32 %v220, 7
      %v222 = vsub.s32 0, %v221
      %v223 = vrot.slane %v218, %v222
      %v225 = vmul.f32 %v216, %v223
      %v226 = vmul.f32 %v217, %v223
      %v227 = vld [vmem:[%s7] sm:$0x1]
      %v229 = vlaneseq
      %v230 = vshrl.u32 %v229, 7
      %v231 = vsub.s32 0, %v230
      %v232 = vrot.slane %v227, %v231
      %v234 = vadd.f32 %v225, %v232
      %v235 = vadd.f32 %v226, %v232
      %236 = vst.msk [vmem:[#allocation3] sm:$0xff] %vm126, %v234
      %237 = vst.msk [vmem:[#allocation3 + $0x8] sm:$0xff] %vm126, %v235
    $region41: #{_encoder_forward.19} parent=1 // pred_fallthru
      _
    // Predicated region
    $region42: #{_encoder_forward.19} parent=1 // pred_check
      _
    $region43: #{_encoder_forward.19} parent=1 // pred_check_branch
      %239 = sbr.rel (0) target = $region45
    $region44: #{_encoder_forward.19} parent=1 // pred_region
      %s241 = ssub.s32 256, 256
      %242 = vsyncadd [#allocation4], %s241
      %s243 = sshll.u32 [#allocation3], 4
      %s244 = int_to_ptr.vmem [resolvable:$true] %s243
      %249 = dma.vmem_to_hbm [thread:$0]  %s244, 256, %s8, [#allocation4], 128, 128, 8
    $region45: #{_encoder_forward.19} parent=1 // pred_fallthru
      _
    // Predicated region
    $region46: #{_encoder_forward.19} parent=1 // pred_check
      _
    $region47: #{_encoder_forward.19} parent=1 // pred_check_branch
      %251 = sbr.rel (0) target = $region49
    $region48: #{_encoder_forward.19} parent=1 // pred_region
      %252 = dma.done [#allocation4], 256
    $region49: #{_encoder_forward.19} parent=1 // pred_fallthru
      _
    %253 = vsyncpa [#allocation4], 1

</llo_original>
